<compile_context>
chip_gen: v7x
topology: tpu7x:2x2x1
jax: 0.10.0
libtpu: 0.0.40
codegen_flags: <defaults>
</compile_context>

<pallas_src>
import functools

import jax
import jax.numpy as jnp
from jax.experimental import pallas as pl
from jax.experimental.pallas import tpu as pltpu


def resblock_kernel(x_ref, w1_ref, b1_ref, wB_ref, bB_ref, o_ref,
                    xpad_ref, rpad_ref, col_ref, *,
                    H, W, Cin, Cout, has_downsample):
    f32 = jnp.float32
    bf16 = jnp.bfloat16
    Hp, Wp = H + 2, W + 2
    M = H * W
    K1 = 9 * Cin
    base2 = K1 if has_downsample else 0

    x = x_ref[0]                                       # (H, W, Cin) float32

    # Activation feeding conv1's im2col. With an identity skip we fold relu(x)
    # in here (zero padding commutes with relu since relu(0) == 0); with a
    # downsample conv the skip needs un-relu'd x, so relu is applied to the
    # im2col columns right before the conv1 matmul instead.
    xa = x if has_downsample else jnp.maximum(x, 0.0)

    # ---- zero-padded x in VMEM ------------------------------------------------
    # Border re-zeroed every step: with a "parallel" batch axis each core owns a
    # private scratch and may never execute grid step 0.
    xpad_ref[0:1, :, :] = jnp.zeros((1, Wp, Cin), f32)
    xpad_ref[H + 1:H + 2, :, :] = jnp.zeros((1, Wp, Cin), f32)
    xpad_ref[:, 0:1, :] = jnp.zeros((Hp, 1, Cin), f32)
    xpad_ref[:, W + 1:W + 2, :] = jnp.zeros((Hp, 1, Cin), f32)
    xpad_ref[1:H + 1, 1:W + 1, :] = xa

    # ---- im2col for conv1 / downsample: col[:, 0:9*Cin] (bf16) ----------------
    # One misaligned (dx-shifted) read per dx; the dy shift is a free
    # leading-dim slice of the loaded slab; one bf16 cast per slab.
    for dx in range(3):
        slab = xpad_ref[:, dx:dx + W, :].astype(bf16)  # (Hp, W, Cin)
        for dy in range(3):
            t = dy * 3 + dx
            col_ref[:, t * Cin:(t + 1) * Cin] = slab[dy:dy + H].reshape(M, Cin)

    # ---- conv1: single MXU matmul, K = 9*Cin ----------------------------------
    xcol = col_ref[:, 0:K1]
    a1_in = jnp.maximum(xcol, 0.0) if has_downsample else xcol
    acc1 = jnp.dot(a1_in, w1_ref[...], preferred_element_type=f32) + b1_ref[...]
    r1 = jnp.maximum(acc1, 0.0)                        # (M, Cout) float32

    # ---- zero-padded relu(conv1) in VMEM --------------------------------------
    rpad_ref[0:1, :, :] = jnp.zeros((1, Wp, Cout), f32)
    rpad_ref[H + 1:H + 2, :, :] = jnp.zeros((1, Wp, Cout), f32)
    rpad_ref[:, 0:1, :] = jnp.zeros((Hp, 1, Cout), f32)
    rpad_ref[:, W + 1:W + 2, :] = jnp.zeros((Hp, 1, Cout), f32)
    rpad_ref[1:H + 1, 1:W + 1, :] = r1.reshape(H, W, Cout)

    # ---- im2col for conv2: col[:, base2:base2+9*Cout] (bf16) ------------------
    for dx in range(3):
        slab = rpad_ref[:, dx:dx + W, :].astype(bf16)  # (Hp, W, Cout)
        for dy in range(3):
            t = dy * 3 + dx
            c0 = base2 + t * Cout
            col_ref[:, c0:c0 + Cout] = slab[dy:dy + H].reshape(M, Cout)

    # ---- conv2 (+ fused downsample conv when present): one matmul -------------
    #   downsample: out = [x_cols | r_cols] @ [wd ; w2] + (bd + b2)
    #   identity:   out = r_cols @ w2 + b2 + x          (skip stays f32)
    accB = jnp.dot(col_ref[...], wB_ref[...], preferred_element_type=f32) + bB_ref[...]
    out = accB if has_downsample else accB + x.reshape(M, Cout)
    o_ref[0] = out.reshape(H, W, Cout).astype(o_ref.dtype)


def _vmem_limit_bytes():
    # Generation-aware scoped-VMEM limit: most of v5e/v6e's 128 MiB, with
    # headroom below v7x's 64 MiB per-core physical ceiling.
    try:
        cap = int(pltpu.get_tpu_info().vmem_capacity_bytes)
    except Exception:
        cap = 64 * 1024 * 1024
    return int(max(32 * 1024 * 1024,
                   min(cap - 16 * 1024 * 1024, 100 * 1024 * 1024)))


def resblock_forward_nhwc(x, params):
    """Fused ResBlock, NHWC in / NHWC out. Use this end-to-end inside a network
    so no per-block layout transposes (extra HBM passes) are needed.

    x: (N, H, W, Cin) float32 -> (N, H, W, Cout) float32.
    """
    w1, b1 = params["w1"], params["b1"]
    w2, b2 = params["w2"], params["b2"]
    wd, bd = params.get("wd"), params.get("bd")
    has_downsample = wd is not None

    N, H, W, Cin = x.shape
    Cout = w1.shape[-1]
    if not has_downsample:
        assert Cin == Cout, "identity skip requires indim == outdim"

    bf16 = jnp.bfloat16
    K1, K2 = 9 * Cin, 9 * Cout

    # im2col weight layout: rows ordered (dy, dx, cin) to match the kernel's
    # column layout; shipped as bf16 (half the weight DMA, MXU-native dtype).
    w1r = w1.reshape(K1, Cout).astype(bf16)
    w2r = w2.reshape(K2, Cout).astype(bf16)
    if has_downsample:
        # Fuse the downsample conv into conv2's matmul: [wd ; w2], bias bd + b2.
        wB = jnp.concatenate([wd.reshape(K1, Cout).astype(bf16), w2r], axis=0)
        bB = bd + b2
        Kcol = K1 + K2
    else:
        wB, bB, Kcol = w2r, b2, K2

    Hp, Wp = H + 2, W + 2
    M = H * W

    kernel = functools.partial(resblock_kernel, H=H, W=W, Cin=Cin, Cout=Cout,
                               has_downsample=has_downsample)

    return pl.pallas_call(
        kernel,
        out_shape=jax.ShapeDtypeStruct((N, H, W, Cout), jnp.float32),
        grid_spec=pltpu.PrefetchScalarGridSpec(
            num_scalar_prefetch=0,
            grid=(N,),
            in_specs=[
                pl.BlockSpec((1, H, W, Cin), lambda n: (n, 0, 0, 0)),
                pl.BlockSpec((K1, Cout), lambda n: (0, 0)),
                pl.BlockSpec((1, Cout), lambda n: (0, 0)),
                pl.BlockSpec((Kcol, Cout), lambda n: (0, 0)),
                pl.BlockSpec((1, Cout), lambda n: (0, 0)),
            ],
            out_specs=pl.BlockSpec((1, H, W, Cout), lambda n: (n, 0, 0, 0)),
            scratch_shapes=[
                pltpu.VMEM((Hp, Wp, Cin), jnp.float32),   # zero-padded x
                pltpu.VMEM((Hp, Wp, Cout), jnp.float32),  # zero-padded relu(conv1)
                pltpu.VMEM((M, Kcol), bf16),              # shared im2col buffer
            ],
        ),
        compiler_params=pltpu.CompilerParams(
            dimension_semantics=("parallel",),            # batch across cores
            vmem_limit_bytes=_vmem_limit_bytes(),
        ),
    )(x, w1r, b1, wB, bB)


def resblock_forward(x_nchw, params):
    """PyTorch-parity entry point: NCHW in/out. Layout conversion happens only
    at this boundary; chain resblock_forward_nhwc directly inside a network."""
    x = jnp.transpose(x_nchw, (0, 2, 3, 1))
    out = resblock_forward_nhwc(x, params)
    return jnp.transpose(out, (0, 3, 1, 2))


# ------------------------- pure-JAX reference --------------------------------
def _conv_ref(x_nchw, w_hwio, b):
    w_oihw = jnp.transpose(w_hwio, (3, 2, 0, 1))
    y = jax.lax.conv_general_dilated(
        x_nchw, w_oihw, window_strides=(1, 1), padding=((1, 1), (1, 1)),
        dimension_numbers=("NCHW", "OIHW", "NCHW"))
    return y + b.reshape(1, -1, 1, 1)


def resblock_ref(x, params):
    r = _conv_ref(jax.nn.relu(x), params["w1"], params["b1"])
    r = _conv_ref(jax.nn.relu(r), params["w2"], params["b2"])
    if params.get("wd") is not None:
        x = _conv_ref(x, params["wd"], params["bd"])
    return x + r


def _make_params(key, Cin, Cout, with_downsample):
    k1, k2, k3, k4, k5, k6 = jax.random.split(key, 6)
    p = {
        "w1": 0.1 * jax.random.normal(k1, (3, 3, Cin, Cout), jnp.float32),
        "b1": 0.1 * jax.random.normal(k2, (1, Cout), jnp.float32),
        "w2": 0.1 * jax.random.normal(k3, (3, 3, Cout, Cout), jnp.float32),
        "b2": 0.1 * jax.random.normal(k4, (1, Cout), jnp.float32),
    }
    if with_downsample:
        p["wd"] = 0.1 * jax.random.normal(k5, (3, 3, Cin, Cout), jnp.float32)
        p["bd"] = 0.1 * jax.random.normal(k6, (1, Cout), jnp.float32)
    return p


# --------------------------------- main ---------------------------------------
if __name__ == "__main__":
    key = jax.random.PRNGKey(0)
    k_a, k_pa, k_b, k_pb = jax.random.split(key, 4)

    # Case A: indim != outdim -> 3x3 downsample conv on the skip path
    # (fused into conv2's matmul inside the kernel).
    N, Cin, Cout, H, W = 2, 4, 8, 16, 16
    x_a = jax.random.normal(k_a, (N, Cin, H, W), jnp.float32)
    p_a = _make_params(k_pa, Cin, Cout, with_downsample=True)
    out_a = jax.block_until_ready(resblock_forward(x_a, p_a))
    ref_a = jax.block_until_ready(resblock_ref(x_a, p_a))
    assert out_a.shape == (N, Cout, H, W)
    # bf16 MXU operands (f32 accumulate) -> tolerance loosened vs pure-f32 math.
    assert jnp.allclose(out_a, ref_a, atol=2e-2, rtol=2e-2), "downsample case mismatch"

    # Case B: indim == outdim -> identity skip (f32, read straight from x_ref).
    C = 8
    x_b = jax.random.normal(k_b, (N, C, H, W), jnp.float32)
    p_b = _make_params(k_pb, C, C, with_downsample=False)
    out_b = jax.block_until_ready(resblock_forward(x_b, p_b))
    ref_b = jax.block_until_ready(resblock_ref(x_b, p_b))
    assert out_b.shape == (N, C, H, W)
    assert jnp.allclose(out_b, ref_b, atol=2e-2, rtol=2e-2), "identity case mismatch"

    print("KERNEL_OK")
</pallas_src>

<mosaic_0001>
module attributes {stable_mosaic.version = 11 : i64} {
  func.func @resblock_kernel(%arg0: i32, %arg1: memref<1x16x16x4xf32, #tpu.memory_space<vmem>>, %arg2: memref<36x8xbf16, #tpu.memory_space<vmem>>, %arg3: memref<1x8xf32, #tpu.memory_space<vmem>>, %arg4: memref<108x8xbf16, #tpu.memory_space<vmem>>, %arg5: memref<1x8xf32, #tpu.memory_space<vmem>>, %arg6: memref<1x16x16x8xf32, #tpu.memory_space<vmem>>, %arg7: memref<18x18x4xf32, #tpu.memory_space<vmem>>, %arg8: memref<18x18x8xf32, #tpu.memory_space<vmem>>, %arg9: memref<256x108xbf16, #tpu.memory_space<vmem>>) attributes {dimension_semantics = [#tpu.dimension_semantics<parallel>], iteration_bounds = array<i64: 2>, scalar_prefetch = 0 : i64, scratch_operands = 3 : i64, tpu.core_type = #tpu.core_type<tc>, window_params = [{transform_indices = @transform_0, window_bounds = array<i64: 1, 16, 16, 4>}, {pipeline_mode = #tpu.pipeline_mode<synchronous>, transform_indices = @transform_1, window_bounds = array<i64: 36, 8>}, {pipeline_mode = #tpu.pipeline_mode<synchronous>, transform_indices = @transform_2, window_bounds = array<i64: 1, 8>}, {pipeline_mode = #tpu.pipeline_mode<synchronous>, transform_indices = @transform_3, window_bounds = array<i64: 108, 8>}, {pipeline_mode = #tpu.pipeline_mode<synchronous>, transform_indices = @transform_4, window_bounds = array<i64: 1, 8>}, {transform_indices = @transform_5, window_bounds = array<i64: 1, 16, 16, 8>}]} {
    %c0 = arith.constant 0 : index
    %c0_0 = arith.constant 0 : index
    %c0_1 = arith.constant 0 : index
    %c0_2 = arith.constant 0 : index
    %0 = vector.load %arg1[%c0, %c0_0, %c0_1, %c0_2] : memref<1x16x16x4xf32, #tpu.memory_space<vmem>>, vector<1x16x16x4xf32>
    %1 = vector.shape_cast %0 : vector<1x16x16x4xf32> to vector<16x16x4xf32>
    %cst = arith.constant 0.000000e+00 : f32
    %2 = vector.broadcast %cst : f32 to vector<1x18x4xf32>
    %c0_3 = arith.constant 0 : index
    %c0_4 = arith.constant 0 : index
    %c0_5 = arith.constant 0 : index
    %3 = vector.load %arg7[%c0_3, %c0_4, %c0_5] : memref<18x18x4xf32, #tpu.memory_space<vmem>>, vector<1x18x4xf32>
    tpu.vector_store %arg7[%c0_3, %c0_4, %c0_5], %2 {strides = array<i32>} : memref<18x18x4xf32, #tpu.memory_space<vmem>>, vector<1x18x4xf32>,
    %cst_6 = arith.constant 0.000000e+00 : f32
    %4 = vector.broadcast %cst_6 : f32 to vector<1x18x4xf32>
    %c17 = arith.constant 17 : index
    %c0_7 = arith.constant 0 : index
    %c0_8 = arith.constant 0 : index
    %5 = vector.load %arg7[%c17, %c0_7, %c0_8] : memref<18x18x4xf32, #tpu.memory_space<vmem>>, vector<1x18x4xf32>
    tpu.vector_store %arg7[%c17, %c0_7, %c0_8], %4 {strides = array<i32>} : memref<18x18x4xf32, #tpu.memory_space<vmem>>, vector<1x18x4xf32>,
    %cst_9 = arith.constant 0.000000e+00 : f32
    %6 = vector.broadcast %cst_9 : f32 to vector<18x1x4xf32>
    %c0_10 = arith.constant 0 : index
    %c0_11 = arith.constant 0 : index
    %c0_12 = arith.constant 0 : index
    %7 = vector.load %arg7[%c0_10, %c0_11, %c0_12] : memref<18x18x4xf32, #tpu.memory_space<vmem>>, vector<18x1x4xf32>
    tpu.vector_store %arg7[%c0_10, %c0_11, %c0_12], %6 {strides = array<i32>} : memref<18x18x4xf32, #tpu.memory_space<vmem>>, vector<18x1x4xf32>,
    %cst_13 = arith.constant 0.000000e+00 : f32
    %8 = vector.broadcast %cst_13 : f32 to vector<18x1x4xf32>
    %c0_14 = arith.constant 0 : index
    %c17_15 = arith.constant 17 : index
    %c0_16 = arith.constant 0 : index
    %9 = vector.load %arg7[%c0_14, %c17_15, %c0_16] : memref<18x18x4xf32, #tpu.memory_space<vmem>>, vector<18x1x4xf32>
    tpu.vector_store %arg7[%c0_14, %c17_15, %c0_16], %8 {strides = array<i32>} : memref<18x18x4xf32, #tpu.memory_space<vmem>>, vector<18x1x4xf32>,
    %c1 = arith.constant 1 : index
    %c1_17 = arith.constant 1 : index
    %c0_18 = arith.constant 0 : index
    %10 = vector.load %arg7[%c1, %c1_17, %c0_18] : memref<18x18x4xf32, #tpu.memory_space<vmem>>, vector<16x16x4xf32>
    tpu.vector_store %arg7[%c1, %c1_17, %c0_18], %1 {strides = array<i32>} : memref<18x18x4xf32, #tpu.memory_space<vmem>>, vector<16x16x4xf32>,
    %c0_19 = arith.constant 0 : index
    %c0_20 = arith.constant 0 : index
    %c0_21 = arith.constant 0 : index
    %11 = vector.load %arg7[%c0_19, %c0_20, %c0_21] : memref<18x18x4xf32, #tpu.memory_space<vmem>>, vector<18x16x4xf32>
    %12 = arith.truncf %11 : vector<18x16x4xf32> to vector<18x16x4xbf16>
    %13 = vector.extract_strided_slice %12 {offsets = [0, 0, 0], sizes = [16, 16, 4], strides = [1, 1, 1]} : vector<18x16x4xbf16> to vector<16x16x4xbf16>
    %14 = vector.shape_cast %13 : vector<16x16x4xbf16> to vector<256x4xbf16>
    %c0_22 = arith.constant 0 : index
    %c0_23 = arith.constant 0 : index
    %15 = vector.load %arg9[%c0_22, %c0_23] : memref<256x108xbf16, #tpu.memory_space<vmem>>, vector<256x4xbf16>
    tpu.vector_store %arg9[%c0_22, %c0_23], %14 {strides = array<i32>} : memref<256x108xbf16, #tpu.memory_space<vmem>>, vector<256x4xbf16>,
    %16 = vector.extract_strided_slice %12 {offsets = [1, 0, 0], sizes = [16, 16, 4], strides = [1, 1, 1]} : vector<18x16x4xbf16> to vector<16x16x4xbf16>
    %17 = vector.shape_cast %16 : vector<16x16x4xbf16> to vector<256x4xbf16>
    %c0_24 = arith.constant 0 : index
    %c12 = arith.constant 12 : index
    %18 = vector.load %arg9[%c0_24, %c12] : memref<256x108xbf16, #tpu.memory_space<vmem>>, vector<256x4xbf16>
    tpu.vector_store %arg9[%c0_24, %c12], %17 {strides = array<i32>} : memref<256x108xbf16, #tpu.memory_space<vmem>>, vector<256x4xbf16>,
    %19 = vector.extract_strided_slice %12 {offsets = [2, 0, 0], sizes = [16, 16, 4], strides = [1, 1, 1]} : vector<18x16x4xbf16> to vector<16x16x4xbf16>
    %20 = vector.shape_cast %19 : vector<16x16x4xbf16> to vector<256x4xbf16>
    %c0_25 = arith.constant 0 : index
    %c24 = arith.constant 24 : index
    %21 = vector.load %arg9[%c0_25, %c24] : memref<256x108xbf16, #tpu.memory_space<vmem>>, vector<256x4xbf16>
    tpu.vector_store %arg9[%c0_25, %c24], %20 {strides = array<i32>} : memref<256x108xbf16, #tpu.memory_space<vmem>>, vector<256x4xbf16>,
    %c0_26 = arith.constant 0 : index
    %c1_27 = arith.constant 1 : index
    %c0_28 = arith.constant 0 : index
    %22 = vector.load %arg7[%c0_26, %c1_27, %c0_28] : memref<18x18x4xf32, #tpu.memory_space<vmem>>, vector<18x16x4xf32>
    %23 = arith.truncf %22 : vector<18x16x4xf32> to vector<18x16x4xbf16>
    %24 = vector.extract_strided_slice %23 {offsets = [0, 0, 0], sizes = [16, 16, 4], strides = [1, 1, 1]} : vector<18x16x4xbf16> to vector<16x16x4xbf16>
    %25 = vector.shape_cast %24 : vector<16x16x4xbf16> to vector<256x4xbf16>
    %c0_29 = arith.constant 0 : index
    %c4 = arith.constant 4 : index
    %26 = vector.load %arg9[%c0_29, %c4] : memref<256x108xbf16, #tpu.memory_space<vmem>>, vector<256x4xbf16>
    tpu.vector_store %arg9[%c0_29, %c4], %25 {strides = array<i32>} : memref<256x108xbf16, #tpu.memory_space<vmem>>, vector<256x4xbf16>,
    %27 = vector.extract_strided_slice %23 {offsets = [1, 0, 0], sizes = [16, 16, 4], strides = [1, 1, 1]} : vector<18x16x4xbf16> to vector<16x16x4xbf16>
    %28 = vector.shape_cast %27 : vector<16x16x4xbf16> to vector<256x4xbf16>
    %c0_30 = arith.constant 0 : index
    %c16 = arith.constant 16 : index
    %29 = vector.load %arg9[%c0_30, %c16] : memref<256x108xbf16, #tpu.memory_space<vmem>>, vector<256x4xbf16>
    tpu.vector_store %arg9[%c0_30, %c16], %28 {strides = array<i32>} : memref<256x108xbf16, #tpu.memory_space<vmem>>, vector<256x4xbf16>,
    %30 = vector.extract_strided_slice %23 {offsets = [2, 0, 0], sizes = [16, 16, 4], strides = [1, 1, 1]} : vector<18x16x4xbf16> to vector<16x16x4xbf16>
    %31 = vector.shape_cast %30 : vector<16x16x4xbf16> to vector<256x4xbf16>
    %c0_31 = arith.constant 0 : index
    %c28 = arith.constant 28 : index
    %32 = vector.load %arg9[%c0_31, %c28] : memref<256x108xbf16, #tpu.memory_space<vmem>>, vector<256x4xbf16>
    tpu.vector_store %arg9[%c0_31, %c28], %31 {strides = array<i32>} : memref<256x108xbf16, #tpu.memory_space<vmem>>, vector<256x4xbf16>,
    %c0_32 = arith.constant 0 : index
    %c2 = arith.constant 2 : index
    %c0_33 = arith.constant 0 : index
    %33 = vector.load %arg7[%c0_32, %c2, %c0_33] : memref<18x18x4xf32, #tpu.memory_space<vmem>>, vector<18x16x4xf32>
    %34 = arith.truncf %33 : vector<18x16x4xf32> to vector<18x16x4xbf16>
    %35 = vector.extract_strided_slice %34 {offsets = [0, 0, 0], sizes = [16, 16, 4], strides = [1, 1, 1]} : vector<18x16x4xbf16> to vector<16x16x4xbf16>
    %36 = vector.shape_cast %35 : vector<16x16x4xbf16> to vector<256x4xbf16>
    %c0_34 = arith.constant 0 : index
    %c8 = arith.constant 8 : index
    %37 = vector.load %arg9[%c0_34, %c8] : memref<256x108xbf16, #tpu.memory_space<vmem>>, vector<256x4xbf16>
    tpu.vector_store %arg9[%c0_34, %c8], %36 {strides = array<i32>} : memref<256x108xbf16, #tpu.memory_space<vmem>>, vector<256x4xbf16>,
    %38 = vector.extract_strided_slice %34 {offsets = [1, 0, 0], sizes = [16, 16, 4], strides = [1, 1, 1]} : vector<18x16x4xbf16> to vector<16x16x4xbf16>
    %39 = vector.shape_cast %38 : vector<16x16x4xbf16> to vector<256x4xbf16>
    %c0_35 = arith.constant 0 : index
    %c20 = arith.constant 20 : index
    %40 = vector.load %arg9[%c0_35, %c20] : memref<256x108xbf16, #tpu.memory_space<vmem>>, vector<256x4xbf16>
    tpu.vector_store %arg9[%c0_35, %c20], %39 {strides = array<i32>} : memref<256x108xbf16, #tpu.memory_space<vmem>>, vector<256x4xbf16>,
    %41 = vector.extract_strided_slice %34 {offsets = [2, 0, 0], sizes = [16, 16, 4], strides = [1, 1, 1]} : vector<18x16x4xbf16> to vector<16x16x4xbf16>
    %42 = vector.shape_cast %41 : vector<16x16x4xbf16> to vector<256x4xbf16>
    %c0_36 = arith.constant 0 : index
    %c32 = arith.constant 32 : index
    %43 = vector.load %arg9[%c0_36, %c32] : memref<256x108xbf16, #tpu.memory_space<vmem>>, vector<256x4xbf16>
    tpu.vector_store %arg9[%c0_36, %c32], %42 {strides = array<i32>} : memref<256x108xbf16, #tpu.memory_space<vmem>>, vector<256x4xbf16>,
    %c0_37 = arith.constant 0 : index
    %c0_38 = arith.constant 0 : index
    %44 = vector.load %arg9[%c0_37, %c0_38] : memref<256x108xbf16, #tpu.memory_space<vmem>>, vector<256x36xbf16>
    %cst_39 = arith.constant 0.000000e+00 : bf16
    %45 = vector.broadcast %cst_39 : bf16 to vector<256x36xbf16>
    %46 = arith.maximumf %44, %45 : vector<256x36xbf16>
    %c0_40 = arith.constant 0 : index
    %c0_41 = arith.constant 0 : index
    %47 = vector.load %arg2[%c0_40, %c0_41] : memref<36x8xbf16, #tpu.memory_space<vmem>>, vector<36x8xbf16>
    %cst_42 = arith.constant dense<0.000000e+00> : vector<256x8xf32>
    %48 = tpu.matmul %46, %47, %cst_42 {dimension_numbers = #tpu.dot_dimension_numbers<[1], [0], [0], [1], [0, 0, 1, 1], [], []>} : vector<256x36xbf16>, vector<36x8xbf16>, vector<256x8xf32> -> vector<256x8xf32>
    %c0_43 = arith.constant 0 : index
    %c0_44 = arith.constant 0 : index
    %49 = vector.load %arg3[%c0_43, %c0_44] : memref<1x8xf32, #tpu.memory_space<vmem>>, vector<1x8xf32>
    %50 = vector.broadcast %49 : vector<1x8xf32> to vector<256x8xf32>
    %51 = arith.addf %48, %50 : vector<256x8xf32>
    %cst_45 = arith.constant 0.000000e+00 : f32
    %52 = vector.broadcast %cst_45 : f32 to vector<256x8xf32>
    %53 = arith.maximumf %51, %52 : vector<256x8xf32>
    %cst_46 = arith.constant 0.000000e+00 : f32
    %54 = vector.broadcast %cst_46 : f32 to vector<1x18x8xf32>
    %c0_47 = arith.constant 0 : index
    %c0_48 = arith.constant 0 : index
    %c0_49 = arith.constant 0 : index
    %55 = vector.load %arg8[%c0_47, %c0_48, %c0_49] : memref<18x18x8xf32, #tpu.memory_space<vmem>>, vector<1x18x8xf32>
    tpu.vector_store %arg8[%c0_47, %c0_48, %c0_49], %54 {strides = array<i32>} : memref<18x18x8xf32, #tpu.memory_space<vmem>>, vector<1x18x8xf32>,
    %cst_50 = arith.constant 0.000000e+00 : f32
    %56 = vector.broadcast %cst_50 : f32 to vector<1x18x8xf32>
    %c17_51 = arith.constant 17 : index
    %c0_52 = arith.constant 0 : index
    %c0_53 = arith.constant 0 : index
    %57 = vector.load %arg8[%c17_51, %c0_52, %c0_53] : memref<18x18x8xf32, #tpu.memory_space<vmem>>, vector<1x18x8xf32>
    tpu.vector_store %arg8[%c17_51, %c0_52, %c0_53], %56 {strides = array<i32>} : memref<18x18x8xf32, #tpu.memory_space<vmem>>, vector<1x18x8xf32>,
    %cst_54 = arith.constant 0.000000e+00 : f32
    %58 = vector.broadcast %cst_54 : f32 to vector<18x1x8xf32>
    %c0_55 = arith.constant 0 : index
    %c0_56 = arith.constant 0 : index
    %c0_57 = arith.constant 0 : index
    %59 = vector.load %arg8[%c0_55, %c0_56, %c0_57] : memref<18x18x8xf32, #tpu.memory_space<vmem>>, vector<18x1x8xf32>
    tpu.vector_store %arg8[%c0_55, %c0_56, %c0_57], %58 {strides = array<i32>} : memref<18x18x8xf32, #tpu.memory_space<vmem>>, vector<18x1x8xf32>,
    %cst_58 = arith.constant 0.000000e+00 : f32
    %60 = vector.broadcast %cst_58 : f32 to vector<18x1x8xf32>
    %c0_59 = arith.constant 0 : index
    %c17_60 = arith.constant 17 : index
    %c0_61 = arith.constant 0 : index
    %61 = vector.load %arg8[%c0_59, %c17_60, %c0_61] : memref<18x18x8xf32, #tpu.memory_space<vmem>>, vector<18x1x8xf32>
    tpu.vector_store %arg8[%c0_59, %c17_60, %c0_61], %60 {strides = array<i32>} : memref<18x18x8xf32, #tpu.memory_space<vmem>>, vector<18x1x8xf32>,
    %62 = vector.shape_cast %53 : vector<256x8xf32> to vector<16x16x8xf32>
    %c1_62 = arith.constant 1 : index
    %c1_63 = arith.constant 1 : index
    %c0_64 = arith.constant 0 : index
    %63 = vector.load %arg8[%c1_62, %c1_63, %c0_64] : memref<18x18x8xf32, #tpu.memory_space<vmem>>, vector<16x16x8xf32>
    tpu.vector_store %arg8[%c1_62, %c1_63, %c0_64], %62 {strides = array<i32>} : memref<18x18x8xf32, #tpu.memory_space<vmem>>, vector<16x16x8xf32>,
    %c0_65 = arith.constant 0 : index
    %c0_66 = arith.constant 0 : index
    %c0_67 = arith.constant 0 : index
    %64 = vector.load %arg8[%c0_65, %c0_66, %c0_67] : memref<18x18x8xf32, #tpu.memory_space<vmem>>, vector<18x16x8xf32>
    %65 = arith.truncf %64 : vector<18x16x8xf32> to vector<18x16x8xbf16>
    %66 = vector.extract_strided_slice %65 {offsets = [0, 0, 0], sizes = [16, 16, 8], strides = [1, 1, 1]} : vector<18x16x8xbf16> to vector<16x16x8xbf16>
    %67 = vector.shape_cast %66 : vector<16x16x8xbf16> to vector<256x8xbf16>
    %c0_68 = arith.constant 0 : index
    %c36 = arith.constant 36 : index
    %68 = vector.load %arg9[%c0_68, %c36] : memref<256x108xbf16, #tpu.memory_space<vmem>>, vector<256x8xbf16>
    tpu.vector_store %arg9[%c0_68, %c36], %67 {strides = array<i32>} : memref<256x108xbf16, #tpu.memory_space<vmem>>, vector<256x8xbf16>,
    %69 = vector.extract_strided_slice %65 {offsets = [1, 0, 0], sizes = [16, 16, 8], strides = [1, 1, 1]} : vector<18x16x8xbf16> to vector<16x16x8xbf16>
    %70 = vector.shape_cast %69 : vector<16x16x8xbf16> to vector<256x8xbf16>
    %c0_69 = arith.constant 0 : index
    %c60 = arith.constant 60 : index
    %71 = vector.load %arg9[%c0_69, %c60] : memref<256x108xbf16, #tpu.memory_space<vmem>>, vector<256x8xbf16>
    tpu.vector_store %arg9[%c0_69, %c60], %70 {strides = array<i32>} : memref<256x108xbf16, #tpu.memory_space<vmem>>, vector<256x8xbf16>,
    %72 = vector.extract_strided_slice %65 {offsets = [2, 0, 0], sizes = [16, 16, 8], strides = [1, 1, 1]} : vector<18x16x8xbf16> to vector<16x16x8xbf16>
    %73 = vector.shape_cast %72 : vector<16x16x8xbf16> to vector<256x8xbf16>
    %c0_70 = arith.constant 0 : index
    %c84 = arith.constant 84 : index
    %74 = vector.load %arg9[%c0_70, %c84] : memref<256x108xbf16, #tpu.memory_space<vmem>>, vector<256x8xbf16>
    tpu.vector_store %arg9[%c0_70, %c84], %73 {strides = array<i32>} : memref<256x108xbf16, #tpu.memory_space<vmem>>, vector<256x8xbf16>,
    %c0_71 = arith.constant 0 : index
    %c1_72 = arith.constant 1 : index
    %c0_73 = arith.constant 0 : index
    %75 = vector.load %arg8[%c0_71, %c1_72, %c0_73] : memref<18x18x8xf32, #tpu.memory_space<vmem>>, vector<18x16x8xf32>
    %76 = arith.truncf %75 : vector<18x16x8xf32> to vector<18x16x8xbf16>
    %77 = vector.extract_strided_slice %76 {offsets = [0, 0, 0], sizes = [16, 16, 8], strides = [1, 1, 1]} : vector<18x16x8xbf16> to vector<16x16x8xbf16>
    %78 = vector.shape_cast %77 : vector<16x16x8xbf16> to vector<256x8xbf16>
    %c0_74 = arith.constant 0 : index
    %c44 = arith.constant 44 : index
    %79 = vector.load %arg9[%c0_74, %c44] : memref<256x108xbf16, #tpu.memory_space<vmem>>, vector<256x8xbf16>
    tpu.vector_store %arg9[%c0_74, %c44], %78 {strides = array<i32>} : memref<256x108xbf16, #tpu.memory_space<vmem>>, vector<256x8xbf16>,
    %80 = vector.extract_strided_slice %76 {offsets = [1, 0, 0], sizes = [16, 16, 8], strides = [1, 1, 1]} : vector<18x16x8xbf16> to vector<16x16x8xbf16>
    %81 = vector.shape_cast %80 : vector<16x16x8xbf16> to vector<256x8xbf16>
    %c0_75 = arith.constant 0 : index
    %c68 = arith.constant 68 : index
    %82 = vector.load %arg9[%c0_75, %c68] : memref<256x108xbf16, #tpu.memory_space<vmem>>, vector<256x8xbf16>
    tpu.vector_store %arg9[%c0_75, %c68], %81 {strides = array<i32>} : memref<256x108xbf16, #tpu.memory_space<vmem>>, vector<256x8xbf16>,
    %83 = vector.extract_strided_slice %76 {offsets = [2, 0, 0], sizes = [16, 16, 8], strides = [1, 1, 1]} : vector<18x16x8xbf16> to vector<16x16x8xbf16>
    %84 = vector.shape_cast %83 : vector<16x16x8xbf16> to vector<256x8xbf16>
    %c0_76 = arith.constant 0 : index
    %c92 = arith.constant 92 : index
    %85 = vector.load %arg9[%c0_76, %c92] : memref<256x108xbf16, #tpu.memory_space<vmem>>, vector<256x8xbf16>
    tpu.vector_store %arg9[%c0_76, %c92], %84 {strides = array<i32>} : memref<256x108xbf16, #tpu.memory_space<vmem>>, vector<256x8xbf16>,
    %c0_77 = arith.constant 0 : index
    %c2_78 = arith.constant 2 : index
    %c0_79 = arith.constant 0 : index
    %86 = vector.load %arg8[%c0_77, %c2_78, %c0_79] : memref<18x18x8xf32, #tpu.memory_space<vmem>>, vector<18x16x8xf32>
    %87 = arith.truncf %86 : vector<18x16x8xf32> to vector<18x16x8xbf16>
    %88 = vector.extract_strided_slice %87 {offsets = [0, 0, 0], sizes = [16, 16, 8], strides = [1, 1, 1]} : vector<18x16x8xbf16> to vector<16x16x8xbf16>
    %89 = vector.shape_cast %88 : vector<16x16x8xbf16> to vector<256x8xbf16>
    %c0_80 = arith.constant 0 : index
    %c52 = arith.constant 52 : index
    %90 = vector.load %arg9[%c0_80, %c52] : memref<256x108xbf16, #tpu.memory_space<vmem>>, vector<256x8xbf16>
    tpu.vector_store %arg9[%c0_80, %c52], %89 {strides = array<i32>} : memref<256x108xbf16, #tpu.memory_space<vmem>>, vector<256x8xbf16>,
    %91 = vector.extract_strided_slice %87 {offsets = [1, 0, 0], sizes = [16, 16, 8], strides = [1, 1, 1]} : vector<18x16x8xbf16> to vector<16x16x8xbf16>
    %92 = vector.shape_cast %91 : vector<16x16x8xbf16> to vector<256x8xbf16>
    %c0_81 = arith.constant 0 : index
    %c76 = arith.constant 76 : index
    %93 = vector.load %arg9[%c0_81, %c76] : memref<256x108xbf16, #tpu.memory_space<vmem>>, vector<256x8xbf16>
    tpu.vector_store %arg9[%c0_81, %c76], %92 {strides = array<i32>} : memref<256x108xbf16, #tpu.memory_space<vmem>>, vector<256x8xbf16>,
    %94 = vector.extract_strided_slice %87 {offsets = [2, 0, 0], sizes = [16, 16, 8], strides = [1, 1, 1]} : vector<18x16x8xbf16> to vector<16x16x8xbf16>
    %95 = vector.shape_cast %94 : vector<16x16x8xbf16> to vector<256x8xbf16>
    %c0_82 = arith.constant 0 : index
    %c100 = arith.constant 100 : index
    %96 = vector.load %arg9[%c0_82, %c100] : memref<256x108xbf16, #tpu.memory_space<vmem>>, vector<256x8xbf16>
    tpu.vector_store %arg9[%c0_82, %c100], %95 {strides = array<i32>} : memref<256x108xbf16, #tpu.memory_space<vmem>>, vector<256x8xbf16>,
    %c0_83 = arith.constant 0 : index
    %c0_84 = arith.constant 0 : index
    %97 = vector.load %arg9[%c0_83, %c0_84] : memref<256x108xbf16, #tpu.memory_space<vmem>>, vector<256x108xbf16>
    %c0_85 = arith.constant 0 : index
    %c0_86 = arith.constant 0 : index
    %98 = vector.load %arg4[%c0_85, %c0_86] : memref<108x8xbf16, #tpu.memory_space<vmem>>, vector<108x8xbf16>
    %cst_87 = arith.constant dense<0.000000e+00> : vector<256x8xf32>
    %99 = tpu.matmul %97, %98, %cst_87 {dimension_numbers = #tpu.dot_dimension_numbers<[1], [0], [0], [1], [0, 0, 1, 1], [], []>} : vector<256x108xbf16>, vector<108x8xbf16>, vector<256x8xf32> -> vector<256x8xf32>
    %c0_88 = arith.constant 0 : index
    %c0_89 = arith.constant 0 : index
    %100 = vector.load %arg5[%c0_88, %c0_89] : memref<1x8xf32, #tpu.memory_space<vmem>>, vector<1x8xf32>
    %101 = vector.broadcast %100 : vector<1x8xf32> to vector<256x8xf32>
    %102 = arith.addf %99, %101 : vector<256x8xf32>
    %103 = vector.shape_cast %102 : vector<256x8xf32> to vector<16x16x8xf32>
    %c0_90 = arith.constant 0 : index
    %c0_91 = arith.constant 0 : index
    %c0_92 = arith.constant 0 : index
    %c0_93 = arith.constant 0 : index
    %104 = vector.load %arg6[%c0_90, %c0_91, %c0_92, %c0_93] : memref<1x16x16x8xf32, #tpu.memory_space<vmem>>, vector<1x16x16x8xf32>
    %105 = vector.shape_cast %104 : vector<1x16x16x8xf32> to vector<16x16x8xf32>
    %106 = vector.shape_cast %103 : vector<16x16x8xf32> to vector<1x16x16x8xf32>
    tpu.vector_store %arg6[%c0_90, %c0_91, %c0_92, %c0_93], %106 {strides = array<i32>} : memref<1x16x16x8xf32, #tpu.memory_space<vmem>>, vector<1x16x16x8xf32>,
    return
  }
  func.func @transform_0(%arg0: i32) -> (i32, i32, i32, i32) {
    %c0_i32 = arith.constant 0 : i32
    %c0_i32_0 = arith.constant 0 : i32
    %c0_i32_1 = arith.constant 0 : i32
    %c0_i32_2 = arith.constant 0 : i32
    return %arg0, %c0_i32, %c0_i32_0, %c0_i32_1 : i32, i32, i32, i32
  }
  func.func @transform_1(%arg0: i32) -> (i32, i32) {
    %c0_i32 = arith.constant 0 : i32
    %c0_i32_0 = arith.constant 0 : i32
    %c0_i32_1 = arith.constant 0 : i32
    return %c0_i32, %c0_i32_0 : i32, i32
  }
  func.func @transform_2(%arg0: i32) -> (i32, i32) {
    %c0_i32 = arith.constant 0 : i32
    %c0_i32_0 = arith.constant 0 : i32
    %c0_i32_1 = arith.constant 0 : i32
    return %c0_i32, %c0_i32_0 : i32, i32
  }
  func.func @transform_3(%arg0: i32) -> (i32, i32) {
    %c0_i32 = arith.constant 0 : i32
    %c0_i32_0 = arith.constant 0 : i32
    %c0_i32_1 = arith.constant 0 : i32
    return %c0_i32, %c0_i32_0 : i32, i32
  }
  func.func @transform_4(%arg0: i32) -> (i32, i32) {
    %c0_i32 = arith.constant 0 : i32
    %c0_i32_0 = arith.constant 0 : i32
    %c0_i32_1 = arith.constant 0 : i32
    return %c0_i32, %c0_i32_0 : i32, i32
  }
  func.func @transform_5(%arg0: i32) -> (i32, i32, i32, i32) {
    %c0_i32 = arith.constant 0 : i32
    %c0_i32_0 = arith.constant 0 : i32
    %c0_i32_1 = arith.constant 0 : i32
    %c0_i32_2 = arith.constant 0 : i32
    return %arg0, %c0_i32, %c0_i32_0, %c0_i32_1 : i32, i32, i32, i32
  }
}

</mosaic_0001>

<llo_original>
// kernel: tpu_custom_call.1
$region0: #{tpu_custom_call.1}
  #allocation0 [shape = 'u32[]', space=smem, size = 0x4, offset = 0x4, fixed_abs, tag = 'smem constant byte address 0x4 - core index']
  #allocation1 [shape = 'u32[144,128]{1,0:T(1,128)}', space=vmem, size = 0x12000, scoped, tag = 'internal scratch']
  #allocation2 [shape = 'f32[18,18,4]{2,1,0:T(8,128)}', space=vmem, size = 0x36000, scoped, tag = 'scratch operand']
  #allocation3 [shape = 'f32[18,18,8]{2,1,0:T(8,128)}', space=vmem, size = 0x36000, scoped, tag = 'scratch operand']
  #allocation4 [shape = 'bf16[256,108]{1,0:T(16,128)(2,1)}', space=vmem, size = 0x10000, scoped, tag = 'scratch operand']
  %s0 = inlined_call_operand.vmem [shape: f32[2,16,16,4], index: 0, kind: input, shape index: {}]
  %s1 = inlined_call_operand.vmem [shape: bf16[36,8], index: 1, kind: input, shape index: {}]
  %s2 = inlined_call_operand.vmem [shape: f32[1,8], index: 2, kind: input, shape index: {}]
  %s3 = inlined_call_operand.vmem [shape: bf16[108,8], index: 3, kind: input, shape index: {}]
  %s4 = inlined_call_operand.vmem [shape: f32[1,8], index: 4, kind: input, shape index: {}]
  %s5 = inlined_call_operand.vmem [shape: f32[2,16,16,8], index: 5, kind: output, shape index: {}]
  %s6 = sld [smem:[#allocation0]]
  $region53: #{tpu_custom_call.1} parent=0
    _
  %s8 = ssub.s32 1, %s6
  %s9 = scalar_select 0, %s8, %s6
  loop: start=0, step=1, limit=4
  $region2: #{tpu_custom_call.1} parent=0 // loop_pre_header
    _
  $region3: #{tpu_custom_call.1} parent=0 // loop_header
    %s11 = sphi 0, %s15
    %p12 = scmp.ge.s32.totalorder %s11, 4
    %s21 = sphi 0, %s23
    %s24 = sphi 0, %s21
    %s25 = sphi 0, %s24
    %s41 = sphi 0, %s25
    %s45 = sphi 0, %s45
    %s47 = sphi 0, %s45
    %s48 = sphi 0, %s47
    %s62 = sphi 0, %s48
    %s66 = sphi 0, %s66
    %s68 = sphi 0, %s66
    %s69 = sphi 0, %s68
    %s83 = sphi 0, %s69
    %s87 = sphi 0, %s87
    %s89 = sphi 0, %s87
    %s90 = sphi 0, %s89
    %s104 = sphi 0, %s90
    %s108 = sphi 0, %s108
    %s110 = sphi 0, %s108
    %s111 = sphi 0, %s110
    %s125 = sphi 0, %s111
    %s131 = sphi 0, %s133
    %s134 = sphi 0, %s131
    %s135 = sphi 0, %s134
    %s151 = sphi 0, %s135
  $region4: #{tpu_custom_call.1} parent=0 // loop_header_branch
    %14 = sbr.rel (%p12) target = $region8
  $region5: #{tpu_custom_call.1} parent=0 // loop_body
    %s16 = ssub.s32 %s11, 1
    %s17 = ssub.s32 %s11, 2
    %s18 = sadd.s32 %s11, 1
    %s19 = ssub.s32 %s11, %s18
    %p20 = scmp.eq.s32.totalorder %s19, 0
    %s22 = sadd.s32 %s21, 1
    %s23 = scalar_select %p20, %s21, %s22
    %p26 = pneg %p20
    %p27 = scmp.eq.s32.totalorder %s11, 1
    %p28 = por %p26, %p27
    %p29 = scmp.ne.s32.totalorder %s21, %s24
    %p30 = scmp.eq.s32.totalorder %s11, 0
    %p31 = por %p29, %p30
    %p32 = scmp.ne.s32.totalorder %s21, %s24
    %p33 = scmp.eq.s32.totalorder %s16, 1
    %p34 = por %p32, %p33
    %p35 = scmp.ne.s32.totalorder %s24, %s25
    %p36 = scmp.eq.s32.totalorder %s16, 0
    %p37 = por %p35, %p36
    %p38 = scmp.ne.s32.totalorder %s24, %s25
    %p39 = scmp.eq.s32.totalorder %s17, 1
    %p40 = por %p38, %p39
    %p42 = scmp.ne.s32.totalorder %s25, %s41
    %p43 = scmp.eq.s32.totalorder %s17, 0
    %p44 = por %p42, %p43
    %s46 = sadd.s32 %s45, 1
    %p49 = scmp.eq.s32.totalorder %s11, 1
    %p50 = scmp.ne.s32.totalorder %s45, %s47
    %p51 = scmp.eq.s32.totalorder %s11, 0
    %p52 = por %p50, %p51
    %p53 = scmp.ne.s32.totalorder %s45, %s47
    %p54 = scmp.eq.s32.totalorder %s16, 1
    %p55 = por %p53, %p54
    %p56 = scmp.ne.s32.totalorder %s47, %s48
    %p57 = scmp.eq.s32.totalorder %s16, 0
    %p58 = por %p56, %p57
    %p59 = scmp.ne.s32.totalorder %s47, %s48
    %p60 = scmp.eq.s32.totalorder %s17, 1
    %p61 = por %p59, %p60
    %p63 = scmp.ne.s32.totalorder %s48, %s62
    %p64 = scmp.eq.s32.totalorder %s17, 0
    %p65 = por %p63, %p64
    %s67 = sadd.s32 %s66, 1
    %p70 = scmp.eq.s32.totalorder %s11, 1
    %p71 = scmp.ne.s32.totalorder %s66, %s68
    %p72 = scmp.eq.s32.totalorder %s11, 0
    %p73 = por %p71, %p72
    %p74 = scmp.ne.s32.totalorder %s66, %s68
    %p75 = scmp.eq.s32.totalorder %s16, 1
    %p76 = por %p74, %p75
    %p77 = scmp.ne.s32.totalorder %s68, %s69
    %p78 = scmp.eq.s32.totalorder %s16, 0
    %p79 = por %p77, %p78
    %p80 = scmp.ne.s32.totalorder %s68, %s69
    %p81 = scmp.eq.s32.totalorder %s17, 1
    %p82 = por %p80, %p81
    %p84 = scmp.ne.s32.totalorder %s69, %s83
    %p85 = scmp.eq.s32.totalorder %s17, 0
    %p86 = por %p84, %p85
    %s88 = sadd.s32 %s87, 1
    %p91 = scmp.eq.s32.totalorder %s11, 1
    %p92 = scmp.ne.s32.totalorder %s87, %s89
    %p93 = scmp.eq.s32.totalorder %s11, 0
    %p94 = por %p92, %p93
    %p95 = scmp.ne.s32.totalorder %s87, %s89
    %p96 = scmp.eq.s32.totalorder %s16, 1
    %p97 = por %p95, %p96
    %p98 = scmp.ne.s32.totalorder %s89, %s90
    %p99 = scmp.eq.s32.totalorder %s16, 0
    %p100 = por %p98, %p99
    %p101 = scmp.ne.s32.totalorder %s89, %s90
    %p102 = scmp.eq.s32.totalorder %s17, 1
    %p103 = por %p101, %p102
    %p105 = scmp.ne.s32.totalorder %s90, %s104
    %p106 = scmp.eq.s32.totalorder %s17, 0
    %p107 = por %p105, %p106
    %s109 = sadd.s32 %s108, 1
    %p112 = scmp.eq.s32.totalorder %s11, 1
    %p113 = scmp.ne.s32.totalorder %s108, %s110
    %p114 = scmp.eq.s32.totalorder %s11, 0
    %p115 = por %p113, %p114
    %p116 = scmp.ne.s32.totalorder %s108, %s110
    %p117 = scmp.eq.s32.totalorder %s16, 1
    %p118 = por %p116, %p117
    %p119 = scmp.ne.s32.totalorder %s110, %s111
    %p120 = scmp.eq.s32.totalorder %s16, 0
    %p121 = por %p119, %p120
    %p122 = scmp.ne.s32.totalorder %s110, %s111
    %p123 = scmp.eq.s32.totalorder %s17, 1
    %p124 = por %p122, %p123
    %p126 = scmp.ne.s32.totalorder %s111, %s125
    %p127 = scmp.eq.s32.totalorder %s17, 0
    %p128 = por %p126, %p127
    %s129 = ssub.s32 %s11, %s18
    %p130 = scmp.eq.s32.totalorder %s129, 0
    %s132 = sadd.s32 %s131, 1
    %s133 = scalar_select %p130, %s131, %s132
    %p136 = pneg %p130
    %p137 = scmp.eq.s32.totalorder %s11, 1
    %p138 = por %p136, %p137
    %p139 = scmp.ne.s32.totalorder %s131, %s134
    %p140 = scmp.eq.s32.totalorder %s11, 0
    %p141 = por %p139, %p140
    %p142 = scmp.ne.s32.totalorder %s131, %s134
    %p143 = scmp.eq.s32.totalorder %s16, 1
    %p144 = por %p142, %p143
    %p145 = scmp.ne.s32.totalorder %s134, %s135
    %p146 = scmp.eq.s32.totalorder %s16, 0
    %p147 = por %p145, %p146
    %p148 = scmp.ne.s32.totalorder %s134, %s135
    %p149 = scmp.eq.s32.totalorder %s17, 1
    %p150 = por %p148, %p149
    %p152 = scmp.ne.s32.totalorder %s135, %s151
    %p153 = scmp.eq.s32.totalorder %s17, 0
    %p154 = por %p152, %p153
    %p155 = scmp.le.s32.totalorder 1, %s11
    %p156 = scmp.lt.s32.totalorder %s11, 3
    %p157 = pnand %p155, %p156
    %p158 = pneg %p157
    // Predicated region
    $region9: #{tpu_custom_call.1} parent=5 // pred_check
      _
    $region10: #{tpu_custom_call.1} parent=5 // pred_check_branch
      %160 = sbr.rel (%p157) target = $region12
    $region11: #{tpu_custom_call.1} parent=5 // pred_region
      %s161 = ssub.s32 %s11, 1
      // Predicated region
      $region13: #{tpu_custom_call.1} parent=11 // pred_check
        %p162 = pneg %p58
      $region14: #{tpu_custom_call.1} parent=11 // pred_check_branch
        %164 = sbr.rel (%p162) target = $region16
      $region15: #{tpu_custom_call.1} parent=11 // pred_region
        _
      $region16: #{tpu_custom_call.1} parent=11 // pred_fallthru
        _
      // Predicated region
      $region17: #{tpu_custom_call.1} parent=11 // pred_check
        %p165 = pneg %p79
      $region18: #{tpu_custom_call.1} parent=11 // pred_check_branch
        %167 = sbr.rel (%p165) target = $region20
      $region19: #{tpu_custom_call.1} parent=11 // pred_region
        _
      $region20: #{tpu_custom_call.1} parent=11 // pred_fallthru
        _
      // Predicated region
      $region21: #{tpu_custom_call.1} parent=11 // pred_check
        %p168 = pneg %p100
      $region22: #{tpu_custom_call.1} parent=11 // pred_check_branch
        %170 = sbr.rel (%p168) target = $region24
      $region23: #{tpu_custom_call.1} parent=11 // pred_region
        _
      $region24: #{tpu_custom_call.1} parent=11 // pred_fallthru
        _
      // Predicated region
      $region25: #{tpu_custom_call.1} parent=11 // pred_check
        %p171 = pneg %p121
      $region26: #{tpu_custom_call.1} parent=11 // pred_check_branch
        %173 = sbr.rel (%p171) target = $region28
      $region27: #{tpu_custom_call.1} parent=11 // pred_region
        _
      $region28: #{tpu_custom_call.1} parent=11 // pred_fallthru
        _
    $region12: #{tpu_custom_call.1} parent=5 // pred_fallthru
      _
    %p174 = scmp.lt.s32.totalorder %s11, 2
    // Predicated region
    $region29: #{tpu_custom_call.1} parent=5 // pred_check
      %p175 = pneg %p174
    $region30: #{tpu_custom_call.1} parent=5 // pred_check_branch
      %177 = sbr.rel (%p175) target = $region32
    $region31: #{tpu_custom_call.1} parent=5 // pred_region
      // Predicated region
      $region33: #{tpu_custom_call.1} parent=31 // pred_check
        %p178 = pneg %p31
      $region34: #{tpu_custom_call.1} parent=31 // pred_check_branch
        %180 = sbr.rel (%p178) target = $region36
      $region35: #{tpu_custom_call.1} parent=31 // pred_region
        %p181 = scmp.lt.s32.totalorder %s11, 1
        %s182 = scalar_select %p181, %s11, 1
        %s183 = smul.addr %s182, 32
        %s184 = smul.addr %s183, 8
        %s185 = scalar_lea.vmem %s0, %s184
      $region36: #{tpu_custom_call.1} parent=31 // pred_fallthru
        _
    $region32: #{tpu_custom_call.1} parent=5 // pred_fallthru
      _
    %p186 = scmp.le.s32.totalorder 1, %s11
    %p187 = scmp.lt.s32.totalorder %s11, 3
    %p188 = pnand %p186, %p187
    %p189 = pneg %p188
    // Predicated region
    $region37: #{tpu_custom_call.1} parent=5 // pred_check
      _
    $region38: #{tpu_custom_call.1} parent=5 // pred_check_branch
      %191 = sbr.rel (%p188) target = $region40
    $region39: #{tpu_custom_call.1} parent=5 // pred_region
      %s192 = ssub.s32 %s11, 1
      %p193 = scmp.lt.s32.totalorder %s16, 1
      %s194 = scalar_select %p193, %s16, 1
      %s195 = smul.addr %s194, 32
      %s196 = smul.addr %s195, 8
      %s197 = scalar_lea.vmem %s0, %s196
      %p198 = pneg %p37
      %p199 = pneg %p34
      %p200 = pneg %p58
      %p201 = pneg %p55
      %p202 = pneg %p79
      %p203 = pneg %p76
      %p204 = pneg %p100
      %p205 = pneg %p97
      %p206 = pneg %p121
      %p207 = pneg %p118
      %p208 = pneg %p147
      %p209 = pneg %p144
      %p210 = scmp.lt.s32.totalorder %s16, 1
      %s211 = scalar_select %p210, %s16, 1
      %s212 = smul.addr %s211, 32
      %s213 = smul.addr %s212, 8
      %s214 = scalar_lea.vmem %s5, %s213
      %p215 = scmp.lt.s32.totalorder %s16, 1
      %s216 = scalar_select %p215, %s16, 1
      %s217 = smul.addr %s216, 32
      %s218 = smul.addr %s217, 8
      %s219 = scalar_lea.vmem %s0, %s218
      %p220 = scmp.lt.s32.totalorder %s16, 1
      %s221 = scalar_select %p220, %s16, 1
      %s222 = smul.addr %s221, 32
      %s223 = smul.addr %s222, 8
      %s224 = scalar_lea.vmem %s5, %s223
      %v226 = vld [vmem:[%s219] sm:$0xff]
      %v227 = vld [vmem:[%s219 + $0x8] sm:$0xff]
      %v228 = vld [vmem:[%s219 + $0x10] sm:$0xff]
      %v229 = vld [vmem:[%s219 + $0x18] sm:$0xff]
      %v230 = vld [vmem:[%s219 + $0x20] sm:$0xff]
      %v231 = vld [vmem:[%s219 + $0x28] sm:$0xff]
      %v232 = vld [vmem:[%s219 + $0x30] sm:$0xff]
      %v233 = vld [vmem:[%s219 + $0x38] sm:$0xff]
      %v234 = vld [vmem:[%s219 + $0x40] sm:$0xff]
      %v235 = vld [vmem:[%s219 + $0x48] sm:$0xff]
      %v236 = vld [vmem:[%s219 + $0x50] sm:$0xff]
      %v237 = vld [vmem:[%s219 + $0x58] sm:$0xff]
      %v238 = vld [vmem:[%s219 + $0x60] sm:$0xff]
      %v239 = vld [vmem:[%s219 + $0x68] sm:$0xff]
      %v240 = vld [vmem:[%s219 + $0x70] sm:$0xff]
      %v241 = vld [vmem:[%s219 + $0x78] sm:$0xff]
      %v242 = vld [vmem:[%s219 + $0x80] sm:$0xff]
      %v243 = vld [vmem:[%s219 + $0x88] sm:$0xff]
      %v244 = vld [vmem:[%s219 + $0x90] sm:$0xff]
      %v245 = vld [vmem:[%s219 + $0x98] sm:$0xff]
      %v246 = vld [vmem:[%s219 + $0xa0] sm:$0xff]
      %v247 = vld [vmem:[%s219 + $0xa8] sm:$0xff]
      %v248 = vld [vmem:[%s219 + $0xb0] sm:$0xff]
      %v249 = vld [vmem:[%s219 + $0xb8] sm:$0xff]
      %v250 = vld [vmem:[%s219 + $0xc0] sm:$0xff]
      %v251 = vld [vmem:[%s219 + $0xc8] sm:$0xff]
      %v252 = vld [vmem:[%s219 + $0xd0] sm:$0xff]
      %v253 = vld [vmem:[%s219 + $0xd8] sm:$0xff]
      %v254 = vld [vmem:[%s219 + $0xe0] sm:$0xff]
      %v255 = vld [vmem:[%s219 + $0xe8] sm:$0xff]
      %v256 = vld [vmem:[%s219 + $0xf0] sm:$0xff]
      %v257 = vld [vmem:[%s219 + $0xf8] sm:$0xff]
      %vm258 = vcmask 31744
      %259 = vst.msk [vmem:[#allocation2] sm:$0xff] %vm258, 0.0
      %260 = vst.msk [vmem:[#allocation2 + $0x8] sm:$0xff] %vm258, 0.0
      %vm261 = vcmask 25600
      %262 = vst.msk [vmem:[#allocation2 + $0x10] sm:$0x3] %vm261, 0.0
      %s263 = scalar_lea.vmem [#allocation2], 408
      %264 = vst.msk [vmem:[%s263] sm:$0xff] %vm258, 0.0
      %265 = vst.msk [vmem:[%s263 + $0x8] sm:$0xff] %vm258, 0.0
      %266 = vst.msk [vmem:[%s263 + $0x10] sm:$0x3] %vm261, 0.0
      %vm267 = vcmask 24576
      %268 = vst.msk [vmem:[#allocation2] sm:$0x1] %vm267, 0.0
      %269 = vst.msk [vmem:[#allocation2 + $0x18] sm:$0x1] %vm267, 0.0
      %270 = vst.msk [vmem:[#allocation2 + $0x30] sm:$0x1] %vm267, 0.0
      %271 = vst.msk [vmem:[#allocation2 + $0x48] sm:$0x1] %vm267, 0.0
      %272 = vst.msk [vmem:[#allocation2 + $0x60] sm:$0x1] %vm267, 0.0
      %273 = vst.msk [vmem:[#allocation2 + $0x78] sm:$0x1] %vm267, 0.0
      %274 = vst.msk [vmem:[#allocation2 + $0x90] sm:$0x1] %vm267, 0.0
      %275 = vst.msk [vmem:[#allocation2 + $0xa8] sm:$0x1] %vm267, 0.0
      %276 = vst.msk [vmem:[#allocation2 + $0xc0] sm:$0x1] %vm267, 0.0
      %277 = vst.msk [vmem:[#allocation2 + $0xd8] sm:$0x1] %vm267, 0.0
      %278 = vst.msk [vmem:[#allocation2 + $0xf0] sm:$0x1] %vm267, 0.0
      %279 = vst.msk [vmem:[#allocation2 + $0x108] sm:$0x1] %vm267, 0.0
      %280 = vst.msk [vmem:[#allocation2 + $0x120] sm:$0x1] %vm267, 0.0
      %281 = vst.msk [vmem:[#allocation2 + $0x138] sm:$0x1] %vm267, 0.0
      %282 = vst.msk [vmem:[#allocation2 + $0x150] sm:$0x1] %vm267, 0.0
      %283 = vst.msk [vmem:[#allocation2 + $0x168] sm:$0x1] %vm267, 0.0
      %284 = vst.msk [vmem:[#allocation2 + $0x180] sm:$0x1] %vm267, 0.0
      %285 = vst.msk [vmem:[#allocation2 + $0x198] sm:$0x1] %vm267, 0.0
      %286 = vst.msk [vmem:[#allocation2 + $0x11] sm:$0x1] %vm267, 0.0
      %287 = vst.msk [vmem:[#allocation2 + $0x29] sm:$0x1] %vm267, 0.0
      %288 = vst.msk [vmem:[#allocation2 + $0x41] sm:$0x1] %vm267, 0.0
      %289 = vst.msk [vmem:[#allocation2 + $0x59] sm:$0x1] %vm267, 0.0
      %290 = vst.msk [vmem:[#allocation2 + $0x71] sm:$0x1] %vm267, 0.0
      %291 = vst.msk [vmem:[#allocation2 + $0x89] sm:$0x1] %vm267, 0.0
      %292 = vst.msk [vmem:[#allocation2 + $0xa1] sm:$0x1] %vm267, 0.0
      %293 = vst.msk [vmem:[#allocation2 + $0xb9] sm:$0x1] %vm267, 0.0
      %294 = vst.msk [vmem:[#allocation2 + $0xd1] sm:$0x1] %vm267, 0.0
      %295 = vst.msk [vmem:[#allocation2 + $0xe9] sm:$0x1] %vm267, 0.0
      %296 = vst.msk [vmem:[#allocation2 + $0x101] sm:$0x1] %vm267, 0.0
      %297 = vst.msk [vmem:[#allocation2 + $0x119] sm:$0x1] %vm267, 0.0
      %298 = vst.msk [vmem:[#allocation2 + $0x131] sm:$0x1] %vm267, 0.0
      %299 = vst.msk [vmem:[#allocation2 + $0x149] sm:$0x1] %vm267, 0.0
      %300 = vst.msk [vmem:[#allocation2 + $0x161] sm:$0x1] %vm267, 0.0
      %301 = vst.msk [vmem:[#allocation2 + $0x179] sm:$0x1] %vm267, 0.0
      %302 = vst.msk [vmem:[#allocation2 + $0x191] sm:$0x1] %vm267, 0.0
      %303 = vst.msk [vmem:[#allocation2 + $0x1a9] sm:$0x1] %vm267, 0.0
      %s304 = scalar_lea.vmem [#allocation2], 24
      %305 = vst.msk [vmem:[%s304 + $0x1] sm:$0xff] %vm258, %v226
      %306 = vst.msk [vmem:[%s304 + $0x9] sm:$0xff] %vm258, %v227
      %307 = vst.msk [vmem:[%s304 + $0x19] sm:$0xff] %vm258, %v228
      %308 = vst.msk [vmem:[%s304 + $0x21] sm:$0xff] %vm258, %v229
      %309 = vst.msk [vmem:[%s304 + $0x31] sm:$0xff] %vm258, %v230
      %310 = vst.msk [vmem:[%s304 + $0x39] sm:$0xff] %vm258, %v231
      %311 = vst.msk [vmem:[%s304 + $0x49] sm:$0xff] %vm258, %v232
      %312 = vst.msk [vmem:[%s304 + $0x51] sm:$0xff] %vm258, %v233
      %313 = vst.msk [vmem:[%s304 + $0x61] sm:$0xff] %vm258, %v234
      %314 = vst.msk [vmem:[%s304 + $0x69] sm:$0xff] %vm258, %v235
      %315 = vst.msk [vmem:[%s304 + $0x79] sm:$0xff] %vm258, %v236
      %316 = vst.msk [vmem:[%s304 + $0x81] sm:$0xff] %vm258, %v237
      %317 = vst.msk [vmem:[%s304 + $0x91] sm:$0xff] %vm258, %v238
      %318 = vst.msk [vmem:[%s304 + $0x99] sm:$0xff] %vm258, %v239
      %319 = vst.msk [vmem:[%s304 + $0xa9] sm:$0xff] %vm258, %v240
      %320 = vst.msk [vmem:[%s304 + $0xb1] sm:$0xff] %vm258, %v241
      %321 = vst.msk [vmem:[%s304 + $0xc1] sm:$0xff] %vm258, %v242
      %322 = vst.msk [vmem:[%s304 + $0xc9] sm:$0xff] %vm258, %v243
      %323 = vst.msk [vmem:[%s304 + $0xd9] sm:$0xff] %vm258, %v244
      %324 = vst.msk [vmem:[%s304 + $0xe1] sm:$0xff] %vm258, %v245
      %325 = vst.msk [vmem:[%s304 + $0xf1] sm:$0xff] %vm258, %v246
      %326 = vst.msk [vmem:[%s304 + $0xf9] sm:$0xff] %vm258, %v247
      %327 = vst.msk [vmem:[%s304 + $0x109] sm:$0xff] %vm258, %v248
      %328 = vst.msk [vmem:[%s304 + $0x111] sm:$0xff] %vm258, %v249
      %329 = vst.msk [vmem:[%s304 + $0x121] sm:$0xff] %vm258, %v250
      %330 = vst.msk [vmem:[%s304 + $0x129] sm:$0xff] %vm258, %v251
      %331 = vst.msk [vmem:[%s304 + $0x139] sm:$0xff] %vm258, %v252
      %332 = vst.msk [vmem:[%s304 + $0x141] sm:$0xff] %vm258, %v253
      %333 = vst.msk [vmem:[%s304 + $0x151] sm:$0xff] %vm258, %v254
      %334 = vst.msk [vmem:[%s304 + $0x159] sm:$0xff] %vm258, %v255
      %335 = vst.msk [vmem:[%s304 + $0x169] sm:$0xff] %vm258, %v256
      %336 = vst.msk [vmem:[%s304 + $0x171] sm:$0xff] %vm258, %v257
      %v337 = vld [vmem:[#allocation2] sm:$0xff]
      %v338 = vld [vmem:[#allocation2 + $0x8] sm:$0xff]
      %v339 = vld [vmem:[#allocation2 + $0x18] sm:$0xff]
      %v340 = vld [vmem:[#allocation2 + $0x20] sm:$0xff]
      %v341 = vld [vmem:[#allocation2 + $0x30] sm:$0xff]
      %v342 = vld [vmem:[#allocation2 + $0x38] sm:$0xff]
      %v343 = vld [vmem:[#allocation2 + $0x48] sm:$0xff]
      %v344 = vld [vmem:[#allocation2 + $0x50] sm:$0xff]
      %v345 = vld [vmem:[#allocation2 + $0x60] sm:$0xff]
      %v346 = vld [vmem:[#allocation2 + $0x68] sm:$0xff]
      %v347 = vld [vmem:[#allocation2 + $0x78] sm:$0xff]
      %v348 = vld [vmem:[#allocation2 + $0x80] sm:$0xff]
      %v349 = vld [vmem:[#allocation2 + $0x90] sm:$0xff]
      %v350 = vld [vmem:[#allocation2 + $0x98] sm:$0xff]
      %v351 = vld [vmem:[#allocation2 + $0xa8] sm:$0xff]
      %v352 = vld [vmem:[#allocation2 + $0xb0] sm:$0xff]
      %v353 = vld [vmem:[#allocation2 + $0xc0] sm:$0xff]
      %v354 = vld [vmem:[#allocation2 + $0xc8] sm:$0xff]
      %v355 = vld [vmem:[#allocation2 + $0xd8] sm:$0xff]
      %v356 = vld [vmem:[#allocation2 + $0xe0] sm:$0xff]
      %v357 = vld [vmem:[#allocation2 + $0xf0] sm:$0xff]
      %v358 = vld [vmem:[#allocation2 + $0xf8] sm:$0xff]
      %v359 = vld [vmem:[#allocation2 + $0x108] sm:$0xff]
      %v360 = vld [vmem:[#allocation2 + $0x110] sm:$0xff]
      %v361 = vld [vmem:[#allocation2 + $0x120] sm:$0xff]
      %v362 = vld [vmem:[#allocation2 + $0x128] sm:$0xff]
      %v363 = vld [vmem:[#allocation2 + $0x138] sm:$0xff]
      %v364 = vld [vmem:[#allocation2 + $0x140] sm:$0xff]
      %v365 = vld [vmem:[#allocation2 + $0x150] sm:$0xff]
      %v366 = vld [vmem:[#allocation2 + $0x158] sm:$0xff]
      %v367 = vld [vmem:[#allocation2 + $0x168] sm:$0xff]
      %v368 = vld [vmem:[#allocation2 + $0x170] sm:$0xff]
      %v369 = vld [vmem:[#allocation2 + $0x180] sm:$0xff]
      %v370 = vld [vmem:[#allocation2 + $0x188] sm:$0xff]
      %v371 = vld [vmem:[#allocation2 + $0x198] sm:$0xff]
      %v372 = vld [vmem:[#allocation2 + $0x1a0] sm:$0xff]
      %v373 = vpack.c.bf16 %v338, %v337
      %v374 = vpack.c.bf16 %v340, %v339
      %v375 = vpack.c.bf16 %v342, %v341
      %v376 = vpack.c.bf16 %v344, %v343
      %v377 = vpack.c.bf16 %v346, %v345
      %v378 = vpack.c.bf16 %v348, %v347
      %v379 = vpack.c.bf16 %v350, %v349
      %v380 = vpack.c.bf16 %v352, %v351
      %v381 = vpack.c.bf16 %v354, %v353
      %v382 = vpack.c.bf16 %v356, %v355
      %v383 = vpack.c.bf16 %v358, %v357
      %v384 = vpack.c.bf16 %v360, %v359
      %v385 = vpack.c.bf16 %v362, %v361
      %v386 = vpack.c.bf16 %v364, %v363
      %v387 = vpack.c.bf16 %v366, %v365
      %v388 = vpack.c.bf16 %v368, %v367
      %v389 = vpack.c.bf16 %v370, %v369
      %v390 = vpack.c.bf16 %v372, %v371
      %391 = vst.msk [vmem:[#allocation4] sm:$0xff] %vm258, %v373
      %392 = vst.msk [vmem:[#allocation4 + $0x8] sm:$0xff] %vm258, %v374
      %393 = vst.msk [vmem:[#allocation4 + $0x10] sm:$0xff] %vm258, %v375
      %394 = vst.msk [vmem:[#allocation4 + $0x18] sm:$0xff] %vm258, %v376
      %395 = vst.msk [vmem:[#allocation4 + $0x20] sm:$0xff] %vm258, %v377
      %396 = vst.msk [vmem:[#allocation4 + $0x28] sm:$0xff] %vm258, %v378
      %397 = vst.msk [vmem:[#allocation4 + $0x30] sm:$0xff] %vm258, %v379
      %398 = vst.msk [vmem:[#allocation4 + $0x38] sm:$0xff] %vm258, %v380
      %399 = vst.msk [vmem:[#allocation4 + $0x40] sm:$0xff] %vm258, %v381
      %400 = vst.msk [vmem:[#allocation4 + $0x48] sm:$0xff] %vm258, %v382
      %401 = vst.msk [vmem:[#allocation4 + $0x50] sm:$0xff] %vm258, %v383
      %402 = vst.msk [vmem:[#allocation4 + $0x58] sm:$0xff] %vm258, %v384
      %403 = vst.msk [vmem:[#allocation4 + $0x60] sm:$0xff] %vm258, %v385
      %404 = vst.msk [vmem:[#allocation4 + $0x68] sm:$0xff] %vm258, %v386
      %405 = vst.msk [vmem:[#allocation4 + $0x70] sm:$0xff] %vm258, %v387
      %406 = vst.msk [vmem:[#allocation4 + $0x78] sm:$0xff] %vm258, %v388
      %423 = vrot.lane.b32.xlu0 %v374, 12
      %v424 = vpop.permute.xlu0 %423
      %425 = vrot.lane.b32.xlu0 %v375, 12
      %v426 = vpop.permute.xlu0 %425
      %427 = vrot.lane.b32.xlu0 %v376, 12
      %v428 = vpop.permute.xlu0 %427
      %429 = vrot.lane.b32.xlu0 %v377, 12
      %v430 = vpop.permute.xlu0 %429
      %431 = vrot.lane.b32.xlu0 %v378, 12
      %v432 = vpop.permute.xlu0 %431
      %433 = vrot.lane.b32.xlu0 %v379, 12
      %v434 = vpop.permute.xlu0 %433
      %435 = vrot.lane.b32.xlu0 %v380, 12
      %v436 = vpop.permute.xlu0 %435
      %437 = vrot.lane.b32.xlu0 %v381, 12
      %v438 = vpop.permute.xlu0 %437
      %439 = vrot.lane.b32.xlu0 %v382, 12
      %v440 = vpop.permute.xlu0 %439
      %441 = vrot.lane.b32.xlu0 %v383, 12
      %v442 = vpop.permute.xlu0 %441
      %443 = vrot.lane.b32.xlu0 %v384, 12
      %v444 = vpop.permute.xlu0 %443
      %445 = vrot.lane.b32.xlu0 %v385, 12
      %v446 = vpop.permute.xlu0 %445
      %447 = vrot.lane.b32.xlu0 %v386, 12
      %v448 = vpop.permute.xlu0 %447
      %449 = vrot.lane.b32.xlu0 %v387, 12
      %v450 = vpop.permute.xlu0 %449
      %451 = vrot.lane.b32.xlu0 %v388, 12
      %v452 = vpop.permute.xlu0 %451
      %453 = vrot.lane.b32.xlu0 %v389, 12
      %v454 = vpop.permute.xlu0 %453
      %vm471 = vcmask 130144
      %472 = vst.msk [vmem:[#allocation4] sm:$0xff] %vm471, %v424
      %473 = vst.msk [vmem:[#allocation4 + $0x8] sm:$0xff] %vm471, %v426
      %474 = vst.msk [vmem:[#allocation4 + $0x10] sm:$0xff] %vm471, %v428
      %475 = vst.msk [vmem:[#allocation4 + $0x18] sm:$0xff] %vm471, %v430
      %476 = vst.msk [vmem:[#allocation4 + $0x20] sm:$0xff] %vm471, %v432
      %477 = vst.msk [vmem:[#allocation4 + $0x28] sm:$0xff] %vm471, %v434
      %478 = vst.msk [vmem:[#allocation4 + $0x30] sm:$0xff] %vm471, %v436
      %479 = vst.msk [vmem:[#allocation4 + $0x38] sm:$0xff] %vm471, %v438
      %480 = vst.msk [vmem:[#allocation4 + $0x40] sm:$0xff] %vm471, %v440
      %481 = vst.msk [vmem:[#allocation4 + $0x48] sm:$0xff] %vm471, %v442
      %482 = vst.msk [vmem:[#allocation4 + $0x50] sm:$0xff] %vm471, %v444
      %483 = vst.msk [vmem:[#allocation4 + $0x58] sm:$0xff] %vm471, %v446
      %484 = vst.msk [vmem:[#allocation4 + $0x60] sm:$0xff] %vm471, %v448
      %485 = vst.msk [vmem:[#allocation4 + $0x68] sm:$0xff] %vm471, %v450
      %486 = vst.msk [vmem:[#allocation4 + $0x70] sm:$0xff] %vm471, %v452
      %487 = vst.msk [vmem:[#allocation4 + $0x78] sm:$0xff] %vm471, %v454
      %489 = vrot.lane.b32.xlu0 %v375, 24
      %v490 = vpop.permute.xlu0 %489
      %491 = vrot.lane.b32.xlu0 %v376, 24
      %v492 = vpop.permute.xlu0 %491
      %493 = vrot.lane.b32.xlu0 %v377, 24
      %v494 = vpop.permute.xlu0 %493
      %495 = vrot.lane.b32.xlu0 %v378, 24
      %v496 = vpop.permute.xlu0 %495
      %497 = vrot.lane.b32.xlu0 %v379, 24
      %v498 = vpop.permute.xlu0 %497
      %499 = vrot.lane.b32.xlu0 %v380, 24
      %v500 = vpop.permute.xlu0 %499
      %501 = vrot.lane.b32.xlu0 %v381, 24
      %v502 = vpop.permute.xlu0 %501
      %503 = vrot.lane.b32.xlu0 %v382, 24
      %v504 = vpop.permute.xlu0 %503
      %505 = vrot.lane.b32.xlu0 %v383, 24
      %v506 = vpop.permute.xlu0 %505
      %507 = vrot.lane.b32.xlu0 %v384, 24
      %v508 = vpop.permute.xlu0 %507
      %509 = vrot.lane.b32.xlu0 %v385, 24
      %v510 = vpop.permute.xlu0 %509
      %511 = vrot.lane.b32.xlu0 %v386, 24
      %v512 = vpop.permute.xlu0 %511
      %513 = vrot.lane.b32.xlu0 %v387, 24
      %v514 = vpop.permute.xlu0 %513
      %515 = vrot.lane.b32.xlu0 %v388, 24
      %v516 = vpop.permute.xlu0 %515
      %517 = vrot.lane.b32.xlu0 %v389, 24
      %v518 = vpop.permute.xlu0 %517
      %519 = vrot.lane.b32.xlu0 %v390, 24
      %v520 = vpop.permute.xlu0 %519
      %vm537 = vcmask 228544
      %538 = vst.msk [vmem:[#allocation4] sm:$0xff] %vm537, %v490
      %539 = vst.msk [vmem:[#allocation4 + $0x8] sm:$0xff] %vm537, %v492
      %540 = vst.msk [vmem:[#allocation4 + $0x10] sm:$0xff] %vm537, %v494
      %541 = vst.msk [vmem:[#allocation4 + $0x18] sm:$0xff] %vm537, %v496
      %542 = vst.msk [vmem:[#allocation4 + $0x20] sm:$0xff] %vm537, %v498
      %543 = vst.msk [vmem:[#allocation4 + $0x28] sm:$0xff] %vm537, %v500
      %544 = vst.msk [vmem:[#allocation4 + $0x30] sm:$0xff] %vm537, %v502
      %545 = vst.msk [vmem:[#allocation4 + $0x38] sm:$0xff] %vm537, %v504
      %546 = vst.msk [vmem:[#allocation4 + $0x40] sm:$0xff] %vm537, %v506
      %547 = vst.msk [vmem:[#allocation4 + $0x48] sm:$0xff] %vm537, %v508
      %548 = vst.msk [vmem:[#allocation4 + $0x50] sm:$0xff] %vm537, %v510
      %549 = vst.msk [vmem:[#allocation4 + $0x58] sm:$0xff] %vm537, %v512
      %550 = vst.msk [vmem:[#allocation4 + $0x60] sm:$0xff] %vm537, %v514
      %551 = vst.msk [vmem:[#allocation4 + $0x68] sm:$0xff] %vm537, %v516
      %552 = vst.msk [vmem:[#allocation4 + $0x70] sm:$0xff] %vm537, %v518
      %553 = vst.msk [vmem:[#allocation4 + $0x78] sm:$0xff] %vm537, %v520
      %v554 = vld [vmem:[#allocation2 + $0x1] sm:$0xff]
      %v555 = vld [vmem:[#allocation2 + $0x9] sm:$0xff]
      %v556 = vld [vmem:[#allocation2 + $0x19] sm:$0xff]
      %v557 = vld [vmem:[#allocation2 + $0x21] sm:$0xff]
      %v558 = vld [vmem:[#allocation2 + $0x31] sm:$0xff]
      %v559 = vld [vmem:[#allocation2 + $0x39] sm:$0xff]
      %v560 = vld [vmem:[#allocation2 + $0x49] sm:$0xff]
      %v561 = vld [vmem:[#allocation2 + $0x51] sm:$0xff]
      %v562 = vld [vmem:[#allocation2 + $0x61] sm:$0xff]
      %v563 = vld [vmem:[#allocation2 + $0x69] sm:$0xff]
      %v564 = vld [vmem:[#allocation2 + $0x79] sm:$0xff]
      %v565 = vld [vmem:[#allocation2 + $0x81] sm:$0xff]
      %v566 = vld [vmem:[#allocation2 + $0x91] sm:$0xff]
      %v567 = vld [vmem:[#allocation2 + $0x99] sm:$0xff]
      %v568 = vld [vmem:[#allocation2 + $0xa9] sm:$0xff]
      %v569 = vld [vmem:[#allocation2 + $0xb1] sm:$0xff]
      %v570 = vld [vmem:[#allocation2 + $0xc1] sm:$0xff]
      %v571 = vld [vmem:[#allocation2 + $0xc9] sm:$0xff]
      %v572 = vld [vmem:[#allocation2 + $0xd9] sm:$0xff]
      %v573 = vld [vmem:[#allocation2 + $0xe1] sm:$0xff]
      %v574 = vld [vmem:[#allocation2 + $0xf1] sm:$0xff]
      %v575 = vld [vmem:[#allocation2 + $0xf9] sm:$0xff]
      %v576 = vld [vmem:[#allocation2 + $0x109] sm:$0xff]
      %v577 = vld [vmem:[#allocation2 + $0x111] sm:$0xff]
      %v578 = vld [vmem:[#allocation2 + $0x121] sm:$0xff]
      %v579 = vld [vmem:[#allocation2 + $0x129] sm:$0xff]
      %v580 = vld [vmem:[#allocation2 + $0x139] sm:$0xff]
      %v581 = vld [vmem:[#allocation2 + $0x141] sm:$0xff]
      %v582 = vld [vmem:[#allocation2 + $0x151] sm:$0xff]
      %v583 = vld [vmem:[#allocation2 + $0x159] sm:$0xff]
      %v584 = vld [vmem:[#allocation2 + $0x169] sm:$0xff]
      %v585 = vld [vmem:[#allocation2 + $0x171] sm:$0xff]
      %v586 = vld [vmem:[#allocation2 + $0x181] sm:$0xff]
      %v587 = vld [vmem:[#allocation2 + $0x189] sm:$0xff]
      %v588 = vld [vmem:[#allocation2 + $0x199] sm:$0xff]
      %v589 = vld [vmem:[#allocation2 + $0x1a1] sm:$0xff]
      %v590 = vpack.c.bf16 %v555, %v554
      %v591 = vpack.c.bf16 %v557, %v556
      %v592 = vpack.c.bf16 %v559, %v558
      %v593 = vpack.c.bf16 %v561, %v560
      %v594 = vpack.c.bf16 %v563, %v562
      %v595 = vpack.c.bf16 %v565, %v564
      %v596 = vpack.c.bf16 %v567, %v566
      %v597 = vpack.c.bf16 %v569, %v568
      %v598 = vpack.c.bf16 %v571, %v570
      %v599 = vpack.c.bf16 %v573, %v572
      %v600 = vpack.c.bf16 %v575, %v574
      %v601 = vpack.c.bf16 %v577, %v576
      %v602 = vpack.c.bf16 %v579, %v578
      %v603 = vpack.c.bf16 %v581, %v580
      %v604 = vpack.c.bf16 %v583, %v582
      %v605 = vpack.c.bf16 %v585, %v584
      %v606 = vpack.c.bf16 %v587, %v586
      %v607 = vpack.c.bf16 %v589, %v588
      %624 = vrot.lane.b32.xlu0 %v590, 4
      %v625 = vpop.permute.xlu0 %624
      %626 = vrot.lane.b32.xlu0 %v591, 4
      %v627 = vpop.permute.xlu0 %626
      %628 = vrot.lane.b32.xlu0 %v592, 4
      %v629 = vpop.permute.xlu0 %628
      %630 = vrot.lane.b32.xlu0 %v593, 4
      %v631 = vpop.permute.xlu0 %630
      %632 = vrot.lane.b32.xlu0 %v594, 4
      %v633 = vpop.permute.xlu0 %632
      %634 = vrot.lane.b32.xlu0 %v595, 4
      %v635 = vpop.permute.xlu0 %634
      %636 = vrot.lane.b32.xlu0 %v596, 4
      %v637 = vpop.permute.xlu0 %636
      %638 = vrot.lane.b32.xlu0 %v597, 4
      %v639 = vpop.permute.xlu0 %638
      %640 = vrot.lane.b32.xlu0 %v598, 4
      %v641 = vpop.permute.xlu0 %640
      %642 = vrot.lane.b32.xlu0 %v599, 4
      %v643 = vpop.permute.xlu0 %642
      %644 = vrot.lane.b32.xlu0 %v600, 4
      %v645 = vpop.permute.xlu0 %644
      %646 = vrot.lane.b32.xlu0 %v601, 4
      %v647 = vpop.permute.xlu0 %646
      %648 = vrot.lane.b32.xlu0 %v602, 4
      %v649 = vpop.permute.xlu0 %648
      %650 = vrot.lane.b32.xlu0 %v603, 4
      %v651 = vpop.permute.xlu0 %650
      %652 = vrot.lane.b32.xlu0 %v604, 4
      %v653 = vpop.permute.xlu0 %652
      %654 = vrot.lane.b32.xlu0 %v605, 4
      %v655 = vpop.permute.xlu0 %654
      %vm672 = vcmask 64544
      %673 = vst.msk [vmem:[#allocation4] sm:$0xff] %vm672, %v625
      %674 = vst.msk [vmem:[#allocation4 + $0x8] sm:$0xff] %vm672, %v627
      %675 = vst.msk [vmem:[#allocation4 + $0x10] sm:$0xff] %vm672, %v629
      %676 = vst.msk [vmem:[#allocation4 + $0x18] sm:$0xff] %vm672, %v631
      %677 = vst.msk [vmem:[#allocation4 + $0x20] sm:$0xff] %vm672, %v633
      %678 = vst.msk [vmem:[#allocation4 + $0x28] sm:$0xff] %vm672, %v635
      %679 = vst.msk [vmem:[#allocation4 + $0x30] sm:$0xff] %vm672, %v637
      %680 = vst.msk [vmem:[#allocation4 + $0x38] sm:$0xff] %vm672, %v639
      %681 = vst.msk [vmem:[#allocation4 + $0x40] sm:$0xff] %vm672, %v641
      %682 = vst.msk [vmem:[#allocation4 + $0x48] sm:$0xff] %vm672, %v643
      %683 = vst.msk [vmem:[#allocation4 + $0x50] sm:$0xff] %vm672, %v645
      %684 = vst.msk [vmem:[#allocation4 + $0x58] sm:$0xff] %vm672, %v647
      %685 = vst.msk [vmem:[#allocation4 + $0x60] sm:$0xff] %vm672, %v649
      %686 = vst.msk [vmem:[#allocation4 + $0x68] sm:$0xff] %vm672, %v651
      %687 = vst.msk [vmem:[#allocation4 + $0x70] sm:$0xff] %vm672, %v653
      %688 = vst.msk [vmem:[#allocation4 + $0x78] sm:$0xff] %vm672, %v655
      %690 = vrot.lane.b32.xlu0 %v591, 16
      %v691 = vpop.permute.xlu0 %690
      %692 = vrot.lane.b32.xlu0 %v592, 16
      %v693 = vpop.permute.xlu0 %692
      %694 = vrot.lane.b32.xlu0 %v593, 16
      %v695 = vpop.permute.xlu0 %694
      %696 = vrot.lane.b32.xlu0 %v594, 16
      %v697 = vpop.permute.xlu0 %696
      %698 = vrot.lane.b32.xlu0 %v595, 16
      %v699 = vpop.permute.xlu0 %698
      %700 = vrot.lane.b32.xlu0 %v596, 16
      %v701 = vpop.permute.xlu0 %700
      %702 = vrot.lane.b32.xlu0 %v597, 16
      %v703 = vpop.permute.xlu0 %702
      %704 = vrot.lane.b32.xlu0 %v598, 16
      %v705 = vpop.permute.xlu0 %704
      %706 = vrot.lane.b32.xlu0 %v599, 16
      %v707 = vpop.permute.xlu0 %706
      %708 = vrot.lane.b32.xlu0 %v600, 16
      %v709 = vpop.permute.xlu0 %708
      %710 = vrot.lane.b32.xlu0 %v601, 16
      %v711 = vpop.permute.xlu0 %710
      %712 = vrot.lane.b32.xlu0 %v602, 16
      %v713 = vpop.permute.xlu0 %712
      %714 = vrot.lane.b32.xlu0 %v603, 16
      %v715 = vpop.permute.xlu0 %714
      %716 = vrot.lane.b32.xlu0 %v604, 16
      %v717 = vpop.permute.xlu0 %716
      %718 = vrot.lane.b32.xlu0 %v605, 16
      %v719 = vpop.permute.xlu0 %718
      %720 = vrot.lane.b32.xlu0 %v606, 16
      %v721 = vpop.permute.xlu0 %720
      %vm738 = vcmask 162944
      %739 = vst.msk [vmem:[#allocation4] sm:$0xff] %vm738, %v691
      %740 = vst.msk [vmem:[#allocation4 + $0x8] sm:$0xff] %vm738, %v693
      %741 = vst.msk [vmem:[#allocation4 + $0x10] sm:$0xff] %vm738, %v695
      %742 = vst.msk [vmem:[#allocation4 + $0x18] sm:$0xff] %vm738, %v697
      %743 = vst.msk [vmem:[#allocation4 + $0x20] sm:$0xff] %vm738, %v699
      %744 = vst.msk [vmem:[#allocation4 + $0x28] sm:$0xff] %vm738, %v701
      %745 = vst.msk [vmem:[#allocation4 + $0x30] sm:$0xff] %vm738, %v703
      %746 = vst.msk [vmem:[#allocation4 + $0x38] sm:$0xff] %vm738, %v705
      %747 = vst.msk [vmem:[#allocation4 + $0x40] sm:$0xff] %vm738, %v707
      %748 = vst.msk [vmem:[#allocation4 + $0x48] sm:$0xff] %vm738, %v709
      %749 = vst.msk [vmem:[#allocation4 + $0x50] sm:$0xff] %vm738, %v711
      %750 = vst.msk [vmem:[#allocation4 + $0x58] sm:$0xff] %vm738, %v713
      %751 = vst.msk [vmem:[#allocation4 + $0x60] sm:$0xff] %vm738, %v715
      %752 = vst.msk [vmem:[#allocation4 + $0x68] sm:$0xff] %vm738, %v717
      %753 = vst.msk [vmem:[#allocation4 + $0x70] sm:$0xff] %vm738, %v719
      %754 = vst.msk [vmem:[#allocation4 + $0x78] sm:$0xff] %vm738, %v721
      %756 = vrot.lane.b32.xlu0 %v592, 28
      %v757 = vpop.permute.xlu0 %756
      %758 = vrot.lane.b32.xlu0 %v593, 28
      %v759 = vpop.permute.xlu0 %758
      %760 = vrot.lane.b32.xlu0 %v594, 28
      %v761 = vpop.permute.xlu0 %760
      %762 = vrot.lane.b32.xlu0 %v595, 28
      %v763 = vpop.permute.xlu0 %762
      %764 = vrot.lane.b32.xlu0 %v596, 28
      %v765 = vpop.permute.xlu0 %764
      %766 = vrot.lane.b32.xlu0 %v597, 28
      %v767 = vpop.permute.xlu0 %766
      %768 = vrot.lane.b32.xlu0 %v598, 28
      %v769 = vpop.permute.xlu0 %768
      %770 = vrot.lane.b32.xlu0 %v599, 28
      %v771 = vpop.permute.xlu0 %770
      %772 = vrot.lane.b32.xlu0 %v600, 28
      %v773 = vpop.permute.xlu0 %772
      %774 = vrot.lane.b32.xlu0 %v601, 28
      %v775 = vpop.permute.xlu0 %774
      %776 = vrot.lane.b32.xlu0 %v602, 28
      %v777 = vpop.permute.xlu0 %776
      %778 = vrot.lane.b32.xlu0 %v603, 28
      %v779 = vpop.permute.xlu0 %778
      %780 = vrot.lane.b32.xlu0 %v604, 28
      %v781 = vpop.permute.xlu0 %780
      %782 = vrot.lane.b32.xlu0 %v605, 28
      %v783 = vpop.permute.xlu0 %782
      %784 = vrot.lane.b32.xlu0 %v606, 28
      %v785 = vpop.permute.xlu0 %784
      %786 = vrot.lane.b32.xlu0 %v607, 28
      %v787 = vpop.permute.xlu0 %786
      %vm804 = vcmask 261344
      %805 = vst.msk [vmem:[#allocation4] sm:$0xff] %vm804, %v757
      %806 = vst.msk [vmem:[#allocation4 + $0x8] sm:$0xff] %vm804, %v759
      %807 = vst.msk [vmem:[#allocation4 + $0x10] sm:$0xff] %vm804, %v761
      %808 = vst.msk [vmem:[#allocation4 + $0x18] sm:$0xff] %vm804, %v763
      %809 = vst.msk [vmem:[#allocation4 + $0x20] sm:$0xff] %vm804, %v765
      %810 = vst.msk [vmem:[#allocation4 + $0x28] sm:$0xff] %vm804, %v767
      %811 = vst.msk [vmem:[#allocation4 + $0x30] sm:$0xff] %vm804, %v769
      %812 = vst.msk [vmem:[#allocation4 + $0x38] sm:$0xff] %vm804, %v771
      %813 = vst.msk [vmem:[#allocation4 + $0x40] sm:$0xff] %vm804, %v773
      %814 = vst.msk [vmem:[#allocation4 + $0x48] sm:$0xff] %vm804, %v775
      %815 = vst.msk [vmem:[#allocation4 + $0x50] sm:$0xff] %vm804, %v777
      %816 = vst.msk [vmem:[#allocation4 + $0x58] sm:$0xff] %vm804, %v779
      %817 = vst.msk [vmem:[#allocation4 + $0x60] sm:$0xff] %vm804, %v781
      %818 = vst.msk [vmem:[#allocation4 + $0x68] sm:$0xff] %vm804, %v783
      %819 = vst.msk [vmem:[#allocation4 + $0x70] sm:$0xff] %vm804, %v785
      %820 = vst.msk [vmem:[#allocation4 + $0x78] sm:$0xff] %vm804, %v787
      %v821 = vld [vmem:[#allocation2 + $0x2] sm:$0xff]
      %v822 = vld [vmem:[#allocation2 + $0xa] sm:$0xff]
      %v823 = vld [vmem:[#allocation2 + $0x1a] sm:$0xff]
      %v824 = vld [vmem:[#allocation2 + $0x22] sm:$0xff]
      %v825 = vld [vmem:[#allocation2 + $0x32] sm:$0xff]
      %v826 = vld [vmem:[#allocation2 + $0x3a] sm:$0xff]
      %v827 = vld [vmem:[#allocation2 + $0x4a] sm:$0xff]
      %v828 = vld [vmem:[#allocation2 + $0x52] sm:$0xff]
      %v829 = vld [vmem:[#allocation2 + $0x62] sm:$0xff]
      %v830 = vld [vmem:[#allocation2 + $0x6a] sm:$0xff]
      %v831 = vld [vmem:[#allocation2 + $0x7a] sm:$0xff]
      %v832 = vld [vmem:[#allocation2 + $0x82] sm:$0xff]
      %v833 = vld [vmem:[#allocation2 + $0x92] sm:$0xff]
      %v834 = vld [vmem:[#allocation2 + $0x9a] sm:$0xff]
      %v835 = vld [vmem:[#allocation2 + $0xaa] sm:$0xff]
      %v836 = vld [vmem:[#allocation2 + $0xb2] sm:$0xff]
      %v837 = vld [vmem:[#allocation2 + $0xc2] sm:$0xff]
      %v838 = vld [vmem:[#allocation2 + $0xca] sm:$0xff]
      %v839 = vld [vmem:[#allocation2 + $0xda] sm:$0xff]
      %v840 = vld [vmem:[#allocation2 + $0xe2] sm:$0xff]
      %v841 = vld [vmem:[#allocation2 + $0xf2] sm:$0xff]
      %v842 = vld [vmem:[#allocation2 + $0xfa] sm:$0xff]
      %v843 = vld [vmem:[#allocation2 + $0x10a] sm:$0xff]
      %v844 = vld [vmem:[#allocation2 + $0x112] sm:$0xff]
      %v845 = vld [vmem:[#allocation2 + $0x122] sm:$0xff]
      %v846 = vld [vmem:[#allocation2 + $0x12a] sm:$0xff]
      %v847 = vld [vmem:[#allocation2 + $0x13a] sm:$0xff]
      %v848 = vld [vmem:[#allocation2 + $0x142] sm:$0xff]
      %v849 = vld [vmem:[#allocation2 + $0x152] sm:$0xff]
      %v850 = vld [vmem:[#allocation2 + $0x15a] sm:$0xff]
      %v851 = vld [vmem:[#allocation2 + $0x16a] sm:$0xff]
      %v852 = vld [vmem:[#allocation2 + $0x172] sm:$0xff]
      %v853 = vld [vmem:[#allocation2 + $0x182] sm:$0xff]
      %v854 = vld [vmem:[#allocation2 + $0x18a] sm:$0xff]
      %v855 = vld [vmem:[#allocation2 + $0x19a] sm:$0xff]
      %v856 = vld [vmem:[#allocation2 + $0x1a2] sm:$0xff]
      %v857 = vpack.c.bf16 %v822, %v821
      %v858 = vpack.c.bf16 %v824, %v823
      %v859 = vpack.c.bf16 %v826, %v825
      %v860 = vpack.c.bf16 %v828, %v827
      %v861 = vpack.c.bf16 %v830, %v829
      %v862 = vpack.c.bf16 %v832, %v831
      %v863 = vpack.c.bf16 %v834, %v833
      %v864 = vpack.c.bf16 %v836, %v835
      %v865 = vpack.c.bf16 %v838, %v837
      %v866 = vpack.c.bf16 %v840, %v839
      %v867 = vpack.c.bf16 %v842, %v841
      %v868 = vpack.c.bf16 %v844, %v843
      %v869 = vpack.c.bf16 %v846, %v845
      %v870 = vpack.c.bf16 %v848, %v847
      %v871 = vpack.c.bf16 %v850, %v849
      %v872 = vpack.c.bf16 %v852, %v851
      %v873 = vpack.c.bf16 %v854, %v853
      %v874 = vpack.c.bf16 %v856, %v855
      %891 = vrot.lane.b32.xlu0 %v857, 8
      %v892 = vpop.permute.xlu0 %891
      %893 = vrot.lane.b32.xlu0 %v858, 8
      %v894 = vpop.permute.xlu0 %893
      %895 = vrot.lane.b32.xlu0 %v859, 8
      %v896 = vpop.permute.xlu0 %895
      %897 = vrot.lane.b32.xlu0 %v860, 8
      %v898 = vpop.permute.xlu0 %897
      %899 = vrot.lane.b32.xlu0 %v861, 8
      %v900 = vpop.permute.xlu0 %899
      %901 = vrot.lane.b32.xlu0 %v862, 8
      %v902 = vpop.permute.xlu0 %901
      %903 = vrot.lane.b32.xlu0 %v863, 8
      %v904 = vpop.permute.xlu0 %903
      %905 = vrot.lane.b32.xlu0 %v864, 8
      %v906 = vpop.permute.xlu0 %905
      %907 = vrot.lane.b32.xlu0 %v865, 8
      %v908 = vpop.permute.xlu0 %907
      %909 = vrot.lane.b32.xlu0 %v866, 8
      %v910 = vpop.permute.xlu0 %909
      %911 = vrot.lane.b32.xlu0 %v867, 8
      %v912 = vpop.permute.xlu0 %911
      %913 = vrot.lane.b32.xlu0 %v868, 8
      %v914 = vpop.permute.xlu0 %913
      %915 = vrot.lane.b32.xlu0 %v869, 8
      %v916 = vpop.permute.xlu0 %915
      %917 = vrot.lane.b32.xlu0 %v870, 8
      %v918 = vpop.permute.xlu0 %917
      %919 = vrot.lane.b32.xlu0 %v871, 8
      %v920 = vpop.permute.xlu0 %919
      %921 = vrot.lane.b32.xlu0 %v872, 8
      %v922 = vpop.permute.xlu0 %921
      %vm939 = vcmask 97344
      %940 = vst.msk [vmem:[#allocation4] sm:$0xff] %vm939, %v892
      %941 = vst.msk [vmem:[#allocation4 + $0x8] sm:$0xff] %vm939, %v894
      %942 = vst.msk [vmem:[#allocation4 + $0x10] sm:$0xff] %vm939, %v896
      %943 = vst.msk [vmem:[#allocation4 + $0x18] sm:$0xff] %vm939, %v898
      %944 = vst.msk [vmem:[#allocation4 + $0x20] sm:$0xff] %vm939, %v900
      %945 = vst.msk [vmem:[#allocation4 + $0x28] sm:$0xff] %vm939, %v902
      %946 = vst.msk [vmem:[#allocation4 + $0x30] sm:$0xff] %vm939, %v904
      %947 = vst.msk [vmem:[#allocation4 + $0x38] sm:$0xff] %vm939, %v906
      %948 = vst.msk [vmem:[#allocation4 + $0x40] sm:$0xff] %vm939, %v908
      %949 = vst.msk [vmem:[#allocation4 + $0x48] sm:$0xff] %vm939, %v910
      %950 = vst.msk [vmem:[#allocation4 + $0x50] sm:$0xff] %vm939, %v912
      %951 = vst.msk [vmem:[#allocation4 + $0x58] sm:$0xff] %vm939, %v914
      %952 = vst.msk [vmem:[#allocation4 + $0x60] sm:$0xff] %vm939, %v916
      %953 = vst.msk [vmem:[#allocation4 + $0x68] sm:$0xff] %vm939, %v918
      %954 = vst.msk [vmem:[#allocation4 + $0x70] sm:$0xff] %vm939, %v920
      %955 = vst.msk [vmem:[#allocation4 + $0x78] sm:$0xff] %vm939, %v922
      %957 = vrot.lane.b32.xlu0 %v858, 20
      %v958 = vpop.permute.xlu0 %957
      %959 = vrot.lane.b32.xlu0 %v859, 20
      %v960 = vpop.permute.xlu0 %959
      %961 = vrot.lane.b32.xlu0 %v860, 20
      %v962 = vpop.permute.xlu0 %961
      %963 = vrot.lane.b32.xlu0 %v861, 20
      %v964 = vpop.permute.xlu0 %963
      %965 = vrot.lane.b32.xlu0 %v862, 20
      %v966 = vpop.permute.xlu0 %965
      %967 = vrot.lane.b32.xlu0 %v863, 20
      %v968 = vpop.permute.xlu0 %967
      %969 = vrot.lane.b32.xlu0 %v864, 20
      %v970 = vpop.permute.xlu0 %969
      %971 = vrot.lane.b32.xlu0 %v865, 20
      %v972 = vpop.permute.xlu0 %971
      %973 = vrot.lane.b32.xlu0 %v866, 20
      %v974 = vpop.permute.xlu0 %973
      %975 = vrot.lane.b32.xlu0 %v867, 20
      %v976 = vpop.permute.xlu0 %975
      %977 = vrot.lane.b32.xlu0 %v868, 20
      %v978 = vpop.permute.xlu0 %977
      %979 = vrot.lane.b32.xlu0 %v869, 20
      %v980 = vpop.permute.xlu0 %979
      %981 = vrot.lane.b32.xlu0 %v870, 20
      %v982 = vpop.permute.xlu0 %981
      %983 = vrot.lane.b32.xlu0 %v871, 20
      %v984 = vpop.permute.xlu0 %983
      %985 = vrot.lane.b32.xlu0 %v872, 20
      %v986 = vpop.permute.xlu0 %985
      %987 = vrot.lane.b32.xlu0 %v873, 20
      %v988 = vpop.permute.xlu0 %987
      %vm1005 = vcmask 195744
      %1006 = vst.msk [vmem:[#allocation4] sm:$0xff] %vm1005, %v958
      %1007 = vst.msk [vmem:[#allocation4 + $0x8] sm:$0xff] %vm1005, %v960
      %1008 = vst.msk [vmem:[#allocation4 + $0x10] sm:$0xff] %vm1005, %v962
      %1009 = vst.msk [vmem:[#allocation4 + $0x18] sm:$0xff] %vm1005, %v964
      %1010 = vst.msk [vmem:[#allocation4 + $0x20] sm:$0xff] %vm1005, %v966
      %1011 = vst.msk [vmem:[#allocation4 + $0x28] sm:$0xff] %vm1005, %v968
      %1012 = vst.msk [vmem:[#allocation4 + $0x30] sm:$0xff] %vm1005, %v970
      %1013 = vst.msk [vmem:[#allocation4 + $0x38] sm:$0xff] %vm1005, %v972
      %1014 = vst.msk [vmem:[#allocation4 + $0x40] sm:$0xff] %vm1005, %v974
      %1015 = vst.msk [vmem:[#allocation4 + $0x48] sm:$0xff] %vm1005, %v976
      %1016 = vst.msk [vmem:[#allocation4 + $0x50] sm:$0xff] %vm1005, %v978
      %1017 = vst.msk [vmem:[#allocation4 + $0x58] sm:$0xff] %vm1005, %v980
      %1018 = vst.msk [vmem:[#allocation4 + $0x60] sm:$0xff] %vm1005, %v982
      %1019 = vst.msk [vmem:[#allocation4 + $0x68] sm:$0xff] %vm1005, %v984
      %1020 = vst.msk [vmem:[#allocation4 + $0x70] sm:$0xff] %vm1005, %v986
      %1021 = vst.msk [vmem:[#allocation4 + $0x78] sm:$0xff] %vm1005, %v988
      %1023 = vrot.lane.b32.xlu0 %v859, 32
      %v1024 = vpop.permute.xlu0 %1023
      %1025 = vrot.lane.b32.xlu0 %v860, 32
      %v1026 = vpop.permute.xlu0 %1025
      %1027 = vrot.lane.b32.xlu0 %v861, 32
      %v1028 = vpop.permute.xlu0 %1027
      %1029 = vrot.lane.b32.xlu0 %v862, 32
      %v1030 = vpop.permute.xlu0 %1029
      %1031 = vrot.lane.b32.xlu0 %v863, 32
      %v1032 = vpop.permute.xlu0 %1031
      %1033 = vrot.lane.b32.xlu0 %v864, 32
      %v1034 = vpop.permute.xlu0 %1033
      %1035 = vrot.lane.b32.xlu0 %v865, 32
      %v1036 = vpop.permute.xlu0 %1035
      %1037 = vrot.lane.b32.xlu0 %v866, 32
      %v1038 = vpop.permute.xlu0 %1037
      %1039 = vrot.lane.b32.xlu0 %v867, 32
      %v1040 = vpop.permute.xlu0 %1039
      %1041 = vrot.lane.b32.xlu0 %v868, 32
      %v1042 = vpop.permute.xlu0 %1041
      %1043 = vrot.lane.b32.xlu0 %v869, 32
      %v1044 = vpop.permute.xlu0 %1043
      %1045 = vrot.lane.b32.xlu0 %v870, 32
      %v1046 = vpop.permute.xlu0 %1045
      %1047 = vrot.lane.b32.xlu0 %v871, 32
      %v1048 = vpop.permute.xlu0 %1047
      %1049 = vrot.lane.b32.xlu0 %v872, 32
      %v1050 = vpop.permute.xlu0 %1049
      %1051 = vrot.lane.b32.xlu0 %v873, 32
      %v1052 = vpop.permute.xlu0 %1051
      %1053 = vrot.lane.b32.xlu0 %v874, 32
      %v1054 = vpop.permute.xlu0 %1053
      %vm1071 = vcmask 294144
      %1072 = vst.msk [vmem:[#allocation4] sm:$0xff] %vm1071, %v1024
      %1073 = vst.msk [vmem:[#allocation4 + $0x8] sm:$0xff] %vm1071, %v1026
      %1074 = vst.msk [vmem:[#allocation4 + $0x10] sm:$0xff] %vm1071, %v1028
      %1075 = vst.msk [vmem:[#allocation4 + $0x18] sm:$0xff] %vm1071, %v1030
      %1076 = vst.msk [vmem:[#allocation4 + $0x20] sm:$0xff] %vm1071, %v1032
      %1077 = vst.msk [vmem:[#allocation4 + $0x28] sm:$0xff] %vm1071, %v1034
      %1078 = vst.msk [vmem:[#allocation4 + $0x30] sm:$0xff] %vm1071, %v1036
      %1079 = vst.msk [vmem:[#allocation4 + $0x38] sm:$0xff] %vm1071, %v1038
      %1080 = vst.msk [vmem:[#allocation4 + $0x40] sm:$0xff] %vm1071, %v1040
      %1081 = vst.msk [vmem:[#allocation4 + $0x48] sm:$0xff] %vm1071, %v1042
      %1082 = vst.msk [vmem:[#allocation4 + $0x50] sm:$0xff] %vm1071, %v1044
      %1083 = vst.msk [vmem:[#allocation4 + $0x58] sm:$0xff] %vm1071, %v1046
      %1084 = vst.msk [vmem:[#allocation4 + $0x60] sm:$0xff] %vm1071, %v1048
      %1085 = vst.msk [vmem:[#allocation4 + $0x68] sm:$0xff] %vm1071, %v1050
      %1086 = vst.msk [vmem:[#allocation4 + $0x70] sm:$0xff] %vm1071, %v1052
      %1087 = vst.msk [vmem:[#allocation4 + $0x78] sm:$0xff] %vm1071, %v1054
      %v1088 = vld [vmem:[#allocation4] sm:$0xff]
      %v1089 = vld [vmem:[#allocation4 + $0x8] sm:$0xff]
      %v1090 = vld [vmem:[#allocation4 + $0x10] sm:$0xff]
      %v1091 = vld [vmem:[#allocation4 + $0x18] sm:$0xff]
      %v1092 = vld [vmem:[#allocation4 + $0x20] sm:$0xff]
      %v1093 = vld [vmem:[#allocation4 + $0x28] sm:$0xff]
      %v1094 = vld [vmem:[#allocation4 + $0x30] sm:$0xff]
      %v1095 = vld [vmem:[#allocation4 + $0x38] sm:$0xff]
      %v1096 = vld [vmem:[#allocation4 + $0x40] sm:$0xff]
      %v1097 = vld [vmem:[#allocation4 + $0x48] sm:$0xff]
      %v1098 = vld [vmem:[#allocation4 + $0x50] sm:$0xff]
      %v1099 = vld [vmem:[#allocation4 + $0x58] sm:$0xff]
      %v1100 = vld [vmem:[#allocation4 + $0x60] sm:$0xff]
      %v1101 = vld [vmem:[#allocation4 + $0x68] sm:$0xff]
      %v1102 = vld [vmem:[#allocation4 + $0x70] sm:$0xff]
      %v1103 = vld [vmem:[#allocation4 + $0x78] sm:$0xff]
      %v1104 = vmax.bf16 %v1088, 0
      %v1105 = vmax.bf16 %v1089, 0
      %v1106 = vmax.bf16 %v1090, 0
      %v1107 = vmax.bf16 %v1091, 0
      %v1108 = vmax.bf16 %v1092, 0
      %v1109 = vmax.bf16 %v1093, 0
      %v1110 = vmax.bf16 %v1094, 0
      %v1111 = vmax.bf16 %v1095, 0
      %v1112 = vmax.bf16 %v1096, 0
      %v1113 = vmax.bf16 %v1097, 0
      %v1114 = vmax.bf16 %v1098, 0
      %v1115 = vmax.bf16 %v1099, 0
      %v1116 = vmax.bf16 %v1100, 0
      %v1117 = vmax.bf16 %v1101, 0
      %v1118 = vmax.bf16 %v1102, 0
      %v1119 = vmax.bf16 %v1103, 0
      %v1120 = vld [vmem:[%s1] sm:$0xf]
      %v1121 = vld [vmem:[%s1 + $0x4] sm:$0xf]
      %v1122 = vld [vmem:[%s1 + $0x8] sm:$0xf]
      %v1123 = vld [vmem:[%s1 + $0xc] sm:$0xf]
      %v1124 = vld [vmem:[%s1 + $0x10] sm:$0x3]
      %v1125 = vld [vmem:[%s2] sm:$0x1]
      %v1127 = vlaneseq
      %v1128 = vshrl.u32 %v1127, 7
      %v1129 = vsub.s32 0, %v1128
      %v1130 = vrot.slane %v1125, %v1129
      %v1137 = vunpack.c.l.b16 %v1120
      %v1138 = vunpack.c.l.b16 %v1121
      %v1139 = vunpack.c.l.b16 %v1122
      %v1140 = vunpack.c.l.b16 %v1123
      %v1141 = vunpack.c.l.b16 %v1124
      %v1142 = vpack.c.b16 %v1138, %v1137
      %v1143 = vpack.c.b16 %v1140, %v1139
      %v1144 = vpack.c.b16 %v1141, %v1141
      %vm1147 = vcmask 293888
      %v1149 = vsel %vm1147, %v1104, 0
      %v1152 = vsel %vm1147, %v1105, 0
      %v1155 = vsel %vm1147, %v1106, 0
      %v1158 = vsel %vm1147, %v1107, 0
      %v1161 = vsel %vm1147, %v1108, 0
      %v1164 = vsel %vm1147, %v1109, 0
      %v1167 = vsel %vm1147, %v1110, 0
      %v1170 = vsel %vm1147, %v1111, 0
      %v1173 = vsel %vm1147, %v1112, 0
      %v1176 = vsel %vm1147, %v1113, 0
      %v1179 = vsel %vm1147, %v1114, 0
      %v1182 = vsel %vm1147, %v1115, 0
      %v1185 = vsel %vm1147, %v1116, 0
      %v1188 = vsel %vm1147, %v1117, 0
      %v1191 = vsel %vm1147, %v1118, 0
      %v1194 = vsel %vm1147, %v1119, 0
      %vm1196 = vcmask 1041408
      %v1198 = vsel %vm1196, %v1144, 0
      %1200 = vmatprep.subr.bf16.mxu0 0
      %1201 = vmatpush1.bf16.msra.mxu0 %v1142
      %1202 = vmatprep.subr.bf16.mxu0 0
      %1203 = vmatpush1.bf16.msra.mxu0 %v1143
      %1204 = vmatprep.subr.bf16.mxu0 0
      %1205 = vmatpush1.bf16.msra.mxu0 %v1198
      %1206 = vmatprep.subr.bf16.mxu0 0
      %1207 = vmatpush1.bf16.msra.mxu0 0
      %1208 = vmatprep.subr.bf16.mxu0 0
      %1209 = vmatpush1.bf16.msra.mxu0 0
      %1210 = vmatprep.subr.bf16.mxu0 0
      %1211 = vmatpush1.bf16.msra.mxu0 0
      %1212 = vmatprep.subr.bf16.mxu0 0
      %1213 = vmatpush1.bf16.msra.mxu0 0
      %1214 = vmatprep.subr.bf16.mxu0 0
      %1215 = vmatpush1.bf16.msra.mxu0 0
      %1216 = vmatprep.subr.bf16.mxu0 0
      %1217 = vmatpush1.bf16.msra.mxu0 0
      %1218 = vmatprep.subr.bf16.mxu0 0
      %1219 = vmatpush1.bf16.msra.mxu0 0
      %1220 = vmatprep.subr.bf16.mxu0 0
      %1221 = vmatpush1.bf16.msra.mxu0 0
      %1222 = vmatprep.subr.bf16.mxu0 0
      %1223 = vmatpush1.bf16.msra.mxu0 0
      %1224 = vmatprep.subr.bf16.mxu0 0
      %1225 = vmatpush1.bf16.msra.mxu0 0
      %1226 = vmatprep.subr.bf16.mxu0 0
      %1227 = vmatpush1.bf16.msra.mxu0 0
      %1228 = vmatprep.subr.bf16.mxu0 0
      %1229 = vmatpush1.bf16.msra.mxu0 0
      %1230 = vmatprep.subr.bf16.mxu0 0
      %1231 = vmatpush1.bf16.msra.mxu0 0
      %1232 = vmatprep.mubr.bf16.mxu0 0
      %1233 = vmatmul.mubr.bf16.gmra.mrb[0].mxu0 %v1149
      %v1234 = vpop.f32.mrb[0].mxu0
      %v1235 = vadd.f32 %v1130, %v1234
      %v1236 = vpop.f32.mrb[0].mxu0
      %v1237 = vpop.f32.mrb[0].mxu0
      %v1238 = vadd.f32 %v1130, %v1237
      %v1239 = vpop.f32.mrb[0].mxu0
      %1240 = vmatprep.mubr.bf16.mxu0 0
      %1241 = vmatmul.mubr.bf16.gmra.mrb[0].mxu0 %v1152
      %v1242 = vpop.f32.mrb[0].mxu0
      %v1243 = vadd.f32 %v1130, %v1242
      %v1244 = vpop.f32.mrb[0].mxu0
      %v1245 = vpop.f32.mrb[0].mxu0
      %v1246 = vadd.f32 %v1130, %v1245
      %v1247 = vpop.f32.mrb[0].mxu0
      %1248 = vmatprep.mubr.bf16.mxu0 0
      %1249 = vmatmul.mubr.bf16.gmra.mrb[0].mxu0 %v1155
      %v1250 = vpop.f32.mrb[0].mxu0
      %v1251 = vadd.f32 %v1130, %v1250
      %v1252 = vpop.f32.mrb[0].mxu0
      %v1253 = vpop.f32.mrb[0].mxu0
      %v1254 = vadd.f32 %v1130, %v1253
      %v1255 = vpop.f32.mrb[0].mxu0
      %1256 = vmatprep.mubr.bf16.mxu0 0
      %1257 = vmatmul.mubr.bf16.gmra.mrb[0].mxu0 %v1158
      %v1258 = vpop.f32.mrb[0].mxu0
      %v1259 = vadd.f32 %v1130, %v1258
      %v1260 = vpop.f32.mrb[0].mxu0
      %v1261 = vpop.f32.mrb[0].mxu0
      %v1262 = vadd.f32 %v1130, %v1261
      %v1263 = vpop.f32.mrb[0].mxu0
      %1264 = vmatprep.mubr.bf16.mxu0 0
      %1265 = vmatmul.mubr.bf16.gmra.mrb[0].mxu0 %v1161
      %v1266 = vpop.f32.mrb[0].mxu0
      %v1267 = vadd.f32 %v1130, %v1266
      %v1268 = vpop.f32.mrb[0].mxu0
      %v1269 = vpop.f32.mrb[0].mxu0
      %v1270 = vadd.f32 %v1130, %v1269
      %v1271 = vpop.f32.mrb[0].mxu0
      %1272 = vmatprep.mubr.bf16.mxu0 0
      %1273 = vmatmul.mubr.bf16.gmra.mrb[0].mxu0 %v1164
      %v1274 = vpop.f32.mrb[0].mxu0
      %v1275 = vadd.f32 %v1130, %v1274
      %v1276 = vpop.f32.mrb[0].mxu0
      %v1277 = vpop.f32.mrb[0].mxu0
      %v1278 = vadd.f32 %v1130, %v1277
      %v1279 = vpop.f32.mrb[0].mxu0
      %1280 = vmatprep.mubr.bf16.mxu0 0
      %1281 = vmatmul.mubr.bf16.gmra.mrb[0].mxu0 %v1167
      %v1282 = vpop.f32.mrb[0].mxu0
      %v1283 = vadd.f32 %v1130, %v1282
      %v1284 = vpop.f32.mrb[0].mxu0
      %v1285 = vpop.f32.mrb[0].mxu0
      %v1286 = vadd.f32 %v1130, %v1285
      %v1287 = vpop.f32.mrb[0].mxu0
      %1288 = vmatprep.mubr.bf16.mxu0 0
      %1289 = vmatmul.mubr.bf16.gmra.mrb[0].mxu0 %v1170
      %v1290 = vpop.f32.mrb[0].mxu0
      %v1291 = vadd.f32 %v1130, %v1290
      %v1292 = vpop.f32.mrb[0].mxu0
      %v1293 = vpop.f32.mrb[0].mxu0
      %v1294 = vadd.f32 %v1130, %v1293
      %v1295 = vpop.f32.mrb[0].mxu0
      %1296 = vmatprep.mubr.bf16.mxu0 0
      %1297 = vmatmul.mubr.bf16.gmra.mrb[0].mxu0 %v1173
      %v1298 = vpop.f32.mrb[0].mxu0
      %v1299 = vadd.f32 %v1130, %v1298
      %v1300 = vpop.f32.mrb[0].mxu0
      %v1301 = vpop.f32.mrb[0].mxu0
      %v1302 = vadd.f32 %v1130, %v1301
      %v1303 = vpop.f32.mrb[0].mxu0
      %1304 = vmatprep.mubr.bf16.mxu0 0
      %1305 = vmatmul.mubr.bf16.gmra.mrb[0].mxu0 %v1176
      %v1306 = vpop.f32.mrb[0].mxu0
      %v1307 = vadd.f32 %v1130, %v1306
      %v1308 = vpop.f32.mrb[0].mxu0
      %v1309 = vpop.f32.mrb[0].mxu0
      %v1310 = vadd.f32 %v1130, %v1309
      %v1311 = vpop.f32.mrb[0].mxu0
      %1312 = vmatprep.mubr.bf16.mxu0 0
      %1313 = vmatmul.mubr.bf16.gmra.mrb[0].mxu0 %v1179
      %v1314 = vpop.f32.mrb[0].mxu0
      %v1315 = vadd.f32 %v1130, %v1314
      %v1316 = vpop.f32.mrb[0].mxu0
      %v1317 = vpop.f32.mrb[0].mxu0
      %v1318 = vadd.f32 %v1130, %v1317
      %v1319 = vpop.f32.mrb[0].mxu0
      %1320 = vmatprep.mubr.bf16.mxu0 0
      %1321 = vmatmul.mubr.bf16.gmra.mrb[0].mxu0 %v1182
      %v1322 = vpop.f32.mrb[0].mxu0
      %v1323 = vadd.f32 %v1130, %v1322
      %v1324 = vpop.f32.mrb[0].mxu0
      %v1325 = vpop.f32.mrb[0].mxu0
      %v1326 = vadd.f32 %v1130, %v1325
      %v1327 = vpop.f32.mrb[0].mxu0
      %1328 = vmatprep.mubr.bf16.mxu0 0
      %1329 = vmatmul.mubr.bf16.gmra.mrb[0].mxu0 %v1185
      %v1330 = vpop.f32.mrb[0].mxu0
      %v1331 = vadd.f32 %v1130, %v1330
      %v1332 = vpop.f32.mrb[0].mxu0
      %v1333 = vpop.f32.mrb[0].mxu0
      %v1334 = vadd.f32 %v1130, %v1333
      %v1335 = vpop.f32.mrb[0].mxu0
      %1336 = vmatprep.mubr.bf16.mxu0 0
      %1337 = vmatmul.mubr.bf16.gmra.mrb[0].mxu0 %v1188
      %v1338 = vpop.f32.mrb[0].mxu0
      %v1339 = vadd.f32 %v1130, %v1338
      %v1340 = vpop.f32.mrb[0].mxu0
      %v1341 = vpop.f32.mrb[0].mxu0
      %v1342 = vadd.f32 %v1130, %v1341
      %v1343 = vpop.f32.mrb[0].mxu0
      %1344 = vmatprep.mubr.bf16.mxu0 0
      %1345 = vmatmul.mubr.bf16.gmra.mrb[0].mxu0 %v1191
      %v1346 = vpop.f32.mrb[0].mxu0
      %v1347 = vadd.f32 %v1130, %v1346
      %v1348 = vpop.f32.mrb[0].mxu0
      %v1349 = vpop.f32.mrb[0].mxu0
      %v1350 = vadd.f32 %v1130, %v1349
      %v1351 = vpop.f32.mrb[0].mxu0
      %1352 = vmatprep.mubr.bf16.mxu0 0
      %1353 = vmatmul.mubr.bf16.gmra.mrb[0].mxu0 %v1194
      %v1354 = vpop.f32.mrb[0].mxu0
      %v1355 = vadd.f32 %v1130, %v1354
      %v1356 = vpop.f32.mrb[0].mxu0
      %v1357 = vpop.f32.mrb[0].mxu0
      %v1358 = vadd.f32 %v1130, %v1357
      %v1359 = vpop.f32.mrb[0].mxu0
      %1360 = vdwg.mxu0
      %v1361 = vmax.f32 %v1235, 0.0
      %v1362 = vmax.f32 %v1238, 0.0
      %v1363 = vmax.f32 %v1243, 0.0
      %v1364 = vmax.f32 %v1246, 0.0
      %v1365 = vmax.f32 %v1251, 0.0
      %v1366 = vmax.f32 %v1254, 0.0
      %v1367 = vmax.f32 %v1259, 0.0
      %v1368 = vmax.f32 %v1262, 0.0
      %v1369 = vmax.f32 %v1267, 0.0
      %v1370 = vmax.f32 %v1270, 0.0
      %v1371 = vmax.f32 %v1275, 0.0
      %v1372 = vmax.f32 %v1278, 0.0
      %v1373 = vmax.f32 %v1283, 0.0
      %v1374 = vmax.f32 %v1286, 0.0
      %v1375 = vmax.f32 %v1291, 0.0
      %v1376 = vmax.f32 %v1294, 0.0
      %v1377 = vmax.f32 %v1299, 0.0
      %v1378 = vmax.f32 %v1302, 0.0
      %v1379 = vmax.f32 %v1307, 0.0
      %v1380 = vmax.f32 %v1310, 0.0
      %v1381 = vmax.f32 %v1315, 0.0
      %v1382 = vmax.f32 %v1318, 0.0
      %v1383 = vmax.f32 %v1323, 0.0
      %v1384 = vmax.f32 %v1326, 0.0
      %v1385 = vmax.f32 %v1331, 0.0
      %v1386 = vmax.f32 %v1334, 0.0
      %v1387 = vmax.f32 %v1339, 0.0
      %v1388 = vmax.f32 %v1342, 0.0
      %v1389 = vmax.f32 %v1347, 0.0
      %v1390 = vmax.f32 %v1350, 0.0
      %v1391 = vmax.f32 %v1355, 0.0
      %v1392 = vmax.f32 %v1358, 0.0
      %vm1393 = vcmask 64512
      %1394 = vst.msk [vmem:[#allocation3] sm:$0xff] %vm1393, 0.0
      %1395 = vst.msk [vmem:[#allocation3 + $0x8] sm:$0xff] %vm1393, 0.0
      %vm1396 = vcmask 58368
      %1397 = vst.msk [vmem:[#allocation3 + $0x10] sm:$0x3] %vm1396, 0.0
      %s1398 = scalar_lea.vmem [#allocation3], 408
      %1399 = vst.msk [vmem:[%s1398] sm:$0xff] %vm1393, 0.0
      %1400 = vst.msk [vmem:[%s1398 + $0x8] sm:$0xff] %vm1393, 0.0
      %1401 = vst.msk [vmem:[%s1398 + $0x10] sm:$0x3] %vm1396, 0.0
      %vm1402 = vcmask 57344
      %1403 = vst.msk [vmem:[#allocation3] sm:$0x1] %vm1402, 0.0
      %1404 = vst.msk [vmem:[#allocation3 + $0x18] sm:$0x1] %vm1402, 0.0
      %1405 = vst.msk [vmem:[#allocation3 + $0x30] sm:$0x1] %vm1402, 0.0
      %1406 = vst.msk [vmem:[#allocation3 + $0x48] sm:$0x1] %vm1402, 0.0
      %1407 = vst.msk [vmem:[#allocation3 + $0x60] sm:$0x1] %vm1402, 0.0
      %1408 = vst.msk [vmem:[#allocation3 + $0x78] sm:$0x1] %vm1402, 0.0
      %1409 = vst.msk [vmem:[#allocation3 + $0x90] sm:$0x1] %vm1402, 0.0
      %1410 = vst.msk [vmem:[#allocation3 + $0xa8] sm:$0x1] %vm1402, 0.0
      %1411 = vst.msk [vmem:[#allocation3 + $0xc0] sm:$0x1] %vm1402, 0.0
      %1412 = vst.msk [vmem:[#allocation3 + $0xd8] sm:$0x1] %vm1402, 0.0
      %1413 = vst.msk [vmem:[#allocation3 + $0xf0] sm:$0x1] %vm1402, 0.0
      %1414 = vst.msk [vmem:[#allocation3 + $0x108] sm:$0x1] %vm1402, 0.0
      %1415 = vst.msk [vmem:[#allocation3 + $0x120] sm:$0x1] %vm1402, 0.0
      %1416 = vst.msk [vmem:[#allocation3 + $0x138] sm:$0x1] %vm1402, 0.0
      %1417 = vst.msk [vmem:[#allocation3 + $0x150] sm:$0x1] %vm1402, 0.0
      %1418 = vst.msk [vmem:[#allocation3 + $0x168] sm:$0x1] %vm1402, 0.0
      %1419 = vst.msk [vmem:[#allocation3 + $0x180] sm:$0x1] %vm1402, 0.0
      %1420 = vst.msk [vmem:[#allocation3 + $0x198] sm:$0x1] %vm1402, 0.0
      %1421 = vst.msk [vmem:[#allocation3 + $0x11] sm:$0x1] %vm1402, 0.0
      %1422 = vst.msk [vmem:[#allocation3 + $0x29] sm:$0x1] %vm1402, 0.0
      %1423 = vst.msk [vmem:[#allocation3 + $0x41] sm:$0x1] %vm1402, 0.0
      %1424 = vst.msk [vmem:[#allocation3 + $0x59] sm:$0x1] %vm1402, 0.0
      %1425 = vst.msk [vmem:[#allocation3 + $0x71] sm:$0x1] %vm1402, 0.0
      %1426 = vst.msk [vmem:[#allocation3 + $0x89] sm:$0x1] %vm1402, 0.0
      %1427 = vst.msk [vmem:[#allocation3 + $0xa1] sm:$0x1] %vm1402, 0.0
      %1428 = vst.msk [vmem:[#allocation3 + $0xb9] sm:$0x1] %vm1402, 0.0
      %1429 = vst.msk [vmem:[#allocation3 + $0xd1] sm:$0x1] %vm1402, 0.0
      %1430 = vst.msk [vmem:[#allocation3 + $0xe9] sm:$0x1] %vm1402, 0.0
      %1431 = vst.msk [vmem:[#allocation3 + $0x101] sm:$0x1] %vm1402, 0.0
      %1432 = vst.msk [vmem:[#allocation3 + $0x119] sm:$0x1] %vm1402, 0.0
      %1433 = vst.msk [vmem:[#allocation3 + $0x131] sm:$0x1] %vm1402, 0.0
      %1434 = vst.msk [vmem:[#allocation3 + $0x149] sm:$0x1] %vm1402, 0.0
      %1435 = vst.msk [vmem:[#allocation3 + $0x161] sm:$0x1] %vm1402, 0.0
      %1436 = vst.msk [vmem:[#allocation3 + $0x179] sm:$0x1] %vm1402, 0.0
      %1437 = vst.msk [vmem:[#allocation3 + $0x191] sm:$0x1] %vm1402, 0.0
      %1438 = vst.msk [vmem:[#allocation3 + $0x1a9] sm:$0x1] %vm1402, 0.0
      %s1439 = scalar_lea.vmem [#allocation3], 24
      %1440 = vst.msk [vmem:[%s1439 + $0x1] sm:$0xff] %vm1393, %v1361
      %1441 = vst.msk [vmem:[%s1439 + $0x9] sm:$0xff] %vm1393, %v1362
      %1442 = vst.msk [vmem:[%s1439 + $0x19] sm:$0xff] %vm1393, %v1363
      %1443 = vst.msk [vmem:[%s1439 + $0x21] sm:$0xff] %vm1393, %v1364
      %1444 = vst.msk [vmem:[%s1439 + $0x31] sm:$0xff] %vm1393, %v1365
      %1445 = vst.msk [vmem:[%s1439 + $0x39] sm:$0xff] %vm1393, %v1366
      %1446 = vst.msk [vmem:[%s1439 + $0x49] sm:$0xff] %vm1393, %v1367
      %1447 = vst.msk [vmem:[%s1439 + $0x51] sm:$0xff] %vm1393, %v1368
      %1448 = vst.msk [vmem:[%s1439 + $0x61] sm:$0xff] %vm1393, %v1369
      %1449 = vst.msk [vmem:[%s1439 + $0x69] sm:$0xff] %vm1393, %v1370
      %1450 = vst.msk [vmem:[%s1439 + $0x79] sm:$0xff] %vm1393, %v1371
      %1451 = vst.msk [vmem:[%s1439 + $0x81] sm:$0xff] %vm1393, %v1372
      %1452 = vst.msk [vmem:[%s1439 + $0x91] sm:$0xff] %vm1393, %v1373
      %1453 = vst.msk [vmem:[%s1439 + $0x99] sm:$0xff] %vm1393, %v1374
      %1454 = vst.msk [vmem:[%s1439 + $0xa9] sm:$0xff] %vm1393, %v1375
      %1455 = vst.msk [vmem:[%s1439 + $0xb1] sm:$0xff] %vm1393, %v1376
      %1456 = vst.msk [vmem:[%s1439 + $0xc1] sm:$0xff] %vm1393, %v1377
      %1457 = vst.msk [vmem:[%s1439 + $0xc9] sm:$0xff] %vm1393, %v1378
      %1458 = vst.msk [vmem:[%s1439 + $0xd9] sm:$0xff] %vm1393, %v1379
      %1459 = vst.msk [vmem:[%s1439 + $0xe1] sm:$0xff] %vm1393, %v1380
      %1460 = vst.msk [vmem:[%s1439 + $0xf1] sm:$0xff] %vm1393, %v1381
      %1461 = vst.msk [vmem:[%s1439 + $0xf9] sm:$0xff] %vm1393, %v1382
      %1462 = vst.msk [vmem:[%s1439 + $0x109] sm:$0xff] %vm1393, %v1383
      %1463 = vst.msk [vmem:[%s1439 + $0x111] sm:$0xff] %vm1393, %v1384
      %1464 = vst.msk [vmem:[%s1439 + $0x121] sm:$0xff] %vm1393, %v1385
      %1465 = vst.msk [vmem:[%s1439 + $0x129] sm:$0xff] %vm1393, %v1386
      %1466 = vst.msk [vmem:[%s1439 + $0x139] sm:$0xff] %vm1393, %v1387
      %1467 = vst.msk [vmem:[%s1439 + $0x141] sm:$0xff] %vm1393, %v1388
      %1468 = vst.msk [vmem:[%s1439 + $0x151] sm:$0xff] %vm1393, %v1389
      %1469 = vst.msk [vmem:[%s1439 + $0x159] sm:$0xff] %vm1393, %v1390
      %1470 = vst.msk [vmem:[%s1439 + $0x169] sm:$0xff] %vm1393, %v1391
      %1471 = vst.msk [vmem:[%s1439 + $0x171] sm:$0xff] %vm1393, %v1392
      %v1472 = vld [vmem:[#allocation3] sm:$0xff]
      %v1473 = vld [vmem:[#allocation3 + $0x8] sm:$0xff]
      %v1474 = vld [vmem:[#allocation3 + $0x18] sm:$0xff]
      %v1475 = vld [vmem:[#allocation3 + $0x20] sm:$0xff]
      %v1476 = vld [vmem:[#allocation3 + $0x30] sm:$0xff]
      %v1477 = vld [vmem:[#allocation3 + $0x38] sm:$0xff]
      %v1478 = vld [vmem:[#allocation3 + $0x48] sm:$0xff]
      %v1479 = vld [vmem:[#allocation3 + $0x50] sm:$0xff]
      %v1480 = vld [vmem:[#allocation3 + $0x60] sm:$0xff]
      %v1481 = vld [vmem:[#allocation3 + $0x68] sm:$0xff]
      %v1482 = vld [vmem:[#allocation3 + $0x78] sm:$0xff]
      %v1483 = vld [vmem:[#allocation3 + $0x80] sm:$0xff]
      %v1484 = vld [vmem:[#allocation3 + $0x90] sm:$0xff]
      %v1485 = vld [vmem:[#allocation3 + $0x98] sm:$0xff]
      %v1486 = vld [vmem:[#allocation3 + $0xa8] sm:$0xff]
      %v1487 = vld [vmem:[#allocation3 + $0xb0] sm:$0xff]
      %v1488 = vld [vmem:[#allocation3 + $0xc0] sm:$0xff]
      %v1489 = vld [vmem:[#allocation3 + $0xc8] sm:$0xff]
      %v1490 = vld [vmem:[#allocation3 + $0xd8] sm:$0xff]
      %v1491 = vld [vmem:[#allocation3 + $0xe0] sm:$0xff]
      %v1492 = vld [vmem:[#allocation3 + $0xf0] sm:$0xff]
      %v1493 = vld [vmem:[#allocation3 + $0xf8] sm:$0xff]
      %v1494 = vld [vmem:[#allocation3 + $0x108] sm:$0xff]
      %v1495 = vld [vmem:[#allocation3 + $0x110] sm:$0xff]
      %v1496 = vld [vmem:[#allocation3 + $0x120] sm:$0xff]
      %v1497 = vld [vmem:[#allocation3 + $0x128] sm:$0xff]
      %v1498 = vld [vmem:[#allocation3 + $0x138] sm:$0xff]
      %v1499 = vld [vmem:[#allocation3 + $0x140] sm:$0xff]
      %v1500 = vld [vmem:[#allocation3 + $0x150] sm:$0xff]
      %v1501 = vld [vmem:[#allocation3 + $0x158] sm:$0xff]
      %v1502 = vld [vmem:[#allocation3 + $0x168] sm:$0xff]
      %v1503 = vld [vmem:[#allocation3 + $0x170] sm:$0xff]
      %v1504 = vld [vmem:[#allocation3 + $0x180] sm:$0xff]
      %v1505 = vld [vmem:[#allocation3 + $0x188] sm:$0xff]
      %v1506 = vld [vmem:[#allocation3 + $0x198] sm:$0xff]
      %v1507 = vld [vmem:[#allocation3 + $0x1a0] sm:$0xff]
      %v1508 = vpack.c.bf16 %v1473, %v1472
      %v1509 = vpack.c.bf16 %v1475, %v1474
      %v1510 = vpack.c.bf16 %v1477, %v1476
      %v1511 = vpack.c.bf16 %v1479, %v1478
      %v1512 = vpack.c.bf16 %v1481, %v1480
      %v1513 = vpack.c.bf16 %v1483, %v1482
      %v1514 = vpack.c.bf16 %v1485, %v1484
      %v1515 = vpack.c.bf16 %v1487, %v1486
      %v1516 = vpack.c.bf16 %v1489, %v1488
      %v1517 = vpack.c.bf16 %v1491, %v1490
      %v1518 = vpack.c.bf16 %v1493, %v1492
      %v1519 = vpack.c.bf16 %v1495, %v1494
      %v1520 = vpack.c.bf16 %v1497, %v1496
      %v1521 = vpack.c.bf16 %v1499, %v1498
      %v1522 = vpack.c.bf16 %v1501, %v1500
      %v1523 = vpack.c.bf16 %v1503, %v1502
      %v1524 = vpack.c.bf16 %v1505, %v1504
      %v1525 = vpack.c.bf16 %v1507, %v1506
      %1542 = vrot.lane.b32.xlu0 %v1508, 36
      %v1543 = vpop.permute.xlu0 %1542
      %1544 = vrot.lane.b32.xlu0 %v1509, 36
      %v1545 = vpop.permute.xlu0 %1544
      %1546 = vrot.lane.b32.xlu0 %v1510, 36
      %v1547 = vpop.permute.xlu0 %1546
      %1548 = vrot.lane.b32.xlu0 %v1511, 36
      %v1549 = vpop.permute.xlu0 %1548
      %1550 = vrot.lane.b32.xlu0 %v1512, 36
      %v1551 = vpop.permute.xlu0 %1550
      %1552 = vrot.lane.b32.xlu0 %v1513, 36
      %v1553 = vpop.permute.xlu0 %1552
      %1554 = vrot.lane.b32.xlu0 %v1514, 36
      %v1555 = vpop.permute.xlu0 %1554
      %1556 = vrot.lane.b32.xlu0 %v1515, 36
      %v1557 = vpop.permute.xlu0 %1556
      %1558 = vrot.lane.b32.xlu0 %v1516, 36
      %v1559 = vpop.permute.xlu0 %1558
      %1560 = vrot.lane.b32.xlu0 %v1517, 36
      %v1561 = vpop.permute.xlu0 %1560
      %1562 = vrot.lane.b32.xlu0 %v1518, 36
      %v1563 = vpop.permute.xlu0 %1562
      %1564 = vrot.lane.b32.xlu0 %v1519, 36
      %v1565 = vpop.permute.xlu0 %1564
      %1566 = vrot.lane.b32.xlu0 %v1520, 36
      %v1567 = vpop.permute.xlu0 %1566
      %1568 = vrot.lane.b32.xlu0 %v1521, 36
      %v1569 = vpop.permute.xlu0 %1568
      %1570 = vrot.lane.b32.xlu0 %v1522, 36
      %v1571 = vpop.permute.xlu0 %1570
      %1572 = vrot.lane.b32.xlu0 %v1523, 36
      %v1573 = vpop.permute.xlu0 %1572
      %vm1590 = vcmask 359712
      %1591 = vst.msk [vmem:[#allocation4] sm:$0xff] %vm1590, %v1543
      %1592 = vst.msk [vmem:[#allocation4 + $0x8] sm:$0xff] %vm1590, %v1545
      %1593 = vst.msk [vmem:[#allocation4 + $0x10] sm:$0xff] %vm1590, %v1547
      %1594 = vst.msk [vmem:[#allocation4 + $0x18] sm:$0xff] %vm1590, %v1549
      %1595 = vst.msk [vmem:[#allocation4 + $0x20] sm:$0xff] %vm1590, %v1551
      %1596 = vst.msk [vmem:[#allocation4 + $0x28] sm:$0xff] %vm1590, %v1553
      %1597 = vst.msk [vmem:[#allocation4 + $0x30] sm:$0xff] %vm1590, %v1555
      %1598 = vst.msk [vmem:[#allocation4 + $0x38] sm:$0xff] %vm1590, %v1557
      %1599 = vst.msk [vmem:[#allocation4 + $0x40] sm:$0xff] %vm1590, %v1559
      %1600 = vst.msk [vmem:[#allocation4 + $0x48] sm:$0xff] %vm1590, %v1561
      %1601 = vst.msk [vmem:[#allocation4 + $0x50] sm:$0xff] %vm1590, %v1563
      %1602 = vst.msk [vmem:[#allocation4 + $0x58] sm:$0xff] %vm1590, %v1565
      %1603 = vst.msk [vmem:[#allocation4 + $0x60] sm:$0xff] %vm1590, %v1567
      %1604 = vst.msk [vmem:[#allocation4 + $0x68] sm:$0xff] %vm1590, %v1569
      %1605 = vst.msk [vmem:[#allocation4 + $0x70] sm:$0xff] %vm1590, %v1571
      %1606 = vst.msk [vmem:[#allocation4 + $0x78] sm:$0xff] %vm1590, %v1573
      %1608 = vrot.lane.b32.xlu0 %v1509, 60
      %v1609 = vpop.permute.xlu0 %1608
      %1610 = vrot.lane.b32.xlu0 %v1510, 60
      %v1611 = vpop.permute.xlu0 %1610
      %1612 = vrot.lane.b32.xlu0 %v1511, 60
      %v1613 = vpop.permute.xlu0 %1612
      %1614 = vrot.lane.b32.xlu0 %v1512, 60
      %v1615 = vpop.permute.xlu0 %1614
      %1616 = vrot.lane.b32.xlu0 %v1513, 60
      %v1617 = vpop.permute.xlu0 %1616
      %1618 = vrot.lane.b32.xlu0 %v1514, 60
      %v1619 = vpop.permute.xlu0 %1618
      %1620 = vrot.lane.b32.xlu0 %v1515, 60
      %v1621 = vpop.permute.xlu0 %1620
      %1622 = vrot.lane.b32.xlu0 %v1516, 60
      %v1623 = vpop.permute.xlu0 %1622
      %1624 = vrot.lane.b32.xlu0 %v1517, 60
      %v1625 = vpop.permute.xlu0 %1624
      %1626 = vrot.lane.b32.xlu0 %v1518, 60
      %v1627 = vpop.permute.xlu0 %1626
      %1628 = vrot.lane.b32.xlu0 %v1519, 60
      %v1629 = vpop.permute.xlu0 %1628
      %1630 = vrot.lane.b32.xlu0 %v1520, 60
      %v1631 = vpop.permute.xlu0 %1630
      %1632 = vrot.lane.b32.xlu0 %v1521, 60
      %v1633 = vpop.permute.xlu0 %1632
      %1634 = vrot.lane.b32.xlu0 %v1522, 60
      %v1635 = vpop.permute.xlu0 %1634
      %1636 = vrot.lane.b32.xlu0 %v1523, 60
      %v1637 = vpop.permute.xlu0 %1636
      %1638 = vrot.lane.b32.xlu0 %v1524, 60
      %v1639 = vpop.permute.xlu0 %1638
      %vm1656 = vcmask 556512
      %1657 = vst.msk [vmem:[#allocation4] sm:$0xff] %vm1656, %v1609
      %1658 = vst.msk [vmem:[#allocation4 + $0x8] sm:$0xff] %vm1656, %v1611
      %1659 = vst.msk [vmem:[#allocation4 + $0x10] sm:$0xff] %vm1656, %v1613
      %1660 = vst.msk [vmem:[#allocation4 + $0x18] sm:$0xff] %vm1656, %v1615
      %1661 = vst.msk [vmem:[#allocation4 + $0x20] sm:$0xff] %vm1656, %v1617
      %1662 = vst.msk [vmem:[#allocation4 + $0x28] sm:$0xff] %vm1656, %v1619
      %1663 = vst.msk [vmem:[#allocation4 + $0x30] sm:$0xff] %vm1656, %v1621
      %1664 = vst.msk [vmem:[#allocation4 + $0x38] sm:$0xff] %vm1656, %v1623
      %1665 = vst.msk [vmem:[#allocation4 + $0x40] sm:$0xff] %vm1656, %v1625
      %1666 = vst.msk [vmem:[#allocation4 + $0x48] sm:$0xff] %vm1656, %v1627
      %1667 = vst.msk [vmem:[#allocation4 + $0x50] sm:$0xff] %vm1656, %v1629
      %1668 = vst.msk [vmem:[#allocation4 + $0x58] sm:$0xff] %vm1656, %v1631
      %1669 = vst.msk [vmem:[#allocation4 + $0x60] sm:$0xff] %vm1656, %v1633
      %1670 = vst.msk [vmem:[#allocation4 + $0x68] sm:$0xff] %vm1656, %v1635
      %1671 = vst.msk [vmem:[#allocation4 + $0x70] sm:$0xff] %vm1656, %v1637
      %1672 = vst.msk [vmem:[#allocation4 + $0x78] sm:$0xff] %vm1656, %v1639
      %1674 = vrot.lane.b32.xlu0 %v1510, 84
      %v1675 = vpop.permute.xlu0 %1674
      %1676 = vrot.lane.b32.xlu0 %v1511, 84
      %v1677 = vpop.permute.xlu0 %1676
      %1678 = vrot.lane.b32.xlu0 %v1512, 84
      %v1679 = vpop.permute.xlu0 %1678
      %1680 = vrot.lane.b32.xlu0 %v1513, 84
      %v1681 = vpop.permute.xlu0 %1680
      %1682 = vrot.lane.b32.xlu0 %v1514, 84
      %v1683 = vpop.permute.xlu0 %1682
      %1684 = vrot.lane.b32.xlu0 %v1515, 84
      %v1685 = vpop.permute.xlu0 %1684
      %1686 = vrot.lane.b32.xlu0 %v1516, 84
      %v1687 = vpop.permute.xlu0 %1686
      %1688 = vrot.lane.b32.xlu0 %v1517, 84
      %v1689 = vpop.permute.xlu0 %1688
      %1690 = vrot.lane.b32.xlu0 %v1518, 84
      %v1691 = vpop.permute.xlu0 %1690
      %1692 = vrot.lane.b32.xlu0 %v1519, 84
      %v1693 = vpop.permute.xlu0 %1692
      %1694 = vrot.lane.b32.xlu0 %v1520, 84
      %v1695 = vpop.permute.xlu0 %1694
      %1696 = vrot.lane.b32.xlu0 %v1521, 84
      %v1697 = vpop.permute.xlu0 %1696
      %1698 = vrot.lane.b32.xlu0 %v1522, 84
      %v1699 = vpop.permute.xlu0 %1698
      %1700 = vrot.lane.b32.xlu0 %v1523, 84
      %v1701 = vpop.permute.xlu0 %1700
      %1702 = vrot.lane.b32.xlu0 %v1524, 84
      %v1703 = vpop.permute.xlu0 %1702
      %1704 = vrot.lane.b32.xlu0 %v1525, 84
      %v1705 = vpop.permute.xlu0 %1704
      %vm1722 = vcmask 753312
      %1723 = vst.msk [vmem:[#allocation4] sm:$0xff] %vm1722, %v1675
      %1724 = vst.msk [vmem:[#allocation4 + $0x8] sm:$0xff] %vm1722, %v1677
      %1725 = vst.msk [vmem:[#allocation4 + $0x10] sm:$0xff] %vm1722, %v1679
      %1726 = vst.msk [vmem:[#allocation4 + $0x18] sm:$0xff] %vm1722, %v1681
      %1727 = vst.msk [vmem:[#allocation4 + $0x20] sm:$0xff] %vm1722, %v1683
      %1728 = vst.msk [vmem:[#allocation4 + $0x28] sm:$0xff] %vm1722, %v1685
      %1729 = vst.msk [vmem:[#allocation4 + $0x30] sm:$0xff] %vm1722, %v1687
      %1730 = vst.msk [vmem:[#allocation4 + $0x38] sm:$0xff] %vm1722, %v1689
      %1731 = vst.msk [vmem:[#allocation4 + $0x40] sm:$0xff] %vm1722, %v1691
      %1732 = vst.msk [vmem:[#allocation4 + $0x48] sm:$0xff] %vm1722, %v1693
      %1733 = vst.msk [vmem:[#allocation4 + $0x50] sm:$0xff] %vm1722, %v1695
      %1734 = vst.msk [vmem:[#allocation4 + $0x58] sm:$0xff] %vm1722, %v1697
      %1735 = vst.msk [vmem:[#allocation4 + $0x60] sm:$0xff] %vm1722, %v1699
      %1736 = vst.msk [vmem:[#allocation4 + $0x68] sm:$0xff] %vm1722, %v1701
      %1737 = vst.msk [vmem:[#allocation4 + $0x70] sm:$0xff] %vm1722, %v1703
      %1738 = vst.msk [vmem:[#allocation4 + $0x78] sm:$0xff] %vm1722, %v1705
      %v1739 = vld [vmem:[#allocation3 + $0x1] sm:$0xff]
      %v1740 = vld [vmem:[#allocation3 + $0x9] sm:$0xff]
      %v1741 = vld [vmem:[#allocation3 + $0x19] sm:$0xff]
      %v1742 = vld [vmem:[#allocation3 + $0x21] sm:$0xff]
      %v1743 = vld [vmem:[#allocation3 + $0x31] sm:$0xff]
      %v1744 = vld [vmem:[#allocation3 + $0x39] sm:$0xff]
      %v1745 = vld [vmem:[#allocation3 + $0x49] sm:$0xff]
      %v1746 = vld [vmem:[#allocation3 + $0x51] sm:$0xff]
      %v1747 = vld [vmem:[#allocation3 + $0x61] sm:$0xff]
      %v1748 = vld [vmem:[#allocation3 + $0x69] sm:$0xff]
      %v1749 = vld [vmem:[#allocation3 + $0x79] sm:$0xff]
      %v1750 = vld [vmem:[#allocation3 + $0x81] sm:$0xff]
      %v1751 = vld [vmem:[#allocation3 + $0x91] sm:$0xff]
      %v1752 = vld [vmem:[#allocation3 + $0x99] sm:$0xff]
      %v1753 = vld [vmem:[#allocation3 + $0xa9] sm:$0xff]
      %v1754 = vld [vmem:[#allocation3 + $0xb1] sm:$0xff]
      %v1755 = vld [vmem:[#allocation3 + $0xc1] sm:$0xff]
      %v1756 = vld [vmem:[#allocation3 + $0xc9] sm:$0xff]
      %v1757 = vld [vmem:[#allocation3 + $0xd9] sm:$0xff]
      %v1758 = vld [vmem:[#allocation3 + $0xe1] sm:$0xff]
      %v1759 = vld [vmem:[#allocation3 + $0xf1] sm:$0xff]
      %v1760 = vld [vmem:[#allocation3 + $0xf9] sm:$0xff]
      %v1761 = vld [vmem:[#allocation3 + $0x109] sm:$0xff]
      %v1762 = vld [vmem:[#allocation3 + $0x111] sm:$0xff]
      %v1763 = vld [vmem:[#allocation3 + $0x121] sm:$0xff]
      %v1764 = vld [vmem:[#allocation3 + $0x129] sm:$0xff]
      %v1765 = vld [vmem:[#allocation3 + $0x139] sm:$0xff]
      %v1766 = vld [vmem:[#allocation3 + $0x141] sm:$0xff]
      %v1767 = vld [vmem:[#allocation3 + $0x151] sm:$0xff]
      %v1768 = vld [vmem:[#allocation3 + $0x159] sm:$0xff]
      %v1769 = vld [vmem:[#allocation3 + $0x169] sm:$0xff]
      %v1770 = vld [vmem:[#allocation3 + $0x171] sm:$0xff]
      %v1771 = vld [vmem:[#allocation3 + $0x181] sm:$0xff]
      %v1772 = vld [vmem:[#allocation3 + $0x189] sm:$0xff]
      %v1773 = vld [vmem:[#allocation3 + $0x199] sm:$0xff]
      %v1774 = vld [vmem:[#allocation3 + $0x1a1] sm:$0xff]
      %v1775 = vpack.c.bf16 %v1740, %v1739
      %v1776 = vpack.c.bf16 %v1742, %v1741
      %v1777 = vpack.c.bf16 %v1744, %v1743
      %v1778 = vpack.c.bf16 %v1746, %v1745
      %v1779 = vpack.c.bf16 %v1748, %v1747
      %v1780 = vpack.c.bf16 %v1750, %v1749
      %v1781 = vpack.c.bf16 %v1752, %v1751
      %v1782 = vpack.c.bf16 %v1754, %v1753
      %v1783 = vpack.c.bf16 %v1756, %v1755
      %v1784 = vpack.c.bf16 %v1758, %v1757
      %v1785 = vpack.c.bf16 %v1760, %v1759
      %v1786 = vpack.c.bf16 %v1762, %v1761
      %v1787 = vpack.c.bf16 %v1764, %v1763
      %v1788 = vpack.c.bf16 %v1766, %v1765
      %v1789 = vpack.c.bf16 %v1768, %v1767
      %v1790 = vpack.c.bf16 %v1770, %v1769
      %v1791 = vpack.c.bf16 %v1772, %v1771
      %v1792 = vpack.c.bf16 %v1774, %v1773
      %1809 = vrot.lane.b32.xlu0 %v1775, 44
      %v1810 = vpop.permute.xlu0 %1809
      %1811 = vrot.lane.b32.xlu0 %v1776, 44
      %v1812 = vpop.permute.xlu0 %1811
      %1813 = vrot.lane.b32.xlu0 %v1777, 44
      %v1814 = vpop.permute.xlu0 %1813
      %1815 = vrot.lane.b32.xlu0 %v1778, 44
      %v1816 = vpop.permute.xlu0 %1815
      %1817 = vrot.lane.b32.xlu0 %v1779, 44
      %v1818 = vpop.permute.xlu0 %1817
      %1819 = vrot.lane.b32.xlu0 %v1780, 44
      %v1820 = vpop.permute.xlu0 %1819
      %1821 = vrot.lane.b32.xlu0 %v1781, 44
      %v1822 = vpop.permute.xlu0 %1821
      %1823 = vrot.lane.b32.xlu0 %v1782, 44
      %v1824 = vpop.permute.xlu0 %1823
      %1825 = vrot.lane.b32.xlu0 %v1783, 44
      %v1826 = vpop.permute.xlu0 %1825
      %1827 = vrot.lane.b32.xlu0 %v1784, 44
      %v1828 = vpop.permute.xlu0 %1827
      %1829 = vrot.lane.b32.xlu0 %v1785, 44
      %v1830 = vpop.permute.xlu0 %1829
      %1831 = vrot.lane.b32.xlu0 %v1786, 44
      %v1832 = vpop.permute.xlu0 %1831
      %1833 = vrot.lane.b32.xlu0 %v1787, 44
      %v1834 = vpop.permute.xlu0 %1833
      %1835 = vrot.lane.b32.xlu0 %v1788, 44
      %v1836 = vpop.permute.xlu0 %1835
      %1837 = vrot.lane.b32.xlu0 %v1789, 44
      %v1838 = vpop.permute.xlu0 %1837
      %1839 = vrot.lane.b32.xlu0 %v1790, 44
      %v1840 = vpop.permute.xlu0 %1839
      %vm1857 = vcmask 425312
      %1858 = vst.msk [vmem:[#allocation4] sm:$0xff] %vm1857, %v1810
      %1859 = vst.msk [vmem:[#allocation4 + $0x8] sm:$0xff] %vm1857, %v1812
      %1860 = vst.msk [vmem:[#allocation4 + $0x10] sm:$0xff] %vm1857, %v1814
      %1861 = vst.msk [vmem:[#allocation4 + $0x18] sm:$0xff] %vm1857, %v1816
      %1862 = vst.msk [vmem:[#allocation4 + $0x20] sm:$0xff] %vm1857, %v1818
      %1863 = vst.msk [vmem:[#allocation4 + $0x28] sm:$0xff] %vm1857, %v1820
      %1864 = vst.msk [vmem:[#allocation4 + $0x30] sm:$0xff] %vm1857, %v1822
      %1865 = vst.msk [vmem:[#allocation4 + $0x38] sm:$0xff] %vm1857, %v1824
      %1866 = vst.msk [vmem:[#allocation4 + $0x40] sm:$0xff] %vm1857, %v1826
      %1867 = vst.msk [vmem:[#allocation4 + $0x48] sm:$0xff] %vm1857, %v1828
      %1868 = vst.msk [vmem:[#allocation4 + $0x50] sm:$0xff] %vm1857, %v1830
      %1869 = vst.msk [vmem:[#allocation4 + $0x58] sm:$0xff] %vm1857, %v1832
      %1870 = vst.msk [vmem:[#allocation4 + $0x60] sm:$0xff] %vm1857, %v1834
      %1871 = vst.msk [vmem:[#allocation4 + $0x68] sm:$0xff] %vm1857, %v1836
      %1872 = vst.msk [vmem:[#allocation4 + $0x70] sm:$0xff] %vm1857, %v1838
      %1873 = vst.msk [vmem:[#allocation4 + $0x78] sm:$0xff] %vm1857, %v1840
      %1875 = vrot.lane.b32.xlu0 %v1776, 68
      %v1876 = vpop.permute.xlu0 %1875
      %1877 = vrot.lane.b32.xlu0 %v1777, 68
      %v1878 = vpop.permute.xlu0 %1877
      %1879 = vrot.lane.b32.xlu0 %v1778, 68
      %v1880 = vpop.permute.xlu0 %1879
      %1881 = vrot.lane.b32.xlu0 %v1779, 68
      %v1882 = vpop.permute.xlu0 %1881
      %1883 = vrot.lane.b32.xlu0 %v1780, 68
      %v1884 = vpop.permute.xlu0 %1883
      %1885 = vrot.lane.b32.xlu0 %v1781, 68
      %v1886 = vpop.permute.xlu0 %1885
      %1887 = vrot.lane.b32.xlu0 %v1782, 68
      %v1888 = vpop.permute.xlu0 %1887
      %1889 = vrot.lane.b32.xlu0 %v1783, 68
      %v1890 = vpop.permute.xlu0 %1889
      %1891 = vrot.lane.b32.xlu0 %v1784, 68
      %v1892 = vpop.permute.xlu0 %1891
      %1893 = vrot.lane.b32.xlu0 %v1785, 68
      %v1894 = vpop.permute.xlu0 %1893
      %1895 = vrot.lane.b32.xlu0 %v1786, 68
      %v1896 = vpop.permute.xlu0 %1895
      %1897 = vrot.lane.b32.xlu0 %v1787, 68
      %v1898 = vpop.permute.xlu0 %1897
      %1899 = vrot.lane.b32.xlu0 %v1788, 68
      %v1900 = vpop.permute.xlu0 %1899
      %1901 = vrot.lane.b32.xlu0 %v1789, 68
      %v1902 = vpop.permute.xlu0 %1901
      %1903 = vrot.lane.b32.xlu0 %v1790, 68
      %v1904 = vpop.permute.xlu0 %1903
      %1905 = vrot.lane.b32.xlu0 %v1791, 68
      %v1906 = vpop.permute.xlu0 %1905
      %vm1923 = vcmask 622112
      %1924 = vst.msk [vmem:[#allocation4] sm:$0xff] %vm1923, %v1876
      %1925 = vst.msk [vmem:[#allocation4 + $0x8] sm:$0xff] %vm1923, %v1878
      %1926 = vst.msk [vmem:[#allocation4 + $0x10] sm:$0xff] %vm1923, %v1880
      %1927 = vst.msk [vmem:[#allocation4 + $0x18] sm:$0xff] %vm1923, %v1882
      %1928 = vst.msk [vmem:[#allocation4 + $0x20] sm:$0xff] %vm1923, %v1884
      %1929 = vst.msk [vmem:[#allocation4 + $0x28] sm:$0xff] %vm1923, %v1886
      %1930 = vst.msk [vmem:[#allocation4 + $0x30] sm:$0xff] %vm1923, %v1888
      %1931 = vst.msk [vmem:[#allocation4 + $0x38] sm:$0xff] %vm1923, %v1890
      %1932 = vst.msk [vmem:[#allocation4 + $0x40] sm:$0xff] %vm1923, %v1892
      %1933 = vst.msk [vmem:[#allocation4 + $0x48] sm:$0xff] %vm1923, %v1894
      %1934 = vst.msk [vmem:[#allocation4 + $0x50] sm:$0xff] %vm1923, %v1896
      %1935 = vst.msk [vmem:[#allocation4 + $0x58] sm:$0xff] %vm1923, %v1898
      %1936 = vst.msk [vmem:[#allocation4 + $0x60] sm:$0xff] %vm1923, %v1900
      %1937 = vst.msk [vmem:[#allocation4 + $0x68] sm:$0xff] %vm1923, %v1902
      %1938 = vst.msk [vmem:[#allocation4 + $0x70] sm:$0xff] %vm1923, %v1904
      %1939 = vst.msk [vmem:[#allocation4 + $0x78] sm:$0xff] %vm1923, %v1906
      %1941 = vrot.lane.b32.xlu0 %v1777, 92
      %v1942 = vpop.permute.xlu0 %1941
      %1943 = vrot.lane.b32.xlu0 %v1778, 92
      %v1944 = vpop.permute.xlu0 %1943
      %1945 = vrot.lane.b32.xlu0 %v1779, 92
      %v1946 = vpop.permute.xlu0 %1945
      %1947 = vrot.lane.b32.xlu0 %v1780, 92
      %v1948 = vpop.permute.xlu0 %1947
      %1949 = vrot.lane.b32.xlu0 %v1781, 92
      %v1950 = vpop.permute.xlu0 %1949
      %1951 = vrot.lane.b32.xlu0 %v1782, 92
      %v1952 = vpop.permute.xlu0 %1951
      %1953 = vrot.lane.b32.xlu0 %v1783, 92
      %v1954 = vpop.permute.xlu0 %1953
      %1955 = vrot.lane.b32.xlu0 %v1784, 92
      %v1956 = vpop.permute.xlu0 %1955
      %1957 = vrot.lane.b32.xlu0 %v1785, 92
      %v1958 = vpop.permute.xlu0 %1957
      %1959 = vrot.lane.b32.xlu0 %v1786, 92
      %v1960 = vpop.permute.xlu0 %1959
      %1961 = vrot.lane.b32.xlu0 %v1787, 92
      %v1962 = vpop.permute.xlu0 %1961
      %1963 = vrot.lane.b32.xlu0 %v1788, 92
      %v1964 = vpop.permute.xlu0 %1963
      %1965 = vrot.lane.b32.xlu0 %v1789, 92
      %v1966 = vpop.permute.xlu0 %1965
      %1967 = vrot.lane.b32.xlu0 %v1790, 92
      %v1968 = vpop.permute.xlu0 %1967
      %1969 = vrot.lane.b32.xlu0 %v1791, 92
      %v1970 = vpop.permute.xlu0 %1969
      %1971 = vrot.lane.b32.xlu0 %v1792, 92
      %v1972 = vpop.permute.xlu0 %1971
      %vm1989 = vcmask 818912
      %1990 = vst.msk [vmem:[#allocation4] sm:$0xff] %vm1989, %v1942
      %1991 = vst.msk [vmem:[#allocation4 + $0x8] sm:$0xff] %vm1989, %v1944
      %1992 = vst.msk [vmem:[#allocation4 + $0x10] sm:$0xff] %vm1989, %v1946
      %1993 = vst.msk [vmem:[#allocation4 + $0x18] sm:$0xff] %vm1989, %v1948
      %1994 = vst.msk [vmem:[#allocation4 + $0x20] sm:$0xff] %vm1989, %v1950
      %1995 = vst.msk [vmem:[#allocation4 + $0x28] sm:$0xff] %vm1989, %v1952
      %1996 = vst.msk [vmem:[#allocation4 + $0x30] sm:$0xff] %vm1989, %v1954
      %1997 = vst.msk [vmem:[#allocation4 + $0x38] sm:$0xff] %vm1989, %v1956
      %1998 = vst.msk [vmem:[#allocation4 + $0x40] sm:$0xff] %vm1989, %v1958
      %1999 = vst.msk [vmem:[#allocation4 + $0x48] sm:$0xff] %vm1989, %v1960
      %2000 = vst.msk [vmem:[#allocation4 + $0x50] sm:$0xff] %vm1989, %v1962
      %2001 = vst.msk [vmem:[#allocation4 + $0x58] sm:$0xff] %vm1989, %v1964
      %2002 = vst.msk [vmem:[#allocation4 + $0x60] sm:$0xff] %vm1989, %v1966
      %2003 = vst.msk [vmem:[#allocation4 + $0x68] sm:$0xff] %vm1989, %v1968
      %2004 = vst.msk [vmem:[#allocation4 + $0x70] sm:$0xff] %vm1989, %v1970
      %2005 = vst.msk [vmem:[#allocation4 + $0x78] sm:$0xff] %vm1989, %v1972
      %v2006 = vld [vmem:[#allocation3 + $0x2] sm:$0xff]
      %v2007 = vld [vmem:[#allocation3 + $0xa] sm:$0xff]
      %v2008 = vld [vmem:[#allocation3 + $0x1a] sm:$0xff]
      %v2009 = vld [vmem:[#allocation3 + $0x22] sm:$0xff]
      %v2010 = vld [vmem:[#allocation3 + $0x32] sm:$0xff]
      %v2011 = vld [vmem:[#allocation3 + $0x3a] sm:$0xff]
      %v2012 = vld [vmem:[#allocation3 + $0x4a] sm:$0xff]
      %v2013 = vld [vmem:[#allocation3 + $0x52] sm:$0xff]
      %v2014 = vld [vmem:[#allocation3 + $0x62] sm:$0xff]
      %v2015 = vld [vmem:[#allocation3 + $0x6a] sm:$0xff]
      %v2016 = vld [vmem:[#allocation3 + $0x7a] sm:$0xff]
      %v2017 = vld [vmem:[#allocation3 + $0x82] sm:$0xff]
      %v2018 = vld [vmem:[#allocation3 + $0x92] sm:$0xff]
      %v2019 = vld [vmem:[#allocation3 + $0x9a] sm:$0xff]
      %v2020 = vld [vmem:[#allocation3 + $0xaa] sm:$0xff]
      %v2021 = vld [vmem:[#allocation3 + $0xb2] sm:$0xff]
      %v2022 = vld [vmem:[#allocation3 + $0xc2] sm:$0xff]
      %v2023 = vld [vmem:[#allocation3 + $0xca] sm:$0xff]
      %v2024 = vld [vmem:[#allocation3 + $0xda] sm:$0xff]
      %v2025 = vld [vmem:[#allocation3 + $0xe2] sm:$0xff]
      %v2026 = vld [vmem:[#allocation3 + $0xf2] sm:$0xff]
      %v2027 = vld [vmem:[#allocation3 + $0xfa] sm:$0xff]
      %v2028 = vld [vmem:[#allocation3 + $0x10a] sm:$0xff]
      %v2029 = vld [vmem:[#allocation3 + $0x112] sm:$0xff]
      %v2030 = vld [vmem:[#allocation3 + $0x122] sm:$0xff]
      %v2031 = vld [vmem:[#allocation3 + $0x12a] sm:$0xff]
      %v2032 = vld [vmem:[#allocation3 + $0x13a] sm:$0xff]
      %v2033 = vld [vmem:[#allocation3 + $0x142] sm:$0xff]
      %v2034 = vld [vmem:[#allocation3 + $0x152] sm:$0xff]
      %v2035 = vld [vmem:[#allocation3 + $0x15a] sm:$0xff]
      %v2036 = vld [vmem:[#allocation3 + $0x16a] sm:$0xff]
      %v2037 = vld [vmem:[#allocation3 + $0x172] sm:$0xff]
      %v2038 = vld [vmem:[#allocation3 + $0x182] sm:$0xff]
      %v2039 = vld [vmem:[#allocation3 + $0x18a] sm:$0xff]
      %v2040 = vld [vmem:[#allocation3 + $0x19a] sm:$0xff]
      %v2041 = vld [vmem:[#allocation3 + $0x1a2] sm:$0xff]
      %v2042 = vpack.c.bf16 %v2007, %v2006
      %v2043 = vpack.c.bf16 %v2009, %v2008
      %v2044 = vpack.c.bf16 %v2011, %v2010
      %v2045 = vpack.c.bf16 %v2013, %v2012
      %v2046 = vpack.c.bf16 %v2015, %v2014
      %v2047 = vpack.c.bf16 %v2017, %v2016
      %v2048 = vpack.c.bf16 %v2019, %v2018
      %v2049 = vpack.c.bf16 %v2021, %v2020
      %v2050 = vpack.c.bf16 %v2023, %v2022
      %v2051 = vpack.c.bf16 %v2025, %v2024
      %v2052 = vpack.c.bf16 %v2027, %v2026
      %v2053 = vpack.c.bf16 %v2029, %v2028
      %v2054 = vpack.c.bf16 %v2031, %v2030
      %v2055 = vpack.c.bf16 %v2033, %v2032
      %v2056 = vpack.c.bf16 %v2035, %v2034
      %v2057 = vpack.c.bf16 %v2037, %v2036
      %v2058 = vpack.c.bf16 %v2039, %v2038
      %v2059 = vpack.c.bf16 %v2041, %v2040
      %2076 = vrot.lane.b32.xlu0 %v2042, 52
      %v2077 = vpop.permute.xlu0 %2076
      %2078 = vrot.lane.b32.xlu0 %v2043, 52
      %v2079 = vpop.permute.xlu0 %2078
      %2080 = vrot.lane.b32.xlu0 %v2044, 52
      %v2081 = vpop.permute.xlu0 %2080
      %2082 = vrot.lane.b32.xlu0 %v2045, 52
      %v2083 = vpop.permute.xlu0 %2082
      %2084 = vrot.lane.b32.xlu0 %v2046, 52
      %v2085 = vpop.permute.xlu0 %2084
      %2086 = vrot.lane.b32.xlu0 %v2047, 52
      %v2087 = vpop.permute.xlu0 %2086
      %2088 = vrot.lane.b32.xlu0 %v2048, 52
      %v2089 = vpop.permute.xlu0 %2088
      %2090 = vrot.lane.b32.xlu0 %v2049, 52
      %v2091 = vpop.permute.xlu0 %2090
      %2092 = vrot.lane.b32.xlu0 %v2050, 52
      %v2093 = vpop.permute.xlu0 %2092
      %2094 = vrot.lane.b32.xlu0 %v2051, 52
      %v2095 = vpop.permute.xlu0 %2094
      %2096 = vrot.lane.b32.xlu0 %v2052, 52
      %v2097 = vpop.permute.xlu0 %2096
      %2098 = vrot.lane.b32.xlu0 %v2053, 52
      %v2099 = vpop.permute.xlu0 %2098
      %2100 = vrot.lane.b32.xlu0 %v2054, 52
      %v2101 = vpop.permute.xlu0 %2100
      %2102 = vrot.lane.b32.xlu0 %v2055, 52
      %v2103 = vpop.permute.xlu0 %2102
      %2104 = vrot.lane.b32.xlu0 %v2056, 52
      %v2105 = vpop.permute.xlu0 %2104
      %2106 = vrot.lane.b32.xlu0 %v2057, 52
      %v2107 = vpop.permute.xlu0 %2106
      %vm2124 = vcmask 490912
      %2125 = vst.msk [vmem:[#allocation4] sm:$0xff] %vm2124, %v2077
      %2126 = vst.msk [vmem:[#allocation4 + $0x8] sm:$0xff] %vm2124, %v2079
      %2127 = vst.msk [vmem:[#allocation4 + $0x10] sm:$0xff] %vm2124, %v2081
      %2128 = vst.msk [vmem:[#allocation4 + $0x18] sm:$0xff] %vm2124, %v2083
      %2129 = vst.msk [vmem:[#allocation4 + $0x20] sm:$0xff] %vm2124, %v2085
      %2130 = vst.msk [vmem:[#allocation4 + $0x28] sm:$0xff] %vm2124, %v2087
      %2131 = vst.msk [vmem:[#allocation4 + $0x30] sm:$0xff] %vm2124, %v2089
      %2132 = vst.msk [vmem:[#allocation4 + $0x38] sm:$0xff] %vm2124, %v2091
      %2133 = vst.msk [vmem:[#allocation4 + $0x40] sm:$0xff] %vm2124, %v2093
      %2134 = vst.msk [vmem:[#allocation4 + $0x48] sm:$0xff] %vm2124, %v2095
      %2135 = vst.msk [vmem:[#allocation4 + $0x50] sm:$0xff] %vm2124, %v2097
      %2136 = vst.msk [vmem:[#allocation4 + $0x58] sm:$0xff] %vm2124, %v2099
      %2137 = vst.msk [vmem:[#allocation4 + $0x60] sm:$0xff] %vm2124, %v2101
      %2138 = vst.msk [vmem:[#allocation4 + $0x68] sm:$0xff] %vm2124, %v2103
      %2139 = vst.msk [vmem:[#allocation4 + $0x70] sm:$0xff] %vm2124, %v2105
      %2140 = vst.msk [vmem:[#allocation4 + $0x78] sm:$0xff] %vm2124, %v2107
      %2142 = vrot.lane.b32.xlu0 %v2043, 76
      %v2143 = vpop.permute.xlu0 %2142
      %2144 = vrot.lane.b32.xlu0 %v2044, 76
      %v2145 = vpop.permute.xlu0 %2144
      %2146 = vrot.lane.b32.xlu0 %v2045, 76
      %v2147 = vpop.permute.xlu0 %2146
      %2148 = vrot.lane.b32.xlu0 %v2046, 76
      %v2149 = vpop.permute.xlu0 %2148
      %2150 = vrot.lane.b32.xlu0 %v2047, 76
      %v2151 = vpop.permute.xlu0 %2150
      %2152 = vrot.lane.b32.xlu0 %v2048, 76
      %v2153 = vpop.permute.xlu0 %2152
      %2154 = vrot.lane.b32.xlu0 %v2049, 76
      %v2155 = vpop.permute.xlu0 %2154
      %2156 = vrot.lane.b32.xlu0 %v2050, 76
      %v2157 = vpop.permute.xlu0 %2156
      %2158 = vrot.lane.b32.xlu0 %v2051, 76
      %v2159 = vpop.permute.xlu0 %2158
      %2160 = vrot.lane.b32.xlu0 %v2052, 76
      %v2161 = vpop.permute.xlu0 %2160
      %2162 = vrot.lane.b32.xlu0 %v2053, 76
      %v2163 = vpop.permute.xlu0 %2162
      %2164 = vrot.lane.b32.xlu0 %v2054, 76
      %v2165 = vpop.permute.xlu0 %2164
      %2166 = vrot.lane.b32.xlu0 %v2055, 76
      %v2167 = vpop.permute.xlu0 %2166
      %2168 = vrot.lane.b32.xlu0 %v2056, 76
      %v2169 = vpop.permute.xlu0 %2168
      %2170 = vrot.lane.b32.xlu0 %v2057, 76
      %v2171 = vpop.permute.xlu0 %2170
      %2172 = vrot.lane.b32.xlu0 %v2058, 76
      %v2173 = vpop.permute.xlu0 %2172
      %vm2190 = vcmask 687712
      %2191 = vst.msk [vmem:[#allocation4] sm:$0xff] %vm2190, %v2143
      %2192 = vst.msk [vmem:[#allocation4 + $0x8] sm:$0xff] %vm2190, %v2145
      %2193 = vst.msk [vmem:[#allocation4 + $0x10] sm:$0xff] %vm2190, %v2147
      %2194 = vst.msk [vmem:[#allocation4 + $0x18] sm:$0xff] %vm2190, %v2149
      %2195 = vst.msk [vmem:[#allocation4 + $0x20] sm:$0xff] %vm2190, %v2151
      %2196 = vst.msk [vmem:[#allocation4 + $0x28] sm:$0xff] %vm2190, %v2153
      %2197 = vst.msk [vmem:[#allocation4 + $0x30] sm:$0xff] %vm2190, %v2155
      %2198 = vst.msk [vmem:[#allocation4 + $0x38] sm:$0xff] %vm2190, %v2157
      %2199 = vst.msk [vmem:[#allocation4 + $0x40] sm:$0xff] %vm2190, %v2159
      %2200 = vst.msk [vmem:[#allocation4 + $0x48] sm:$0xff] %vm2190, %v2161
      %2201 = vst.msk [vmem:[#allocation4 + $0x50] sm:$0xff] %vm2190, %v2163
      %2202 = vst.msk [vmem:[#allocation4 + $0x58] sm:$0xff] %vm2190, %v2165
      %2203 = vst.msk [vmem:[#allocation4 + $0x60] sm:$0xff] %vm2190, %v2167
      %2204 = vst.msk [vmem:[#allocation4 + $0x68] sm:$0xff] %vm2190, %v2169
      %2205 = vst.msk [vmem:[#allocation4 + $0x70] sm:$0xff] %vm2190, %v2171
      %2206 = vst.msk [vmem:[#allocation4 + $0x78] sm:$0xff] %vm2190, %v2173
      %2208 = vrot.lane.b32.xlu0 %v2044, 100
      %v2209 = vpop.permute.xlu0 %2208
      %2210 = vrot.lane.b32.xlu0 %v2045, 100
      %v2211 = vpop.permute.xlu0 %2210
      %2212 = vrot.lane.b32.xlu0 %v2046, 100
      %v2213 = vpop.permute.xlu0 %2212
      %2214 = vrot.lane.b32.xlu0 %v2047, 100
      %v2215 = vpop.permute.xlu0 %2214
      %2216 = vrot.lane.b32.xlu0 %v2048, 100
      %v2217 = vpop.permute.xlu0 %2216
      %2218 = vrot.lane.b32.xlu0 %v2049, 100
      %v2219 = vpop.permute.xlu0 %2218
      %2220 = vrot.lane.b32.xlu0 %v2050, 100
      %v2221 = vpop.permute.xlu0 %2220
      %2222 = vrot.lane.b32.xlu0 %v2051, 100
      %v2223 = vpop.permute.xlu0 %2222
      %2224 = vrot.lane.b32.xlu0 %v2052, 100
      %v2225 = vpop.permute.xlu0 %2224
      %2226 = vrot.lane.b32.xlu0 %v2053, 100
      %v2227 = vpop.permute.xlu0 %2226
      %2228 = vrot.lane.b32.xlu0 %v2054, 100
      %v2229 = vpop.permute.xlu0 %2228
      %2230 = vrot.lane.b32.xlu0 %v2055, 100
      %v2231 = vpop.permute.xlu0 %2230
      %2232 = vrot.lane.b32.xlu0 %v2056, 100
      %v2233 = vpop.permute.xlu0 %2232
      %2234 = vrot.lane.b32.xlu0 %v2057, 100
      %v2235 = vpop.permute.xlu0 %2234
      %2236 = vrot.lane.b32.xlu0 %v2058, 100
      %v2237 = vpop.permute.xlu0 %2236
      %2238 = vrot.lane.b32.xlu0 %v2059, 100
      %v2239 = vpop.permute.xlu0 %2238
      %vm2256 = vcmask 884512
      %2257 = vst.msk [vmem:[#allocation4] sm:$0xff] %vm2256, %v2209
      %2258 = vst.msk [vmem:[#allocation4 + $0x8] sm:$0xff] %vm2256, %v2211
      %2259 = vst.msk [vmem:[#allocation4 + $0x10] sm:$0xff] %vm2256, %v2213
      %2260 = vst.msk [vmem:[#allocation4 + $0x18] sm:$0xff] %vm2256, %v2215
      %2261 = vst.msk [vmem:[#allocation4 + $0x20] sm:$0xff] %vm2256, %v2217
      %2262 = vst.msk [vmem:[#allocation4 + $0x28] sm:$0xff] %vm2256, %v2219
      %2263 = vst.msk [vmem:[#allocation4 + $0x30] sm:$0xff] %vm2256, %v2221
      %2264 = vst.msk [vmem:[#allocation4 + $0x38] sm:$0xff] %vm2256, %v2223
      %2265 = vst.msk [vmem:[#allocation4 + $0x40] sm:$0xff] %vm2256, %v2225
      %2266 = vst.msk [vmem:[#allocation4 + $0x48] sm:$0xff] %vm2256, %v2227
      %2267 = vst.msk [vmem:[#allocation4 + $0x50] sm:$0xff] %vm2256, %v2229
      %2268 = vst.msk [vmem:[#allocation4 + $0x58] sm:$0xff] %vm2256, %v2231
      %2269 = vst.msk [vmem:[#allocation4 + $0x60] sm:$0xff] %vm2256, %v2233
      %2270 = vst.msk [vmem:[#allocation4 + $0x68] sm:$0xff] %vm2256, %v2235
      %2271 = vst.msk [vmem:[#allocation4 + $0x70] sm:$0xff] %vm2256, %v2237
      %2272 = vst.msk [vmem:[#allocation4 + $0x78] sm:$0xff] %vm2256, %v2239
      %v2273 = vld [vmem:[#allocation4] sm:$0xff]
      %v2274 = vld [vmem:[#allocation4 + $0x8] sm:$0xff]
      %v2275 = vld [vmem:[#allocation4 + $0x10] sm:$0xff]
      %v2276 = vld [vmem:[#allocation4 + $0x18] sm:$0xff]
      %v2277 = vld [vmem:[#allocation4 + $0x20] sm:$0xff]
      %v2278 = vld [vmem:[#allocation4 + $0x28] sm:$0xff]
      %v2279 = vld [vmem:[#allocation4 + $0x30] sm:$0xff]
      %v2280 = vld [vmem:[#allocation4 + $0x38] sm:$0xff]
      %v2281 = vld [vmem:[#allocation4 + $0x40] sm:$0xff]
      %v2282 = vld [vmem:[#allocation4 + $0x48] sm:$0xff]
      %v2283 = vld [vmem:[#allocation4 + $0x50] sm:$0xff]
      %v2284 = vld [vmem:[#allocation4 + $0x58] sm:$0xff]
      %v2285 = vld [vmem:[#allocation4 + $0x60] sm:$0xff]
      %v2286 = vld [vmem:[#allocation4 + $0x68] sm:$0xff]
      %v2287 = vld [vmem:[#allocation4 + $0x70] sm:$0xff]
      %v2288 = vld [vmem:[#allocation4 + $0x78] sm:$0xff]
      %v2289 = vld [vmem:[%s3] sm:$0xf]
      %v2290 = vld [vmem:[%s3 + $0x4] sm:$0xf]
      %v2291 = vld [vmem:[%s3 + $0x8] sm:$0xf]
      %v2292 = vld [vmem:[%s3 + $0xc] sm:$0xf]
      %v2293 = vld [vmem:[%s3 + $0x10] sm:$0xf]
      %v2294 = vld [vmem:[%s3 + $0x14] sm:$0xf]
      %v2295 = vld [vmem:[%s3 + $0x18] sm:$0xf]
      %v2296 = vld [vmem:[%s3 + $0x1c] sm:$0xf]
      %v2297 = vld [vmem:[%s3 + $0x20] sm:$0xf]
      %v2298 = vld [vmem:[%s3 + $0x24] sm:$0xf]
      %v2299 = vld [vmem:[%s3 + $0x28] sm:$0xf]
      %v2300 = vld [vmem:[%s3 + $0x2c] sm:$0xf]
      %v2301 = vld [vmem:[%s3 + $0x30] sm:$0xf]
      %v2302 = vld [vmem:[%s3 + $0x34] sm:$0x3]
      %v2303 = vld [vmem:[%s4] sm:$0x1]
      %v2305 = vlaneseq
      %v2306 = vshrl.u32 %v2305, 7
      %v2307 = vsub.s32 0, %v2306
      %v2308 = vrot.slane %v2303, %v2307
      %v2324 = vunpack.c.l.b16 %v2289
      %v2325 = vunpack.c.l.b16 %v2290
      %v2326 = vunpack.c.l.b16 %v2291
      %v2327 = vunpack.c.l.b16 %v2292
      %v2328 = vunpack.c.l.b16 %v2293
      %v2329 = vunpack.c.l.b16 %v2294
      %v2330 = vunpack.c.l.b16 %v2295
      %v2331 = vunpack.c.l.b16 %v2296
      %v2332 = vunpack.c.l.b16 %v2297
      %v2333 = vunpack.c.l.b16 %v2298
      %v2334 = vunpack.c.l.b16 %v2299
      %v2335 = vunpack.c.l.b16 %v2300
      %v2336 = vunpack.c.l.b16 %v2301
      %v2337 = vunpack.c.l.b16 %v2302
      %v2338 = vpack.c.b16 %v2325, %v2324
      %v2339 = vpack.c.b16 %v2327, %v2326
      %v2340 = vpack.c.b16 %v2329, %v2328
      %v2341 = vpack.c.b16 %v2331, %v2330
      %v2342 = vpack.c.b16 %v2333, %v2332
      %v2343 = vpack.c.b16 %v2335, %v2334
      %v2344 = vpack.c.b16 %v2337, %v2336
      %vm2351 = vcmask 883712
      %v2353 = vsel %vm2351, %v2273, 0
      %v2356 = vsel %vm2351, %v2274, 0
      %v2359 = vsel %vm2351, %v2275, 0
      %v2362 = vsel %vm2351, %v2276, 0
      %v2365 = vsel %vm2351, %v2277, 0
      %v2368 = vsel %vm2351, %v2278, 0
      %v2371 = vsel %vm2351, %v2279, 0
      %v2374 = vsel %vm2351, %v2280, 0
      %v2377 = vsel %vm2351, %v2281, 0
      %v2380 = vsel %vm2351, %v2282, 0
      %v2383 = vsel %vm2351, %v2283, 0
      %v2386 = vsel %vm2351, %v2284, 0
      %v2389 = vsel %vm2351, %v2285, 0
      %v2392 = vsel %vm2351, %v2286, 0
      %v2395 = vsel %vm2351, %v2287, 0
      %v2398 = vsel %vm2351, %v2288, 0
      %vm2400 = vcmask 1045504
      %v2402 = vsel %vm2400, %v2344, 0
      %2404 = vmatprep.subr.bf16.mxu0 0
      %2405 = vmatpush1.bf16.msra.mxu0 %v2338
      %2406 = vmatprep.subr.bf16.mxu0 0
      %2407 = vmatpush1.bf16.msra.mxu0 %v2339
      %2408 = vmatprep.subr.bf16.mxu0 0
      %2409 = vmatpush1.bf16.msra.mxu0 %v2340
      %2410 = vmatprep.subr.bf16.mxu0 0
      %2411 = vmatpush1.bf16.msra.mxu0 %v2341
      %2412 = vmatprep.subr.bf16.mxu0 0
      %2413 = vmatpush1.bf16.msra.mxu0 %v2342
      %2414 = vmatprep.subr.bf16.mxu0 0
      %2415 = vmatpush1.bf16.msra.mxu0 %v2343
      %2416 = vmatprep.subr.bf16.mxu0 0
      %2417 = vmatpush1.bf16.msra.mxu0 %v2402
      %2418 = vmatprep.subr.bf16.mxu0 0
      %2419 = vmatpush1.bf16.msra.mxu0 0
      %2420 = vmatprep.subr.bf16.mxu0 0
      %2421 = vmatpush1.bf16.msra.mxu0 0
      %2422 = vmatprep.subr.bf16.mxu0 0
      %2423 = vmatpush1.bf16.msra.mxu0 0
      %2424 = vmatprep.subr.bf16.mxu0 0
      %2425 = vmatpush1.bf16.msra.mxu0 0
      %2426 = vmatprep.subr.bf16.mxu0 0
      %2427 = vmatpush1.bf16.msra.mxu0 0
      %2428 = vmatprep.subr.bf16.mxu0 0
      %2429 = vmatpush1.bf16.msra.mxu0 0
      %2430 = vmatprep.subr.bf16.mxu0 0
      %2431 = vmatpush1.bf16.msra.mxu0 0
      %2432 = vmatprep.subr.bf16.mxu0 0
      %2433 = vmatpush1.bf16.msra.mxu0 0
      %2434 = vmatprep.subr.bf16.mxu0 0
      %2435 = vmatpush1.bf16.msra.mxu0 0
      %2436 = vmatprep.mubr.bf16.mxu0 0
      %2437 = vmatmul.mubr.bf16.gmra.mrb[0].mxu0 %v2353
      %v2438 = vpop.f32.mrb[0].mxu0
      %v2439 = vadd.f32 %v2308, %v2438
      %v2440 = vpop.f32.mrb[0].mxu0
      %v2441 = vpop.f32.mrb[0].mxu0
      %v2442 = vadd.f32 %v2308, %v2441
      %v2443 = vpop.f32.mrb[0].mxu0
      %2444 = vmatprep.mubr.bf16.mxu0 0
      %2445 = vmatmul.mubr.bf16.gmra.mrb[0].mxu0 %v2356
      %v2446 = vpop.f32.mrb[0].mxu0
      %v2447 = vadd.f32 %v2308, %v2446
      %v2448 = vpop.f32.mrb[0].mxu0
      %v2449 = vpop.f32.mrb[0].mxu0
      %v2450 = vadd.f32 %v2308, %v2449
      %v2451 = vpop.f32.mrb[0].mxu0
      %2452 = vmatprep.mubr.bf16.mxu0 0
      %2453 = vmatmul.mubr.bf16.gmra.mrb[0].mxu0 %v2359
      %v2454 = vpop.f32.mrb[0].mxu0
      %v2455 = vadd.f32 %v2308, %v2454
      %v2456 = vpop.f32.mrb[0].mxu0
      %v2457 = vpop.f32.mrb[0].mxu0
      %v2458 = vadd.f32 %v2308, %v2457
      %v2459 = vpop.f32.mrb[0].mxu0
      %2460 = vmatprep.mubr.bf16.mxu0 0
      %2461 = vmatmul.mubr.bf16.gmra.mrb[0].mxu0 %v2362
      %v2462 = vpop.f32.mrb[0].mxu0
      %v2463 = vadd.f32 %v2308, %v2462
      %v2464 = vpop.f32.mrb[0].mxu0
      %v2465 = vpop.f32.mrb[0].mxu0
      %v2466 = vadd.f32 %v2308, %v2465
      %v2467 = vpop.f32.mrb[0].mxu0
      %2468 = vmatprep.mubr.bf16.mxu0 0
      %2469 = vmatmul.mubr.bf16.gmra.mrb[0].mxu0 %v2365
      %v2470 = vpop.f32.mrb[0].mxu0
      %v2471 = vadd.f32 %v2308, %v2470
      %v2472 = vpop.f32.mrb[0].mxu0
      %v2473 = vpop.f32.mrb[0].mxu0
      %v2474 = vadd.f32 %v2308, %v2473
      %v2475 = vpop.f32.mrb[0].mxu0
      %2476 = vmatprep.mubr.bf16.mxu0 0
      %2477 = vmatmul.mubr.bf16.gmra.mrb[0].mxu0 %v2368
      %v2478 = vpop.f32.mrb[0].mxu0
      %v2479 = vadd.f32 %v2308, %v2478
      %v2480 = vpop.f32.mrb[0].mxu0
      %v2481 = vpop.f32.mrb[0].mxu0
      %v2482 = vadd.f32 %v2308, %v2481
      %v2483 = vpop.f32.mrb[0].mxu0
      %2484 = vmatprep.mubr.bf16.mxu0 0
      %2485 = vmatmul.mubr.bf16.gmra.mrb[0].mxu0 %v2371
      %v2486 = vpop.f32.mrb[0].mxu0
      %v2487 = vadd.f32 %v2308, %v2486
      %v2488 = vpop.f32.mrb[0].mxu0
      %v2489 = vpop.f32.mrb[0].mxu0
      %v2490 = vadd.f32 %v2308, %v2489
      %v2491 = vpop.f32.mrb[0].mxu0
      %2492 = vmatprep.mubr.bf16.mxu0 0
      %2493 = vmatmul.mubr.bf16.gmra.mrb[0].mxu0 %v2374
      %v2494 = vpop.f32.mrb[0].mxu0
      %v2495 = vadd.f32 %v2308, %v2494
      %v2496 = vpop.f32.mrb[0].mxu0
      %v2497 = vpop.f32.mrb[0].mxu0
      %v2498 = vadd.f32 %v2308, %v2497
      %v2499 = vpop.f32.mrb[0].mxu0
      %2500 = vmatprep.mubr.bf16.mxu0 0
      %2501 = vmatmul.mubr.bf16.gmra.mrb[0].mxu0 %v2377
      %v2502 = vpop.f32.mrb[0].mxu0
      %v2503 = vadd.f32 %v2308, %v2502
      %v2504 = vpop.f32.mrb[0].mxu0
      %v2505 = vpop.f32.mrb[0].mxu0
      %v2506 = vadd.f32 %v2308, %v2505
      %v2507 = vpop.f32.mrb[0].mxu0
      %2508 = vmatprep.mubr.bf16.mxu0 0
      %2509 = vmatmul.mubr.bf16.gmra.mrb[0].mxu0 %v2380
      %v2510 = vpop.f32.mrb[0].mxu0
      %v2511 = vadd.f32 %v2308, %v2510
      %v2512 = vpop.f32.mrb[0].mxu0
      %v2513 = vpop.f32.mrb[0].mxu0
      %v2514 = vadd.f32 %v2308, %v2513
      %v2515 = vpop.f32.mrb[0].mxu0
      %2516 = vmatprep.mubr.bf16.mxu0 0
      %2517 = vmatmul.mubr.bf16.gmra.mrb[0].mxu0 %v2383
      %v2518 = vpop.f32.mrb[0].mxu0
      %v2519 = vadd.f32 %v2308, %v2518
      %v2520 = vpop.f32.mrb[0].mxu0
      %v2521 = vpop.f32.mrb[0].mxu0
      %v2522 = vadd.f32 %v2308, %v2521
      %v2523 = vpop.f32.mrb[0].mxu0
      %2524 = vmatprep.mubr.bf16.mxu0 0
      %2525 = vmatmul.mubr.bf16.gmra.mrb[0].mxu0 %v2386
      %v2526 = vpop.f32.mrb[0].mxu0
      %v2527 = vadd.f32 %v2308, %v2526
      %v2528 = vpop.f32.mrb[0].mxu0
      %v2529 = vpop.f32.mrb[0].mxu0
      %v2530 = vadd.f32 %v2308, %v2529
      %v2531 = vpop.f32.mrb[0].mxu0
      %2532 = vmatprep.mubr.bf16.mxu0 0
      %2533 = vmatmul.mubr.bf16.gmra.mrb[0].mxu0 %v2389
      %v2534 = vpop.f32.mrb[0].mxu0
      %v2535 = vadd.f32 %v2308, %v2534
      %v2536 = vpop.f32.mrb[0].mxu0
      %v2537 = vpop.f32.mrb[0].mxu0
      %v2538 = vadd.f32 %v2308, %v2537
      %v2539 = vpop.f32.mrb[0].mxu0
      %2540 = vmatprep.mubr.bf16.mxu0 0
      %2541 = vmatmul.mubr.bf16.gmra.mrb[0].mxu0 %v2392
      %v2542 = vpop.f32.mrb[0].mxu0
      %v2543 = vadd.f32 %v2308, %v2542
      %v2544 = vpop.f32.mrb[0].mxu0
      %v2545 = vpop.f32.mrb[0].mxu0
      %v2546 = vadd.f32 %v2308, %v2545
      %v2547 = vpop.f32.mrb[0].mxu0
      %2548 = vmatprep.mubr.bf16.mxu0 0
      %2549 = vmatmul.mubr.bf16.gmra.mrb[0].mxu0 %v2395
      %v2550 = vpop.f32.mrb[0].mxu0
      %v2551 = vadd.f32 %v2308, %v2550
      %v2552 = vpop.f32.mrb[0].mxu0
      %v2553 = vpop.f32.mrb[0].mxu0
      %v2554 = vadd.f32 %v2308, %v2553
      %v2555 = vpop.f32.mrb[0].mxu0
      %2556 = vmatprep.mubr.bf16.mxu0 0
      %2557 = vmatmul.mubr.bf16.gmra.mrb[0].mxu0 %v2398
      %v2558 = vpop.f32.mrb[0].mxu0
      %v2559 = vadd.f32 %v2308, %v2558
      %v2560 = vpop.f32.mrb[0].mxu0
      %v2561 = vpop.f32.mrb[0].mxu0
      %v2562 = vadd.f32 %v2308, %v2561
      %v2563 = vpop.f32.mrb[0].mxu0
      %2564 = vdwg.mxu0
      %2565 = vst.msk [vmem:[%s224] sm:$0xff] %vm1393, %v2439
      %2566 = vst.msk [vmem:[%s224 + $0x8] sm:$0xff] %vm1393, %v2442
      %2567 = vst.msk [vmem:[%s224 + $0x10] sm:$0xff] %vm1393, %v2447
      %2568 = vst.msk [vmem:[%s224 + $0x18] sm:$0xff] %vm1393, %v2450
      %2569 = vst.msk [vmem:[%s224 + $0x20] sm:$0xff] %vm1393, %v2455
      %2570 = vst.msk [vmem:[%s224 + $0x28] sm:$0xff] %vm1393, %v2458
      %2571 = vst.msk [vmem:[%s224 + $0x30] sm:$0xff] %vm1393, %v2463
      %2572 = vst.msk [vmem:[%s224 + $0x38] sm:$0xff] %vm1393, %v2466
      %2573 = vst.msk [vmem:[%s224 + $0x40] sm:$0xff] %vm1393, %v2471
      %2574 = vst.msk [vmem:[%s224 + $0x48] sm:$0xff] %vm1393, %v2474
      %2575 = vst.msk [vmem:[%s224 + $0x50] sm:$0xff] %vm1393, %v2479
      %2576 = vst.msk [vmem:[%s224 + $0x58] sm:$0xff] %vm1393, %v2482
      %2577 = vst.msk [vmem:[%s224 + $0x60] sm:$0xff] %vm1393, %v2487
      %2578 = vst.msk [vmem:[%s224 + $0x68] sm:$0xff] %vm1393, %v2490
      %2579 = vst.msk [vmem:[%s224 + $0x70] sm:$0xff] %vm1393, %v2495
      %2580 = vst.msk [vmem:[%s224 + $0x78] sm:$0xff] %vm1393, %v2498
      %2581 = vst.msk [vmem:[%s224 + $0x80] sm:$0xff] %vm1393, %v2503
      %2582 = vst.msk [vmem:[%s224 + $0x88] sm:$0xff] %vm1393, %v2506
      %2583 = vst.msk [vmem:[%s224 + $0x90] sm:$0xff] %vm1393, %v2511
      %2584 = vst.msk [vmem:[%s224 + $0x98] sm:$0xff] %vm1393, %v2514
      %2585 = vst.msk [vmem:[%s224 + $0xa0] sm:$0xff] %vm1393, %v2519
      %2586 = vst.msk [vmem:[%s224 + $0xa8] sm:$0xff] %vm1393, %v2522
      %2587 = vst.msk [vmem:[%s224 + $0xb0] sm:$0xff] %vm1393, %v2527
      %2588 = vst.msk [vmem:[%s224 + $0xb8] sm:$0xff] %vm1393, %v2530
      %2589 = vst.msk [vmem:[%s224 + $0xc0] sm:$0xff] %vm1393, %v2535
      %2590 = vst.msk [vmem:[%s224 + $0xc8] sm:$0xff] %vm1393, %v2538
      %2591 = vst.msk [vmem:[%s224 + $0xd0] sm:$0xff] %vm1393, %v2543
      %2592 = vst.msk [vmem:[%s224 + $0xd8] sm:$0xff] %vm1393, %v2546
      %2593 = vst.msk [vmem:[%s224 + $0xe0] sm:$0xff] %vm1393, %v2551
      %2594 = vst.msk [vmem:[%s224 + $0xe8] sm:$0xff] %vm1393, %v2554
      %2595 = vst.msk [vmem:[%s224 + $0xf0] sm:$0xff] %vm1393, %v2559
      %2596 = vst.msk [vmem:[%s224 + $0xf8] sm:$0xff] %vm1393, %v2562
      %p2597 = scmp.lt.s32.totalorder %s16, 1
      %s2598 = scalar_select %p2597, %s16, 1
      %s2599 = smul.addr %s2598, 32
      %s2600 = smul.addr %s2599, 8
      %s2601 = scalar_lea.vmem %s5, %s2600
      // Predicated region
      $region41: #{tpu_custom_call.1} parent=39 // pred_check
        %p2602 = pneg %p144
      $region42: #{tpu_custom_call.1} parent=39 // pred_check_branch
        %2604 = sbr.rel (%p2602) target = $region44
      $region43: #{tpu_custom_call.1} parent=39 // pred_region
        _
      $region44: #{tpu_custom_call.1} parent=39 // pred_fallthru
        _
    $region40: #{tpu_custom_call.1} parent=5 // pred_fallthru
      _
    %p2605 = scmp.le.s32.totalorder 2, %s11
    // Predicated region
    $region45: #{tpu_custom_call.1} parent=5 // pred_check
      %p2606 = pneg %p2605
    $region46: #{tpu_custom_call.1} parent=5 // pred_check_branch
      %2608 = sbr.rel (%p2606) target = $region48
    $region47: #{tpu_custom_call.1} parent=5 // pred_region
      %s2609 = ssub.s32 %s11, 2
      // Predicated region
      $region49: #{tpu_custom_call.1} parent=47 // pred_check
        %p2610 = pneg %p150
      $region50: #{tpu_custom_call.1} parent=47 // pred_check_branch
        %2612 = sbr.rel (%p2610) target = $region52
      $region51: #{tpu_custom_call.1} parent=47 // pred_region
        %p2613 = scmp.lt.s32.totalorder %s17, 1
        %s2614 = scalar_select %p2613, %s17, 1
        %s2615 = smul.addr %s2614, 32
        %s2616 = smul.addr %s2615, 8
        %s2617 = scalar_lea.vmem %s5, %s2616
      $region52: #{tpu_custom_call.1} parent=47 // pred_fallthru
        _
    $region48: #{tpu_custom_call.1} parent=5 // pred_fallthru
      _
  $region6: #{tpu_custom_call.1} parent=0 // loop_footer
    %s15 = sadd.s32 1, %s11
  $region7: #{tpu_custom_call.1} parent=0 // loop_footer_branch
    %10 = sbr.rel target = $region3
  $region8: #{tpu_custom_call.1} parent=0 // loop_exit
    _

</llo_original>
